<compile_context>
chip_gen: v5e
topology: v5e:2x2
jax: 0.10.0
libtpu: 0.0.40
codegen_flags: <defaults>
</compile_context>

<pallas_src>
import functools
import math

import numpy as np
import jax
import jax.numpy as jnp
from jax import lax
from jax.experimental import pallas as pl
from jax.experimental.pallas import tpu as pltpu

# ----------------------------- synthetic config -----------------------------
BATCH = 2
C_IN = 3
FIXED_H, FIXED_W = 16, 32            # cfg.INPUT.FIXED_SIZE
CNN_NUM_POOLING = 2                  # backbone downsamples by 4
BACKBONE_CH = (8, 16)                # backbone.out_channels = 16
TRANSFORMER_FSIZE = 8                # OutConv out-channels and dim_feedforward
OUTCONV_KS = 1
NHEAD = 4
NUM_CLASSES = 23                     # len(characters) + 3
BATCH_MAX_LENGTH = 8                 # decoder seq length = 9
NUM_ENC_LAYERS = 1
NUM_DEC_LAYERS = 1
H_OUT = FIXED_H // (2 ** CNN_NUM_POOLING)        # 4
W_OUT = FIXED_W // (2 ** CNN_NUM_POOLING)        # 8
D_MODEL = H_OUT * TRANSFORMER_FSIZE              # 32  (use_projection=False branch)
NEG_FILL = -1e30                     # logit filler for padded generator classes

_NT = (((1,), (1,)), ((), ()))       # dot_general dims for  a @ b.T


# ------------------------- fused transformer kernel -------------------------

def _mha(xq, xkv, w_in_ref, b_in_ref, wo_ref, *, nhead, dh):
    """Multi-head attention on (Lq, D) / (Lkv, D) values held in vregs.

    w_in_ref : (3*nhead, dh, D)  output-major per-head Q|K|V projection weights
    b_in_ref : (3*nhead, 1, dh)  matching biases
    wo_ref   : (D+1, D)          output projection, last row = bias
    """
    d_model = nhead * dh
    scale = 1.0 / math.sqrt(dh)
    out = None
    for h in range(nhead):
        qh = lax.dot_general(xq, w_in_ref[h], _NT,
                             preferred_element_type=jnp.float32) + b_in_ref[h]
        kh = lax.dot_general(xkv, w_in_ref[nhead + h], _NT,
                             preferred_element_type=jnp.float32) + b_in_ref[nhead + h]
        vh = lax.dot_general(xkv, w_in_ref[2 * nhead + h], _NT,
                             preferred_element_type=jnp.float32) + b_in_ref[2 * nhead + h]
        s = lax.dot_general(qh, kh, _NT, preferred_element_type=jnp.float32) * scale
        m = jnp.max(s, axis=-1, keepdims=True)
        p = jnp.exp(s - m)
        # softmax denominator via EUP reciprocal (perf-review suggestion); use
        # plain division instead if bit-exact parity with torch softmax is needed.
        attn = p * pl.reciprocal(jnp.sum(p, axis=-1, keepdims=True), approx=True)
        ctx = jnp.dot(attn, vh, preferred_element_type=jnp.float32)          # (Lq, dh)
        # (concat_h ctx_h) @ Wo  ==  sum_h ctx_h @ Wo[h*dh:(h+1)*dh, :]
        contrib = jnp.dot(ctx, wo_ref[h * dh:(h + 1) * dh, :],
                          preferred_element_type=jnp.float32)                # (Lq, D)
        out = contrib if out is None else out + contrib
    return out + wo_ref[d_model:d_model + 1, :]


def _layernorm(x, ln_ref, eps=1e-5):
    mu = jnp.mean(x, axis=-1, keepdims=True)
    xc = x - mu
    var = jnp.mean(xc * xc, axis=-1, keepdims=True)
    return xc * lax.rsqrt(var + eps) * ln_ref[0:1, :] + ln_ref[1:2, :]


def _linear(x, w_ref, relu=False):
    k = w_ref.shape[0] - 1
    y = jnp.dot(x, w_ref[0:k, :], preferred_element_type=jnp.float32) + w_ref[k:k + 1, :]
    return jnp.maximum(y, 0.0) if relu else y


def _text_transformer_kernel(*refs, n_enc, n_dec, nhead, n_hc):
    """One grid step == one batch element; everything below stays in VMEM/vregs."""
    it = iter(refs)
    feat_ref = next(it)     # (Hc, Wc, C2)   backbone feature for this batch element
    wvis_ref = next(it)     # (Hc, C2, D)    OutConv weight, block-expanded per row hc
    pe_ref = next(it)       # (S, D)         positional encoding for the source
    tgt_ref = next(it)      # (T, D)         embedded target tokens (*sqrt(D) + PE)
    enc_refs = [tuple(next(it) for _ in range(7)) for _ in range(n_enc)]
    dec_refs = [tuple(next(it) for _ in range(11)) for _ in range(n_dec)]
    gen_ref = next(it)      # (D+1, Cpad)    generator weight (+bias row), lane-padded
    out_ref = next(it)      # (T, Cpad)      log-probs output

    d_model = pe_ref.shape[-1]
    dh = d_model // nhead

    # OutConv (1x1, bias=False) + permute(3,0,2,1).view(W, H*F):
    # src[w, hc*F:(hc+1)*F] = feat[hc] @ Wout, built as a sum of block-expanded
    # weights (no sub-lane writes needed); PE is added in the same pass.
    x = pe_ref[...]
    for hc in range(n_hc):
        x = x + jnp.dot(feat_ref[hc], wvis_ref[hc], preferred_element_type=jnp.float32)

    # --- Transformer encoder (post-LN, ReLU FFN) ---
    for (w_in, b_in, wo, ln1, f1, f2, ln2) in enc_refs:
        a = _mha(x, x, w_in, b_in, wo, nhead=nhead, dh=dh)
        x = _layernorm(x + a, ln1)
        h = _linear(x, f1, relu=True)
        h = _linear(h, f2)
        x = _layernorm(x + h, ln2)
    memory = x

    # --- Transformer decoder (tgt_mask=None / memory_mask=None as in forward) ---
    y = tgt_ref[...]
    for (sw, sb, swo, ln1, cw, cb, cwo, ln2, f1, f2, ln3) in dec_refs:
        a = _mha(y, y, sw, sb, swo, nhead=nhead, dh=dh)
        y = _layernorm(y + a, ln1)
        a = _mha(y, memory, cw, cb, cwo, nhead=nhead, dh=dh)
        y = _layernorm(y + a, ln2)
        h = _linear(y, f1, relu=True)
        h = _linear(h, f2)
        y = _layernorm(y + h, ln3)

    # --- generator: Linear + log_softmax over (lane-padded) classes ---
    logits = _linear(y, gen_ref)                                  # (T, Cpad)
    m = jnp.max(logits, axis=-1, keepdims=True)
    lse = m + jnp.log(jnp.sum(jnp.exp(logits - m), axis=-1, keepdims=True))
    out_ref[...] = logits - lse


# ----------------------------- host-side packing -----------------------------

def _pack_attn(p, nhead):
    """Pack q/k/v/o params so the kernel only uses leading-axis integer indexing
    and sublane slicing (never sub-128 lane slicing)."""
    d_model = p['wq'].shape[0]
    dh = d_model // nhead

    def heads(w):                      # (D_in, D_out) -> (nhead, dh, D_in) output-major
        return jnp.transpose(w, (1, 0)).reshape(nhead, dh, d_model)

    def bheads(b):                     # (D_out,) -> (nhead, 1, dh)
        return b.reshape(nhead, 1, dh)

    w_in = jnp.concatenate([heads(p['wq']), heads(p['wk']), heads(p['wv'])], axis=0)
    b_in = jnp.concatenate([bheads(p['bq']), bheads(p['bk']), bheads(p['bv'])], axis=0)
    wo = jnp.concatenate([p['wo'], p['bo'][None, :]], axis=0)
    return w_in, b_in, wo


def _pack_linear(w, b):
    return jnp.concatenate([w, b[None, :]], axis=0)


def _pack_ln(g, b):
    return jnp.stack([g, b], axis=0)


def sinusoidal_pe(length, d):
    pos = np.arange(length, dtype=np.float32)[:, None]
    i = np.arange(d, dtype=np.float32)[None, :]
    angle = pos / np.power(10000.0, 2.0 * np.floor(i / 2.0) / d)
    pe = np.where((np.arange(d) % 2) == 0, np.sin(angle), np.cos(angle))
    return jnp.asarray(pe, jnp.float32)


def fused_text_transformer(params, feat, num_classes):
    """feat: (B, Hc, Wc, C2) NHWC backbone output -> (B, T, Cpad) log-probs."""
    B, Hc, Wc, C2 = feat.shape
    F = params['outconv_w'].shape[0]
    S = Wc
    T = BATCH_MAX_LENGTH + 1
    D = Hc * F
    Cpad = max(128, -(-num_classes // 128) * 128)

    pe = sinusoidal_pe(max(S, T), D)
    pe_src = pe[:S]
    text_ids = jnp.arange(T, dtype=jnp.int32)             # index_encode (same per batch)
    tgt = jnp.take(params['tgt_emb'], text_ids, axis=0) * math.sqrt(D) + pe[:T]

    # OutConv weight, block-expanded per feature-row hc so the kernel computes
    # src = sum_hc feat[hc] @ w_vis[hc] (its columns hc*F:(hc+1)*F) exactly.
    w_mat = params['outconv_w'].reshape(F, C2).T           # (C2, F)
    w_vis = jnp.zeros((Hc, C2, D), jnp.float32)
    for hc in range(Hc):
        w_vis = w_vis.at[hc, :, hc * F:(hc + 1) * F].set(w_mat)

    inputs = [feat.astype(jnp.float32)]
    in_specs = [pl.BlockSpec((None, Hc, Wc, C2), lambda b: (b, 0, 0, 0))]

    def _add(arr):
        arr = arr.astype(jnp.float32)
        inputs.append(arr)
        in_specs.append(pl.BlockSpec(arr.shape, lambda b, _r=arr.ndim: (0,) * _r))

    _add(w_vis)
    _add(pe_src)
    _add(tgt)

    for lp in params['enc_layers']:
        w_in, b_in, wo = _pack_attn(lp['attn'], NHEAD)
        for a in (w_in, b_in, wo,
                  _pack_ln(lp['ln1_g'], lp['ln1_b']),
                  _pack_linear(lp['ffn_w1'], lp['ffn_b1']),
                  _pack_linear(lp['ffn_w2'], lp['ffn_b2']),
                  _pack_ln(lp['ln2_g'], lp['ln2_b'])):
            _add(a)

    for lp in params['dec_layers']:
        sw, sb, swo = _pack_attn(lp['self_attn'], NHEAD)
        cw, cb, cwo = _pack_attn(lp['cross_attn'], NHEAD)
        for a in (sw, sb, swo,
                  _pack_ln(lp['ln1_g'], lp['ln1_b']),
                  cw, cb, cwo,
                  _pack_ln(lp['ln2_g'], lp['ln2_b']),
                  _pack_linear(lp['ffn_w1'], lp['ffn_b1']),
                  _pack_linear(lp['ffn_w2'], lp['ffn_b2']),
                  _pack_ln(lp['ln3_g'], lp['ln3_b'])):
            _add(a)

    # generator: zero-pad weight columns to a full 128-lane tile; padded bias -1e30
    gw = jnp.pad(params['gen_w'], ((0, 0), (0, Cpad - num_classes)))
    gb = jnp.pad(params['gen_b'], (0, Cpad - num_classes), constant_values=NEG_FILL)
    _add(jnp.concatenate([gw, gb[None, :]], axis=0))

    kernel = functools.partial(_text_transformer_kernel,
                               n_enc=len(params['enc_layers']),
                               n_dec=len(params['dec_layers']),
                               nhead=NHEAD, n_hc=Hc)

    return pl.pallas_call(
        kernel,
        out_shape=jax.ShapeDtypeStruct((B, T, Cpad), jnp.float32),
        grid=(B,),
        in_specs=in_specs,
        out_specs=pl.BlockSpec((None, T, Cpad), lambda b: (b, 0, 0)),
        compiler_params=pltpu.CompilerParams(dimension_semantics=("parallel",)),
    )(*inputs)


# --------------------------------- backbone ----------------------------------

def backbone_nhwc(x, params):
    # TODO(synk): build_backbone(cfg) is config-dependent (ResNet/FPN); synthetic
    # 2-stage conv3x3+ReLU+maxpool stack here.  Kept channels-last in XLA
    # (lax.conv, perf-review option (b)): the convs are tiny and this avoids the
    # im2col HBM blow-up and NCHW<->NHWC relayouts of the previous version.
    def stage(x, w, b):
        y = lax.conv_general_dilated(
            x, jnp.transpose(w, (2, 3, 1, 0)), window_strides=(1, 1),
            padding='SAME', dimension_numbers=('NHWC', 'HWIO', 'NHWC'))
        y = jnp.maximum(y + b, 0.0)
        return lax.reduce_window(y, -jnp.inf, lax.max,
                                 (1, 2, 2, 1), (1, 2, 2, 1), 'VALID')

    x = stage(x, params['conv1_w'], params['conv1_b'])
    x = stage(x, params['conv2_w'], params['conv2_b'])
    return x


# ---------------------------------- forward ----------------------------------

@jax.jit
def _forward_core(params, images):
    """images: (B, 3, H, W) NCHW float32 (== images.tensors)."""
    x = jnp.transpose(images, (0, 2, 3, 1))                    # single NHWC relayout
    feat = backbone_nhwc(x, params)                            # (B, Hc, Wc, C2)
    logp = fused_text_transformer(params, feat, NUM_CLASSES)   # (B, T, Cpad) log-probs
    logp = logp[:, :, :NUM_CLASSES]
    score = jnp.exp(jnp.max(logp, axis=-1))                    # torch.exp(result.max(2).values)
    pred = jnp.argmax(logp, axis=-1).astype(jnp.int32)         # result.max(2).indices (first-idx ties)
    return pred, score


def text_recognizer_forward(params, images):
    pred, score = _forward_core(params, images)
    size = tuple(int(s) for s in images.shape[2:])
    result_list = []
    for i in range(pred.shape[0]):
        result_list.append({
            'bbox': jnp.zeros((1, 4), jnp.float32),   # BoxList(torch.zeros(1,4), size)
            'size': size,
            'pred': pred[i],
            'score': score[i],
            'input_image': images[i],
        })
    return pred, score, result_list


# ------------------------------ parameter init ------------------------------

def _normal(key, shape, scale=0.05):
    return scale * jax.random.normal(key, shape, dtype=jnp.float32)


def init_params(key):
    keys = iter(jax.random.split(key, 64))
    nk = lambda: next(keys)
    zeros = lambda n: jnp.zeros((n,), jnp.float32)
    ones = lambda n: jnp.ones((n,), jnp.float32)

    def attn_p():
        return {'wq': _normal(nk(), (D_MODEL, D_MODEL)), 'bq': zeros(D_MODEL),
                'wk': _normal(nk(), (D_MODEL, D_MODEL)), 'bk': zeros(D_MODEL),
                'wv': _normal(nk(), (D_MODEL, D_MODEL)), 'bv': zeros(D_MODEL),
                'wo': _normal(nk(), (D_MODEL, D_MODEL)), 'bo': zeros(D_MODEL)}

    dff = TRANSFORMER_FSIZE
    params = {
        'conv1_w': _normal(nk(), (BACKBONE_CH[0], C_IN, 3, 3)),
        'conv1_b': zeros(BACKBONE_CH[0]),
        'conv2_w': _normal(nk(), (BACKBONE_CH[1], BACKBONE_CH[0], 3, 3)),
        'conv2_b': zeros(BACKBONE_CH[1]),
        'outconv_w': _normal(nk(), (TRANSFORMER_FSIZE, BACKBONE_CH[1], OUTCONV_KS, OUTCONV_KS)),
        'enc_layers': [],
        'dec_layers': [],
        'tgt_emb': _normal(nk(), (NUM_CLASSES, D_MODEL)),
        'gen_w': _normal(nk(), (D_MODEL, NUM_CLASSES)),
        'gen_b': zeros(NUM_CLASSES),
    }
    for _ in range(NUM_ENC_LAYERS):
        params['enc_layers'].append({
            'attn': attn_p(),
            'ln1_g': ones(D_MODEL), 'ln1_b': zeros(D_MODEL),
            'ffn_w1': _normal(nk(), (D_MODEL, dff)), 'ffn_b1': zeros(dff),
            'ffn_w2': _normal(nk(), (dff, D_MODEL)), 'ffn_b2': zeros(D_MODEL),
            'ln2_g': ones(D_MODEL), 'ln2_b': zeros(D_MODEL),
        })
    for _ in range(NUM_DEC_LAYERS):
        params['dec_layers'].append({
            'self_attn': attn_p(),
            'ln1_g': ones(D_MODEL), 'ln1_b': zeros(D_MODEL),
            'cross_attn': attn_p(),
            'ln2_g': ones(D_MODEL), 'ln2_b': zeros(D_MODEL),
            'ffn_w1': _normal(nk(), (D_MODEL, dff)), 'ffn_b1': zeros(dff),
            'ffn_w2': _normal(nk(), (dff, D_MODEL)), 'ffn_b2': zeros(D_MODEL),
            'ln3_g': ones(D_MODEL), 'ln3_b': zeros(D_MODEL),
        })
    return params


# ----------------------------------- main ------------------------------------

if __name__ == "__main__":
    root = jax.random.PRNGKey(0)
    k_params, k_img = jax.random.split(root)
    params = init_params(k_params)
    images = jax.random.normal(k_img, (BATCH, C_IN, FIXED_H, FIXED_W), dtype=jnp.float32)

    pred, score, result_list = text_recognizer_forward(params, images)
    jax.block_until_ready((pred, score))

    assert pred.shape == (BATCH, BATCH_MAX_LENGTH + 1)
    assert score.shape == (BATCH, BATCH_MAX_LENGTH + 1)
    assert len(result_list) == BATCH
    assert bool(jnp.all(jnp.isfinite(score)))
    print("KERNEL_OK")
</pallas_src>

<mosaic_0001>
module attributes {stable_mosaic.version = 11 : i64} {
  func.func @_text_transformer_kernel(%arg0: i32, %arg1: memref<1x4x8x16xf32, #tpu.memory_space<vmem>>, %arg2: memref<4x16x32xf32, #tpu.memory_space<vmem>>, %arg3: memref<8x32xf32, #tpu.memory_space<vmem>>, %arg4: memref<9x32xf32, #tpu.memory_space<vmem>>, %arg5: memref<12x8x32xf32, #tpu.memory_space<vmem>>, %arg6: memref<12x1x8xf32, #tpu.memory_space<vmem>>, %arg7: memref<33x32xf32, #tpu.memory_space<vmem>>, %arg8: memref<2x32xf32, #tpu.memory_space<vmem>>, %arg9: memref<33x8xf32, #tpu.memory_space<vmem>>, %arg10: memref<9x32xf32, #tpu.memory_space<vmem>>, %arg11: memref<2x32xf32, #tpu.memory_space<vmem>>, %arg12: memref<12x8x32xf32, #tpu.memory_space<vmem>>, %arg13: memref<12x1x8xf32, #tpu.memory_space<vmem>>, %arg14: memref<33x32xf32, #tpu.memory_space<vmem>>, %arg15: memref<2x32xf32, #tpu.memory_space<vmem>>, %arg16: memref<12x8x32xf32, #tpu.memory_space<vmem>>, %arg17: memref<12x1x8xf32, #tpu.memory_space<vmem>>, %arg18: memref<33x32xf32, #tpu.memory_space<vmem>>, %arg19: memref<2x32xf32, #tpu.memory_space<vmem>>, %arg20: memref<33x8xf32, #tpu.memory_space<vmem>>, %arg21: memref<9x32xf32, #tpu.memory_space<vmem>>, %arg22: memref<2x32xf32, #tpu.memory_space<vmem>>, %arg23: memref<33x128xf32, #tpu.memory_space<vmem>>, %arg24: memref<1x9x128xf32, #tpu.memory_space<vmem>>) attributes {dimension_semantics = [#tpu.dimension_semantics<parallel>], iteration_bounds = array<i64: 2>, scalar_prefetch = 0 : i64, scratch_operands = 0 : i64, tpu.core_type = #tpu.core_type<tc>, window_params = [{transform_indices = @transform_0, window_bounds = array<i64: 1, 4, 8, 16>}, {pipeline_mode = #tpu.pipeline_mode<synchronous>, transform_indices = @transform_1, window_bounds = array<i64: 4, 16, 32>}, {pipeline_mode = #tpu.pipeline_mode<synchronous>, transform_indices = @transform_2, window_bounds = array<i64: 8, 32>}, {pipeline_mode = #tpu.pipeline_mode<synchronous>, transform_indices = @transform_3, window_bounds = array<i64: 9, 32>}, {pipeline_mode = #tpu.pipeline_mode<synchronous>, transform_indices = @transform_4, window_bounds = array<i64: 12, 8, 32>}, {pipeline_mode = #tpu.pipeline_mode<synchronous>, transform_indices = @transform_5, window_bounds = array<i64: 12, 1, 8>}, {pipeline_mode = #tpu.pipeline_mode<synchronous>, transform_indices = @transform_6, window_bounds = array<i64: 33, 32>}, {pipeline_mode = #tpu.pipeline_mode<synchronous>, transform_indices = @transform_7, window_bounds = array<i64: 2, 32>}, {pipeline_mode = #tpu.pipeline_mode<synchronous>, transform_indices = @transform_8, window_bounds = array<i64: 33, 8>}, {pipeline_mode = #tpu.pipeline_mode<synchronous>, transform_indices = @transform_9, window_bounds = array<i64: 9, 32>}, {pipeline_mode = #tpu.pipeline_mode<synchronous>, transform_indices = @transform_10, window_bounds = array<i64: 2, 32>}, {pipeline_mode = #tpu.pipeline_mode<synchronous>, transform_indices = @transform_11, window_bounds = array<i64: 12, 8, 32>}, {pipeline_mode = #tpu.pipeline_mode<synchronous>, transform_indices = @transform_12, window_bounds = array<i64: 12, 1, 8>}, {pipeline_mode = #tpu.pipeline_mode<synchronous>, transform_indices = @transform_13, window_bounds = array<i64: 33, 32>}, {pipeline_mode = #tpu.pipeline_mode<synchronous>, transform_indices = @transform_14, window_bounds = array<i64: 2, 32>}, {pipeline_mode = #tpu.pipeline_mode<synchronous>, transform_indices = @transform_15, window_bounds = array<i64: 12, 8, 32>}, {pipeline_mode = #tpu.pipeline_mode<synchronous>, transform_indices = @transform_16, window_bounds = array<i64: 12, 1, 8>}, {pipeline_mode = #tpu.pipeline_mode<synchronous>, transform_indices = @transform_17, window_bounds = array<i64: 33, 32>}, {pipeline_mode = #tpu.pipeline_mode<synchronous>, transform_indices = @transform_18, window_bounds = array<i64: 2, 32>}, {pipeline_mode = #tpu.pipeline_mode<synchronous>, transform_indices = @transform_19, window_bounds = array<i64: 33, 8>}, {pipeline_mode = #tpu.pipeline_mode<synchronous>, transform_indices = @transform_20, window_bounds = array<i64: 9, 32>}, {pipeline_mode = #tpu.pipeline_mode<synchronous>, transform_indices = @transform_21, window_bounds = array<i64: 2, 32>}, {pipeline_mode = #tpu.pipeline_mode<synchronous>, transform_indices = @transform_22, window_bounds = array<i64: 33, 128>}, {transform_indices = @transform_23, window_bounds = array<i64: 1, 9, 128>}]} {
    %c0 = arith.constant 0 : index
    %c0_0 = arith.constant 0 : index
    %0 = vector.load %arg3[%c0, %c0_0] : memref<8x32xf32, #tpu.memory_space<vmem>>, vector<8x32xf32>
    %c0_1 = arith.constant 0 : index
    %c0_2 = arith.constant 0 : index
    %c0_3 = arith.constant 0 : index
    %c0_4 = arith.constant 0 : index
    %1 = vector.load %arg1[%c0_1, %c0_2, %c0_3, %c0_4] : memref<1x4x8x16xf32, #tpu.memory_space<vmem>>, vector<1x1x8x16xf32>
    %2 = vector.shape_cast %1 : vector<1x1x8x16xf32> to vector<8x16xf32>
    %c0_5 = arith.constant 0 : index
    %c0_6 = arith.constant 0 : index
    %c0_7 = arith.constant 0 : index
    %3 = vector.load %arg2[%c0_5, %c0_6, %c0_7] : memref<4x16x32xf32, #tpu.memory_space<vmem>>, vector<1x16x32xf32>
    %4 = vector.shape_cast %3 : vector<1x16x32xf32> to vector<16x32xf32>
    %cst = arith.constant dense<0.000000e+00> : vector<8x32xf32>
    %5 = tpu.matmul %2, %4, %cst {dimension_numbers = #tpu.dot_dimension_numbers<[1], [0], [0], [1], [0, 0, 1, 1], [], []>} : vector<8x16xf32>, vector<16x32xf32>, vector<8x32xf32> -> vector<8x32xf32>
    %6 = arith.addf %0, %5 : vector<8x32xf32>
    %c0_8 = arith.constant 0 : index
    %c1 = arith.constant 1 : index
    %c0_9 = arith.constant 0 : index
    %c0_10 = arith.constant 0 : index
    %7 = vector.load %arg1[%c0_8, %c1, %c0_9, %c0_10] : memref<1x4x8x16xf32, #tpu.memory_space<vmem>>, vector<1x1x8x16xf32>
    %8 = vector.shape_cast %7 : vector<1x1x8x16xf32> to vector<8x16xf32>
    %c1_11 = arith.constant 1 : index
    %c0_12 = arith.constant 0 : index
    %c0_13 = arith.constant 0 : index
    %9 = vector.load %arg2[%c1_11, %c0_12, %c0_13] : memref<4x16x32xf32, #tpu.memory_space<vmem>>, vector<1x16x32xf32>
    %10 = vector.shape_cast %9 : vector<1x16x32xf32> to vector<16x32xf32>
    %cst_14 = arith.constant dense<0.000000e+00> : vector<8x32xf32>
    %11 = tpu.matmul %8, %10, %cst_14 {dimension_numbers = #tpu.dot_dimension_numbers<[1], [0], [0], [1], [0, 0, 1, 1], [], []>} : vector<8x16xf32>, vector<16x32xf32>, vector<8x32xf32> -> vector<8x32xf32>
    %12 = arith.addf %6, %11 : vector<8x32xf32>
    %c0_15 = arith.constant 0 : index
    %c2 = arith.constant 2 : index
    %c0_16 = arith.constant 0 : index
    %c0_17 = arith.constant 0 : index
    %13 = vector.load %arg1[%c0_15, %c2, %c0_16, %c0_17] : memref<1x4x8x16xf32, #tpu.memory_space<vmem>>, vector<1x1x8x16xf32>
    %14 = vector.shape_cast %13 : vector<1x1x8x16xf32> to vector<8x16xf32>
    %c2_18 = arith.constant 2 : index
    %c0_19 = arith.constant 0 : index
    %c0_20 = arith.constant 0 : index
    %15 = vector.load %arg2[%c2_18, %c0_19, %c0_20] : memref<4x16x32xf32, #tpu.memory_space<vmem>>, vector<1x16x32xf32>
    %16 = vector.shape_cast %15 : vector<1x16x32xf32> to vector<16x32xf32>
    %cst_21 = arith.constant dense<0.000000e+00> : vector<8x32xf32>
    %17 = tpu.matmul %14, %16, %cst_21 {dimension_numbers = #tpu.dot_dimension_numbers<[1], [0], [0], [1], [0, 0, 1, 1], [], []>} : vector<8x16xf32>, vector<16x32xf32>, vector<8x32xf32> -> vector<8x32xf32>
    %18 = arith.addf %12, %17 : vector<8x32xf32>
    %c0_22 = arith.constant 0 : index
    %c3 = arith.constant 3 : index
    %c0_23 = arith.constant 0 : index
    %c0_24 = arith.constant 0 : index
    %19 = vector.load %arg1[%c0_22, %c3, %c0_23, %c0_24] : memref<1x4x8x16xf32, #tpu.memory_space<vmem>>, vector<1x1x8x16xf32>
    %20 = vector.shape_cast %19 : vector<1x1x8x16xf32> to vector<8x16xf32>
    %c3_25 = arith.constant 3 : index
    %c0_26 = arith.constant 0 : index
    %c0_27 = arith.constant 0 : index
    %21 = vector.load %arg2[%c3_25, %c0_26, %c0_27] : memref<4x16x32xf32, #tpu.memory_space<vmem>>, vector<1x16x32xf32>
    %22 = vector.shape_cast %21 : vector<1x16x32xf32> to vector<16x32xf32>
    %cst_28 = arith.constant dense<0.000000e+00> : vector<8x32xf32>
    %23 = tpu.matmul %20, %22, %cst_28 {dimension_numbers = #tpu.dot_dimension_numbers<[1], [0], [0], [1], [0, 0, 1, 1], [], []>} : vector<8x16xf32>, vector<16x32xf32>, vector<8x32xf32> -> vector<8x32xf32>
    %24 = arith.addf %18, %23 : vector<8x32xf32>
    %c0_29 = arith.constant 0 : index
    %c0_30 = arith.constant 0 : index
    %c0_31 = arith.constant 0 : index
    %25 = vector.load %arg5[%c0_29, %c0_30, %c0_31] : memref<12x8x32xf32, #tpu.memory_space<vmem>>, vector<1x8x32xf32>
    %26 = vector.shape_cast %25 : vector<1x8x32xf32> to vector<8x32xf32>
    %cst_32 = arith.constant dense<0.000000e+00> : vector<8x8xf32>
    %27 = tpu.matmul %24, %26, %cst_32 {dimension_numbers = #tpu.dot_dimension_numbers<[1], [1], [0], [0], [0, 0, 1, 0], [], []>} : vector<8x32xf32>, vector<8x32xf32>, vector<8x8xf32> -> vector<8x8xf32>
    %c0_33 = arith.constant 0 : index
    %c0_34 = arith.constant 0 : index
    %c0_35 = arith.constant 0 : index
    %28 = vector.load %arg6[%c0_33, %c0_34, %c0_35] : memref<12x1x8xf32, #tpu.memory_space<vmem>>, vector<1x1x8xf32>
    %29 = vector.shape_cast %28 : vector<1x1x8xf32> to vector<1x8xf32>
    %30 = vector.broadcast %29 : vector<1x8xf32> to vector<8x8xf32>
    %31 = arith.addf %27, %30 : vector<8x8xf32>
    %c4 = arith.constant 4 : index
    %c0_36 = arith.constant 0 : index
    %c0_37 = arith.constant 0 : index
    %32 = vector.load %arg5[%c4, %c0_36, %c0_37] : memref<12x8x32xf32, #tpu.memory_space<vmem>>, vector<1x8x32xf32>
    %33 = vector.shape_cast %32 : vector<1x8x32xf32> to vector<8x32xf32>
    %cst_38 = arith.constant dense<0.000000e+00> : vector<8x8xf32>
    %34 = tpu.matmul %24, %33, %cst_38 {dimension_numbers = #tpu.dot_dimension_numbers<[1], [1], [0], [0], [0, 0, 1, 0], [], []>} : vector<8x32xf32>, vector<8x32xf32>, vector<8x8xf32> -> vector<8x8xf32>
    %c4_39 = arith.constant 4 : index
    %c0_40 = arith.constant 0 : index
    %c0_41 = arith.constant 0 : index
    %35 = vector.load %arg6[%c4_39, %c0_40, %c0_41] : memref<12x1x8xf32, #tpu.memory_space<vmem>>, vector<1x1x8xf32>
    %36 = vector.shape_cast %35 : vector<1x1x8xf32> to vector<1x8xf32>
    %37 = vector.broadcast %36 : vector<1x8xf32> to vector<8x8xf32>
    %38 = arith.addf %34, %37 : vector<8x8xf32>
    %c8 = arith.constant 8 : index
    %c0_42 = arith.constant 0 : index
    %c0_43 = arith.constant 0 : index
    %39 = vector.load %arg5[%c8, %c0_42, %c0_43] : memref<12x8x32xf32, #tpu.memory_space<vmem>>, vector<1x8x32xf32>
    %40 = vector.shape_cast %39 : vector<1x8x32xf32> to vector<8x32xf32>
    %cst_44 = arith.constant dense<0.000000e+00> : vector<8x8xf32>
    %41 = tpu.matmul %24, %40, %cst_44 {dimension_numbers = #tpu.dot_dimension_numbers<[1], [1], [0], [0], [0, 0, 1, 0], [], []>} : vector<8x32xf32>, vector<8x32xf32>, vector<8x8xf32> -> vector<8x8xf32>
    %c8_45 = arith.constant 8 : index
    %c0_46 = arith.constant 0 : index
    %c0_47 = arith.constant 0 : index
    %42 = vector.load %arg6[%c8_45, %c0_46, %c0_47] : memref<12x1x8xf32, #tpu.memory_space<vmem>>, vector<1x1x8xf32>
    %43 = vector.shape_cast %42 : vector<1x1x8xf32> to vector<1x8xf32>
    %44 = vector.broadcast %43 : vector<1x8xf32> to vector<8x8xf32>
    %45 = arith.addf %41, %44 : vector<8x8xf32>
    %cst_48 = arith.constant dense<0.000000e+00> : vector<8x8xf32>
    %46 = tpu.matmul %31, %38, %cst_48 {dimension_numbers = #tpu.dot_dimension_numbers<[1], [1], [0], [0], [0, 0, 1, 0], [], []>} : vector<8x8xf32>, vector<8x8xf32>, vector<8x8xf32> -> vector<8x8xf32>
    %cst_49 = arith.constant 0.353553385 : f32
    %47 = vector.broadcast %cst_49 : f32 to vector<8x8xf32>
    %48 = arith.mulf %46, %47 : vector<8x8xf32>
    %cst_50 = arith.constant dense<0xFF800000> : vector<8xf32>
    %49 = vector.multi_reduction <maximumf>, %48, %cst_50 [1] : vector<8x8xf32> to vector<8xf32>
    %50 = vector.shape_cast %49 : vector<8xf32> to vector<8x1xf32>
    %51 = vector.broadcast %50 : vector<8x1xf32> to vector<8x8xf32>
    %52 = arith.subf %48, %51 : vector<8x8xf32>
    %53 = math.exp %52 : vector<8x8xf32>
    %cst_51 = arith.constant dense<0.000000e+00> : vector<8xf32>
    %54 = vector.multi_reduction <add>, %53, %cst_51 [1] : vector<8x8xf32> to vector<8xf32>
    %55 = vector.shape_cast %54 : vector<8xf32> to vector<8x1xf32>
    %56 = tpu.reciprocal %55 {approx = true} : vector<8x1xf32> -> vector<8x1xf32>
    %57 = vector.broadcast %56 : vector<8x1xf32> to vector<8x8xf32>
    %58 = arith.mulf %53, %57 : vector<8x8xf32>
    %cst_52 = arith.constant dense<0.000000e+00> : vector<8x8xf32>
    %59 = tpu.matmul %58, %45, %cst_52 {dimension_numbers = #tpu.dot_dimension_numbers<[1], [0], [0], [1], [0, 0, 1, 1], [], []>} : vector<8x8xf32>, vector<8x8xf32>, vector<8x8xf32> -> vector<8x8xf32>
    %c0_53 = arith.constant 0 : index
    %c0_54 = arith.constant 0 : index
    %60 = vector.load %arg7[%c0_53, %c0_54] : memref<33x32xf32, #tpu.memory_space<vmem>>, vector<8x32xf32>
    %cst_55 = arith.constant dense<0.000000e+00> : vector<8x32xf32>
    %61 = tpu.matmul %59, %60, %cst_55 {dimension_numbers = #tpu.dot_dimension_numbers<[1], [0], [0], [1], [0, 0, 1, 1], [], []>} : vector<8x8xf32>, vector<8x32xf32>, vector<8x32xf32> -> vector<8x32xf32>
    %c1_56 = arith.constant 1 : index
    %c0_57 = arith.constant 0 : index
    %c0_58 = arith.constant 0 : index
    %62 = vector.load %arg5[%c1_56, %c0_57, %c0_58] : memref<12x8x32xf32, #tpu.memory_space<vmem>>, vector<1x8x32xf32>
    %63 = vector.shape_cast %62 : vector<1x8x32xf32> to vector<8x32xf32>
    %cst_59 = arith.constant dense<0.000000e+00> : vector<8x8xf32>
    %64 = tpu.matmul %24, %63, %cst_59 {dimension_numbers = #tpu.dot_dimension_numbers<[1], [1], [0], [0], [0, 0, 1, 0], [], []>} : vector<8x32xf32>, vector<8x32xf32>, vector<8x8xf32> -> vector<8x8xf32>
    %c1_60 = arith.constant 1 : index
    %c0_61 = arith.constant 0 : index
    %c0_62 = arith.constant 0 : index
    %65 = vector.load %arg6[%c1_60, %c0_61, %c0_62] : memref<12x1x8xf32, #tpu.memory_space<vmem>>, vector<1x1x8xf32>
    %66 = vector.shape_cast %65 : vector<1x1x8xf32> to vector<1x8xf32>
    %67 = vector.broadcast %66 : vector<1x8xf32> to vector<8x8xf32>
    %68 = arith.addf %64, %67 : vector<8x8xf32>
    %c5 = arith.constant 5 : index
    %c0_63 = arith.constant 0 : index
    %c0_64 = arith.constant 0 : index
    %69 = vector.load %arg5[%c5, %c0_63, %c0_64] : memref<12x8x32xf32, #tpu.memory_space<vmem>>, vector<1x8x32xf32>
    %70 = vector.shape_cast %69 : vector<1x8x32xf32> to vector<8x32xf32>
    %cst_65 = arith.constant dense<0.000000e+00> : vector<8x8xf32>
    %71 = tpu.matmul %24, %70, %cst_65 {dimension_numbers = #tpu.dot_dimension_numbers<[1], [1], [0], [0], [0, 0, 1, 0], [], []>} : vector<8x32xf32>, vector<8x32xf32>, vector<8x8xf32> -> vector<8x8xf32>
    %c5_66 = arith.constant 5 : index
    %c0_67 = arith.constant 0 : index
    %c0_68 = arith.constant 0 : index
    %72 = vector.load %arg6[%c5_66, %c0_67, %c0_68] : memref<12x1x8xf32, #tpu.memory_space<vmem>>, vector<1x1x8xf32>
    %73 = vector.shape_cast %72 : vector<1x1x8xf32> to vector<1x8xf32>
    %74 = vector.broadcast %73 : vector<1x8xf32> to vector<8x8xf32>
    %75 = arith.addf %71, %74 : vector<8x8xf32>
    %c9 = arith.constant 9 : index
    %c0_69 = arith.constant 0 : index
    %c0_70 = arith.constant 0 : index
    %76 = vector.load %arg5[%c9, %c0_69, %c0_70] : memref<12x8x32xf32, #tpu.memory_space<vmem>>, vector<1x8x32xf32>
    %77 = vector.shape_cast %76 : vector<1x8x32xf32> to vector<8x32xf32>
    %cst_71 = arith.constant dense<0.000000e+00> : vector<8x8xf32>
    %78 = tpu.matmul %24, %77, %cst_71 {dimension_numbers = #tpu.dot_dimension_numbers<[1], [1], [0], [0], [0, 0, 1, 0], [], []>} : vector<8x32xf32>, vector<8x32xf32>, vector<8x8xf32> -> vector<8x8xf32>
    %c9_72 = arith.constant 9 : index
    %c0_73 = arith.constant 0 : index
    %c0_74 = arith.constant 0 : index
    %79 = vector.load %arg6[%c9_72, %c0_73, %c0_74] : memref<12x1x8xf32, #tpu.memory_space<vmem>>, vector<1x1x8xf32>
    %80 = vector.shape_cast %79 : vector<1x1x8xf32> to vector<1x8xf32>
    %81 = vector.broadcast %80 : vector<1x8xf32> to vector<8x8xf32>
    %82 = arith.addf %78, %81 : vector<8x8xf32>
    %cst_75 = arith.constant dense<0.000000e+00> : vector<8x8xf32>
    %83 = tpu.matmul %68, %75, %cst_75 {dimension_numbers = #tpu.dot_dimension_numbers<[1], [1], [0], [0], [0, 0, 1, 0], [], []>} : vector<8x8xf32>, vector<8x8xf32>, vector<8x8xf32> -> vector<8x8xf32>
    %cst_76 = arith.constant 0.353553385 : f32
    %84 = vector.broadcast %cst_76 : f32 to vector<8x8xf32>
    %85 = arith.mulf %83, %84 : vector<8x8xf32>
    %cst_77 = arith.constant dense<0xFF800000> : vector<8xf32>
    %86 = vector.multi_reduction <maximumf>, %85, %cst_77 [1] : vector<8x8xf32> to vector<8xf32>
    %87 = vector.shape_cast %86 : vector<8xf32> to vector<8x1xf32>
    %88 = vector.broadcast %87 : vector<8x1xf32> to vector<8x8xf32>
    %89 = arith.subf %85, %88 : vector<8x8xf32>
    %90 = math.exp %89 : vector<8x8xf32>
    %cst_78 = arith.constant dense<0.000000e+00> : vector<8xf32>
    %91 = vector.multi_reduction <add>, %90, %cst_78 [1] : vector<8x8xf32> to vector<8xf32>
    %92 = vector.shape_cast %91 : vector<8xf32> to vector<8x1xf32>
    %93 = tpu.reciprocal %92 {approx = true} : vector<8x1xf32> -> vector<8x1xf32>
    %94 = vector.broadcast %93 : vector<8x1xf32> to vector<8x8xf32>
    %95 = arith.mulf %90, %94 : vector<8x8xf32>
    %cst_79 = arith.constant dense<0.000000e+00> : vector<8x8xf32>
    %96 = tpu.matmul %95, %82, %cst_79 {dimension_numbers = #tpu.dot_dimension_numbers<[1], [0], [0], [1], [0, 0, 1, 1], [], []>} : vector<8x8xf32>, vector<8x8xf32>, vector<8x8xf32> -> vector<8x8xf32>
    %c8_80 = arith.constant 8 : index
    %c0_81 = arith.constant 0 : index
    %97 = vector.load %arg7[%c8_80, %c0_81] : memref<33x32xf32, #tpu.memory_space<vmem>>, vector<8x32xf32>
    %cst_82 = arith.constant dense<0.000000e+00> : vector<8x32xf32>
    %98 = tpu.matmul %96, %97, %cst_82 {dimension_numbers = #tpu.dot_dimension_numbers<[1], [0], [0], [1], [0, 0, 1, 1], [], []>} : vector<8x8xf32>, vector<8x32xf32>, vector<8x32xf32> -> vector<8x32xf32>
    %99 = arith.addf %61, %98 : vector<8x32xf32>
    %c2_83 = arith.constant 2 : index
    %c0_84 = arith.constant 0 : index
    %c0_85 = arith.constant 0 : index
    %100 = vector.load %arg5[%c2_83, %c0_84, %c0_85] : memref<12x8x32xf32, #tpu.memory_space<vmem>>, vector<1x8x32xf32>
    %101 = vector.shape_cast %100 : vector<1x8x32xf32> to vector<8x32xf32>
    %cst_86 = arith.constant dense<0.000000e+00> : vector<8x8xf32>
    %102 = tpu.matmul %24, %101, %cst_86 {dimension_numbers = #tpu.dot_dimension_numbers<[1], [1], [0], [0], [0, 0, 1, 0], [], []>} : vector<8x32xf32>, vector<8x32xf32>, vector<8x8xf32> -> vector<8x8xf32>
    %c2_87 = arith.constant 2 : index
    %c0_88 = arith.constant 0 : index
    %c0_89 = arith.constant 0 : index
    %103 = vector.load %arg6[%c2_87, %c0_88, %c0_89] : memref<12x1x8xf32, #tpu.memory_space<vmem>>, vector<1x1x8xf32>
    %104 = vector.shape_cast %103 : vector<1x1x8xf32> to vector<1x8xf32>
    %105 = vector.broadcast %104 : vector<1x8xf32> to vector<8x8xf32>
    %106 = arith.addf %102, %105 : vector<8x8xf32>
    %c6 = arith.constant 6 : index
    %c0_90 = arith.constant 0 : index
    %c0_91 = arith.constant 0 : index
    %107 = vector.load %arg5[%c6, %c0_90, %c0_91] : memref<12x8x32xf32, #tpu.memory_space<vmem>>, vector<1x8x32xf32>
    %108 = vector.shape_cast %107 : vector<1x8x32xf32> to vector<8x32xf32>
    %cst_92 = arith.constant dense<0.000000e+00> : vector<8x8xf32>
    %109 = tpu.matmul %24, %108, %cst_92 {dimension_numbers = #tpu.dot_dimension_numbers<[1], [1], [0], [0], [0, 0, 1, 0], [], []>} : vector<8x32xf32>, vector<8x32xf32>, vector<8x8xf32> -> vector<8x8xf32>
    %c6_93 = arith.constant 6 : index
    %c0_94 = arith.constant 0 : index
    %c0_95 = arith.constant 0 : index
    %110 = vector.load %arg6[%c6_93, %c0_94, %c0_95] : memref<12x1x8xf32, #tpu.memory_space<vmem>>, vector<1x1x8xf32>
    %111 = vector.shape_cast %110 : vector<1x1x8xf32> to vector<1x8xf32>
    %112 = vector.broadcast %111 : vector<1x8xf32> to vector<8x8xf32>
    %113 = arith.addf %109, %112 : vector<8x8xf32>
    %c10 = arith.constant 10 : index
    %c0_96 = arith.constant 0 : index
    %c0_97 = arith.constant 0 : index
    %114 = vector.load %arg5[%c10, %c0_96, %c0_97] : memref<12x8x32xf32, #tpu.memory_space<vmem>>, vector<1x8x32xf32>
    %115 = vector.shape_cast %114 : vector<1x8x32xf32> to vector<8x32xf32>
    %cst_98 = arith.constant dense<0.000000e+00> : vector<8x8xf32>
    %116 = tpu.matmul %24, %115, %cst_98 {dimension_numbers = #tpu.dot_dimension_numbers<[1], [1], [0], [0], [0, 0, 1, 0], [], []>} : vector<8x32xf32>, vector<8x32xf32>, vector<8x8xf32> -> vector<8x8xf32>
    %c10_99 = arith.constant 10 : index
    %c0_100 = arith.constant 0 : index
    %c0_101 = arith.constant 0 : index
    %117 = vector.load %arg6[%c10_99, %c0_100, %c0_101] : memref<12x1x8xf32, #tpu.memory_space<vmem>>, vector<1x1x8xf32>
    %118 = vector.shape_cast %117 : vector<1x1x8xf32> to vector<1x8xf32>
    %119 = vector.broadcast %118 : vector<1x8xf32> to vector<8x8xf32>
    %120 = arith.addf %116, %119 : vector<8x8xf32>
    %cst_102 = arith.constant dense<0.000000e+00> : vector<8x8xf32>
    %121 = tpu.matmul %106, %113, %cst_102 {dimension_numbers = #tpu.dot_dimension_numbers<[1], [1], [0], [0], [0, 0, 1, 0], [], []>} : vector<8x8xf32>, vector<8x8xf32>, vector<8x8xf32> -> vector<8x8xf32>
    %cst_103 = arith.constant 0.353553385 : f32
    %122 = vector.broadcast %cst_103 : f32 to vector<8x8xf32>
    %123 = arith.mulf %121, %122 : vector<8x8xf32>
    %cst_104 = arith.constant dense<0xFF800000> : vector<8xf32>
    %124 = vector.multi_reduction <maximumf>, %123, %cst_104 [1] : vector<8x8xf32> to vector<8xf32>
    %125 = vector.shape_cast %124 : vector<8xf32> to vector<8x1xf32>
    %126 = vector.broadcast %125 : vector<8x1xf32> to vector<8x8xf32>
    %127 = arith.subf %123, %126 : vector<8x8xf32>
    %128 = math.exp %127 : vector<8x8xf32>
    %cst_105 = arith.constant dense<0.000000e+00> : vector<8xf32>
    %129 = vector.multi_reduction <add>, %128, %cst_105 [1] : vector<8x8xf32> to vector<8xf32>
    %130 = vector.shape_cast %129 : vector<8xf32> to vector<8x1xf32>
    %131 = tpu.reciprocal %130 {approx = true} : vector<8x1xf32> -> vector<8x1xf32>
    %132 = vector.broadcast %131 : vector<8x1xf32> to vector<8x8xf32>
    %133 = arith.mulf %128, %132 : vector<8x8xf32>
    %cst_106 = arith.constant dense<0.000000e+00> : vector<8x8xf32>
    %134 = tpu.matmul %133, %120, %cst_106 {dimension_numbers = #tpu.dot_dimension_numbers<[1], [0], [0], [1], [0, 0, 1, 1], [], []>} : vector<8x8xf32>, vector<8x8xf32>, vector<8x8xf32> -> vector<8x8xf32>
    %c16 = arith.constant 16 : index
    %c0_107 = arith.constant 0 : index
    %135 = vector.load %arg7[%c16, %c0_107] : memref<33x32xf32, #tpu.memory_space<vmem>>, vector<8x32xf32>
    %cst_108 = arith.constant dense<0.000000e+00> : vector<8x32xf32>
    %136 = tpu.matmul %134, %135, %cst_108 {dimension_numbers = #tpu.dot_dimension_numbers<[1], [0], [0], [1], [0, 0, 1, 1], [], []>} : vector<8x8xf32>, vector<8x32xf32>, vector<8x32xf32> -> vector<8x32xf32>
    %137 = arith.addf %99, %136 : vector<8x32xf32>
    %c3_109 = arith.constant 3 : index
    %c0_110 = arith.constant 0 : index
    %c0_111 = arith.constant 0 : index
    %138 = vector.load %arg5[%c3_109, %c0_110, %c0_111] : memref<12x8x32xf32, #tpu.memory_space<vmem>>, vector<1x8x32xf32>
    %139 = vector.shape_cast %138 : vector<1x8x32xf32> to vector<8x32xf32>
    %cst_112 = arith.constant dense<0.000000e+00> : vector<8x8xf32>
    %140 = tpu.matmul %24, %139, %cst_112 {dimension_numbers = #tpu.dot_dimension_numbers<[1], [1], [0], [0], [0, 0, 1, 0], [], []>} : vector<8x32xf32>, vector<8x32xf32>, vector<8x8xf32> -> vector<8x8xf32>
    %c3_113 = arith.constant 3 : index
    %c0_114 = arith.constant 0 : index
    %c0_115 = arith.constant 0 : index
    %141 = vector.load %arg6[%c3_113, %c0_114, %c0_115] : memref<12x1x8xf32, #tpu.memory_space<vmem>>, vector<1x1x8xf32>
    %142 = vector.shape_cast %141 : vector<1x1x8xf32> to vector<1x8xf32>
    %143 = vector.broadcast %142 : vector<1x8xf32> to vector<8x8xf32>
    %144 = arith.addf %140, %143 : vector<8x8xf32>
    %c7 = arith.constant 7 : index
    %c0_116 = arith.constant 0 : index
    %c0_117 = arith.constant 0 : index
    %145 = vector.load %arg5[%c7, %c0_116, %c0_117] : memref<12x8x32xf32, #tpu.memory_space<vmem>>, vector<1x8x32xf32>
    %146 = vector.shape_cast %145 : vector<1x8x32xf32> to vector<8x32xf32>
    %cst_118 = arith.constant dense<0.000000e+00> : vector<8x8xf32>
    %147 = tpu.matmul %24, %146, %cst_118 {dimension_numbers = #tpu.dot_dimension_numbers<[1], [1], [0], [0], [0, 0, 1, 0], [], []>} : vector<8x32xf32>, vector<8x32xf32>, vector<8x8xf32> -> vector<8x8xf32>
    %c7_119 = arith.constant 7 : index
    %c0_120 = arith.constant 0 : index
    %c0_121 = arith.constant 0 : index
    %148 = vector.load %arg6[%c7_119, %c0_120, %c0_121] : memref<12x1x8xf32, #tpu.memory_space<vmem>>, vector<1x1x8xf32>
    %149 = vector.shape_cast %148 : vector<1x1x8xf32> to vector<1x8xf32>
    %150 = vector.broadcast %149 : vector<1x8xf32> to vector<8x8xf32>
    %151 = arith.addf %147, %150 : vector<8x8xf32>
    %c11 = arith.constant 11 : index
    %c0_122 = arith.constant 0 : index
    %c0_123 = arith.constant 0 : index
    %152 = vector.load %arg5[%c11, %c0_122, %c0_123] : memref<12x8x32xf32, #tpu.memory_space<vmem>>, vector<1x8x32xf32>
    %153 = vector.shape_cast %152 : vector<1x8x32xf32> to vector<8x32xf32>
    %cst_124 = arith.constant dense<0.000000e+00> : vector<8x8xf32>
    %154 = tpu.matmul %24, %153, %cst_124 {dimension_numbers = #tpu.dot_dimension_numbers<[1], [1], [0], [0], [0, 0, 1, 0], [], []>} : vector<8x32xf32>, vector<8x32xf32>, vector<8x8xf32> -> vector<8x8xf32>
    %c11_125 = arith.constant 11 : index
    %c0_126 = arith.constant 0 : index
    %c0_127 = arith.constant 0 : index
    %155 = vector.load %arg6[%c11_125, %c0_126, %c0_127] : memref<12x1x8xf32, #tpu.memory_space<vmem>>, vector<1x1x8xf32>
    %156 = vector.shape_cast %155 : vector<1x1x8xf32> to vector<1x8xf32>
    %157 = vector.broadcast %156 : vector<1x8xf32> to vector<8x8xf32>
    %158 = arith.addf %154, %157 : vector<8x8xf32>
    %cst_128 = arith.constant dense<0.000000e+00> : vector<8x8xf32>
    %159 = tpu.matmul %144, %151, %cst_128 {dimension_numbers = #tpu.dot_dimension_numbers<[1], [1], [0], [0], [0, 0, 1, 0], [], []>} : vector<8x8xf32>, vector<8x8xf32>, vector<8x8xf32> -> vector<8x8xf32>
    %cst_129 = arith.constant 0.353553385 : f32
    %160 = vector.broadcast %cst_129 : f32 to vector<8x8xf32>
    %161 = arith.mulf %159, %160 : vector<8x8xf32>
    %cst_130 = arith.constant dense<0xFF800000> : vector<8xf32>
    %162 = vector.multi_reduction <maximumf>, %161, %cst_130 [1] : vector<8x8xf32> to vector<8xf32>
    %163 = vector.shape_cast %162 : vector<8xf32> to vector<8x1xf32>
    %164 = vector.broadcast %163 : vector<8x1xf32> to vector<8x8xf32>
    %165 = arith.subf %161, %164 : vector<8x8xf32>
    %166 = math.exp %165 : vector<8x8xf32>
    %cst_131 = arith.constant dense<0.000000e+00> : vector<8xf32>
    %167 = vector.multi_reduction <add>, %166, %cst_131 [1] : vector<8x8xf32> to vector<8xf32>
    %168 = vector.shape_cast %167 : vector<8xf32> to vector<8x1xf32>
    %169 = tpu.reciprocal %168 {approx = true} : vector<8x1xf32> -> vector<8x1xf32>
    %170 = vector.broadcast %169 : vector<8x1xf32> to vector<8x8xf32>
    %171 = arith.mulf %166, %170 : vector<8x8xf32>
    %cst_132 = arith.constant dense<0.000000e+00> : vector<8x8xf32>
    %172 = tpu.matmul %171, %158, %cst_132 {dimension_numbers = #tpu.dot_dimension_numbers<[1], [0], [0], [1], [0, 0, 1, 1], [], []>} : vector<8x8xf32>, vector<8x8xf32>, vector<8x8xf32> -> vector<8x8xf32>
    %c24 = arith.constant 24 : index
    %c0_133 = arith.constant 0 : index
    %173 = vector.load %arg7[%c24, %c0_133] : memref<33x32xf32, #tpu.memory_space<vmem>>, vector<8x32xf32>
    %cst_134 = arith.constant dense<0.000000e+00> : vector<8x32xf32>
    %174 = tpu.matmul %172, %173, %cst_134 {dimension_numbers = #tpu.dot_dimension_numbers<[1], [0], [0], [1], [0, 0, 1, 1], [], []>} : vector<8x8xf32>, vector<8x32xf32>, vector<8x32xf32> -> vector<8x32xf32>
    %175 = arith.addf %137, %174 : vector<8x32xf32>
    %c32 = arith.constant 32 : index
    %c0_135 = arith.constant 0 : index
    %176 = vector.load %arg7[%c32, %c0_135] : memref<33x32xf32, #tpu.memory_space<vmem>>, vector<1x32xf32>
    %177 = vector.broadcast %176 : vector<1x32xf32> to vector<8x32xf32>
    %178 = arith.addf %175, %177 : vector<8x32xf32>
    %179 = arith.addf %24, %178 : vector<8x32xf32>
    %cst_136 = arith.constant dense<0.000000e+00> : vector<8xf32>
    %180 = vector.multi_reduction <add>, %179, %cst_136 [1] : vector<8x32xf32> to vector<8xf32>
    %181 = vector.shape_cast %180 : vector<8xf32> to vector<8x1xf32>
    %cst_137 = arith.constant 3.200000e+01 : f32
    %182 = vector.broadcast %cst_137 : f32 to vector<8x1xf32>
    %183 = arith.divf %181, %182 : vector<8x1xf32>
    %184 = vector.broadcast %183 : vector<8x1xf32> to vector<8x32xf32>
    %185 = arith.subf %179, %184 : vector<8x32xf32>
    %186 = arith.mulf %185, %185 : vector<8x32xf32>
    %cst_138 = arith.constant dense<0.000000e+00> : vector<8xf32>
    %187 = vector.multi_reduction <add>, %186, %cst_138 [1] : vector<8x32xf32> to vector<8xf32>
    %188 = vector.shape_cast %187 : vector<8xf32> to vector<8x1xf32>
    %cst_139 = arith.constant 3.200000e+01 : f32
    %189 = vector.broadcast %cst_139 : f32 to vector<8x1xf32>
    %190 = arith.divf %188, %189 : vector<8x1xf32>
    %cst_140 = arith.constant 9.99999974E-6 : f32
    %191 = vector.broadcast %cst_140 : f32 to vector<8x1xf32>
    %192 = arith.addf %190, %191 : vector<8x1xf32>
    %193 = math.rsqrt %192 : vector<8x1xf32>
    %194 = vector.broadcast %193 : vector<8x1xf32> to vector<8x32xf32>
    %195 = arith.mulf %185, %194 : vector<8x32xf32>
    %c0_141 = arith.constant 0 : index
    %c0_142 = arith.constant 0 : index
    %196 = vector.load %arg8[%c0_141, %c0_142] : memref<2x32xf32, #tpu.memory_space<vmem>>, vector<1x32xf32>
    %197 = vector.broadcast %196 : vector<1x32xf32> to vector<8x32xf32>
    %198 = arith.mulf %195, %197 : vector<8x32xf32>
    %c1_143 = arith.constant 1 : index
    %c0_144 = arith.constant 0 : index
    %199 = vector.load %arg8[%c1_143, %c0_144] : memref<2x32xf32, #tpu.memory_space<vmem>>, vector<1x32xf32>
    %200 = vector.broadcast %199 : vector<1x32xf32> to vector<8x32xf32>
    %201 = arith.addf %198, %200 : vector<8x32xf32>
    %c0_145 = arith.constant 0 : index
    %c0_146 = arith.constant 0 : index
    %202 = vector.load %arg9[%c0_145, %c0_146] : memref<33x8xf32, #tpu.memory_space<vmem>>, vector<32x8xf32>
    %cst_147 = arith.constant dense<0.000000e+00> : vector<8x8xf32>
    %203 = tpu.matmul %201, %202, %cst_147 {dimension_numbers = #tpu.dot_dimension_numbers<[1], [0], [0], [1], [0, 0, 1, 1], [], []>} : vector<8x32xf32>, vector<32x8xf32>, vector<8x8xf32> -> vector<8x8xf32>
    %c32_148 = arith.constant 32 : index
    %c0_149 = arith.constant 0 : index
    %204 = vector.load %arg9[%c32_148, %c0_149] : memref<33x8xf32, #tpu.memory_space<vmem>>, vector<1x8xf32>
    %205 = vector.broadcast %204 : vector<1x8xf32> to vector<8x8xf32>
    %206 = arith.addf %203, %205 : vector<8x8xf32>
    %cst_150 = arith.constant 0.000000e+00 : f32
    %207 = vector.broadcast %cst_150 : f32 to vector<8x8xf32>
    %208 = arith.maximumf %206, %207 : vector<8x8xf32>
    %c0_151 = arith.constant 0 : index
    %c0_152 = arith.constant 0 : index
    %209 = vector.load %arg10[%c0_151, %c0_152] : memref<9x32xf32, #tpu.memory_space<vmem>>, vector<8x32xf32>
    %cst_153 = arith.constant dense<0.000000e+00> : vector<8x32xf32>
    %210 = tpu.matmul %208, %209, %cst_153 {dimension_numbers = #tpu.dot_dimension_numbers<[1], [0], [0], [1], [0, 0, 1, 1], [], []>} : vector<8x8xf32>, vector<8x32xf32>, vector<8x32xf32> -> vector<8x32xf32>
    %c8_154 = arith.constant 8 : index
    %c0_155 = arith.constant 0 : index
    %211 = vector.load %arg10[%c8_154, %c0_155] : memref<9x32xf32, #tpu.memory_space<vmem>>, vector<1x32xf32>
    %212 = vector.broadcast %211 : vector<1x32xf32> to vector<8x32xf32>
    %213 = arith.addf %210, %212 : vector<8x32xf32>
    %214 = arith.addf %201, %213 : vector<8x32xf32>
    %cst_156 = arith.constant dense<0.000000e+00> : vector<8xf32>
    %215 = vector.multi_reduction <add>, %214, %cst_156 [1] : vector<8x32xf32> to vector<8xf32>
    %216 = vector.shape_cast %215 : vector<8xf32> to vector<8x1xf32>
    %cst_157 = arith.constant 3.200000e+01 : f32
    %217 = vector.broadcast %cst_157 : f32 to vector<8x1xf32>
    %218 = arith.divf %216, %217 : vector<8x1xf32>
    %219 = vector.broadcast %218 : vector<8x1xf32> to vector<8x32xf32>
    %220 = arith.subf %214, %219 : vector<8x32xf32>
    %221 = arith.mulf %220, %220 : vector<8x32xf32>
    %cst_158 = arith.constant dense<0.000000e+00> : vector<8xf32>
    %222 = vector.multi_reduction <add>, %221, %cst_158 [1] : vector<8x32xf32> to vector<8xf32>
    %223 = vector.shape_cast %222 : vector<8xf32> to vector<8x1xf32>
    %cst_159 = arith.constant 3.200000e+01 : f32
    %224 = vector.broadcast %cst_159 : f32 to vector<8x1xf32>
    %225 = arith.divf %223, %224 : vector<8x1xf32>
    %cst_160 = arith.constant 9.99999974E-6 : f32
    %226 = vector.broadcast %cst_160 : f32 to vector<8x1xf32>
    %227 = arith.addf %225, %226 : vector<8x1xf32>
    %228 = math.rsqrt %227 : vector<8x1xf32>
    %229 = vector.broadcast %228 : vector<8x1xf32> to vector<8x32xf32>
    %230 = arith.mulf %220, %229 : vector<8x32xf32>
    %c0_161 = arith.constant 0 : index
    %c0_162 = arith.constant 0 : index
    %231 = vector.load %arg11[%c0_161, %c0_162] : memref<2x32xf32, #tpu.memory_space<vmem>>, vector<1x32xf32>
    %232 = vector.broadcast %231 : vector<1x32xf32> to vector<8x32xf32>
    %233 = arith.mulf %230, %232 : vector<8x32xf32>
    %c1_163 = arith.constant 1 : index
    %c0_164 = arith.constant 0 : index
    %234 = vector.load %arg11[%c1_163, %c0_164] : memref<2x32xf32, #tpu.memory_space<vmem>>, vector<1x32xf32>
    %235 = vector.broadcast %234 : vector<1x32xf32> to vector<8x32xf32>
    %236 = arith.addf %233, %235 : vector<8x32xf32>
    %c0_165 = arith.constant 0 : index
    %c0_166 = arith.constant 0 : index
    %237 = vector.load %arg4[%c0_165, %c0_166] : memref<9x32xf32, #tpu.memory_space<vmem>>, vector<9x32xf32>
    %c0_167 = arith.constant 0 : index
    %c0_168 = arith.constant 0 : index
    %c0_169 = arith.constant 0 : index
    %238 = vector.load %arg12[%c0_167, %c0_168, %c0_169] : memref<12x8x32xf32, #tpu.memory_space<vmem>>, vector<1x8x32xf32>
    %239 = vector.shape_cast %238 : vector<1x8x32xf32> to vector<8x32xf32>
    %cst_170 = arith.constant dense<0.000000e+00> : vector<9x8xf32>
    %240 = tpu.matmul %237, %239, %cst_170 {dimension_numbers = #tpu.dot_dimension_numbers<[1], [1], [0], [0], [0, 0, 1, 0], [], []>} : vector<9x32xf32>, vector<8x32xf32>, vector<9x8xf32> -> vector<9x8xf32>
    %c0_171 = arith.constant 0 : index
    %c0_172 = arith.constant 0 : index
    %c0_173 = arith.constant 0 : index
    %241 = vector.load %arg13[%c0_171, %c0_172, %c0_173] : memref<12x1x8xf32, #tpu.memory_space<vmem>>, vector<1x1x8xf32>
    %242 = vector.shape_cast %241 : vector<1x1x8xf32> to vector<1x8xf32>
    %243 = vector.broadcast %242 : vector<1x8xf32> to vector<9x8xf32>
    %244 = arith.addf %240, %243 : vector<9x8xf32>
    %c4_174 = arith.constant 4 : index
    %c0_175 = arith.constant 0 : index
    %c0_176 = arith.constant 0 : index
    %245 = vector.load %arg12[%c4_174, %c0_175, %c0_176] : memref<12x8x32xf32, #tpu.memory_space<vmem>>, vector<1x8x32xf32>
    %246 = vector.shape_cast %245 : vector<1x8x32xf32> to vector<8x32xf32>
    %cst_177 = arith.constant dense<0.000000e+00> : vector<9x8xf32>
    %247 = tpu.matmul %237, %246, %cst_177 {dimension_numbers = #tpu.dot_dimension_numbers<[1], [1], [0], [0], [0, 0, 1, 0], [], []>} : vector<9x32xf32>, vector<8x32xf32>, vector<9x8xf32> -> vector<9x8xf32>
    %c4_178 = arith.constant 4 : index
    %c0_179 = arith.constant 0 : index
    %c0_180 = arith.constant 0 : index
    %248 = vector.load %arg13[%c4_178, %c0_179, %c0_180] : memref<12x1x8xf32, #tpu.memory_space<vmem>>, vector<1x1x8xf32>
    %249 = vector.shape_cast %248 : vector<1x1x8xf32> to vector<1x8xf32>
    %250 = vector.broadcast %249 : vector<1x8xf32> to vector<9x8xf32>
    %251 = arith.addf %247, %250 : vector<9x8xf32>
    %c8_181 = arith.constant 8 : index
    %c0_182 = arith.constant 0 : index
    %c0_183 = arith.constant 0 : index
    %252 = vector.load %arg12[%c8_181, %c0_182, %c0_183] : memref<12x8x32xf32, #tpu.memory_space<vmem>>, vector<1x8x32xf32>
    %253 = vector.shape_cast %252 : vector<1x8x32xf32> to vector<8x32xf32>
    %cst_184 = arith.constant dense<0.000000e+00> : vector<9x8xf32>
    %254 = tpu.matmul %237, %253, %cst_184 {dimension_numbers = #tpu.dot_dimension_numbers<[1], [1], [0], [0], [0, 0, 1, 0], [], []>} : vector<9x32xf32>, vector<8x32xf32>, vector<9x8xf32> -> vector<9x8xf32>
    %c8_185 = arith.constant 8 : index
    %c0_186 = arith.constant 0 : index
    %c0_187 = arith.constant 0 : index
    %255 = vector.load %arg13[%c8_185, %c0_186, %c0_187] : memref<12x1x8xf32, #tpu.memory_space<vmem>>, vector<1x1x8xf32>
    %256 = vector.shape_cast %255 : vector<1x1x8xf32> to vector<1x8xf32>
    %257 = vector.broadcast %256 : vector<1x8xf32> to vector<9x8xf32>
    %258 = arith.addf %254, %257 : vector<9x8xf32>
    %cst_188 = arith.constant dense<0.000000e+00> : vector<9x9xf32>
    %259 = tpu.matmul %244, %251, %cst_188 {dimension_numbers = #tpu.dot_dimension_numbers<[1], [1], [0], [0], [0, 0, 1, 0], [], []>} : vector<9x8xf32>, vector<9x8xf32>, vector<9x9xf32> -> vector<9x9xf32>
    %cst_189 = arith.constant 0.353553385 : f32
    %260 = vector.broadcast %cst_189 : f32 to vector<9x9xf32>
    %261 = arith.mulf %259, %260 : vector<9x9xf32>
    %cst_190 = arith.constant dense<0xFF800000> : vector<9xf32>
    %262 = vector.multi_reduction <maximumf>, %261, %cst_190 [1] : vector<9x9xf32> to vector<9xf32>
    %263 = vector.shape_cast %262 : vector<9xf32> to vector<9x1xf32>
    %264 = vector.broadcast %263 : vector<9x1xf32> to vector<9x9xf32>
    %265 = arith.subf %261, %264 : vector<9x9xf32>
    %266 = math.exp %265 : vector<9x9xf32>
    %cst_191 = arith.constant dense<0.000000e+00> : vector<9xf32>
    %267 = vector.multi_reduction <add>, %266, %cst_191 [1] : vector<9x9xf32> to vector<9xf32>
    %268 = vector.shape_cast %267 : vector<9xf32> to vector<9x1xf32>
    %269 = tpu.reciprocal %268 {approx = true} : vector<9x1xf32> -> vector<9x1xf32>
    %270 = vector.broadcast %269 : vector<9x1xf32> to vector<9x9xf32>
    %271 = arith.mulf %266, %270 : vector<9x9xf32>
    %cst_192 = arith.constant dense<0.000000e+00> : vector<9x8xf32>
    %272 = tpu.matmul %271, %258, %cst_192 {dimension_numbers = #tpu.dot_dimension_numbers<[1], [0], [0], [1], [0, 0, 1, 1], [], []>} : vector<9x9xf32>, vector<9x8xf32>, vector<9x8xf32> -> vector<9x8xf32>
    %c0_193 = arith.constant 0 : index
    %c0_194 = arith.constant 0 : index
    %273 = vector.load %arg14[%c0_193, %c0_194] : memref<33x32xf32, #tpu.memory_space<vmem>>, vector<8x32xf32>
    %cst_195 = arith.constant dense<0.000000e+00> : vector<9x32xf32>
    %274 = tpu.matmul %272, %273, %cst_195 {dimension_numbers = #tpu.dot_dimension_numbers<[1], [0], [0], [1], [0, 0, 1, 1], [], []>} : vector<9x8xf32>, vector<8x32xf32>, vector<9x32xf32> -> vector<9x32xf32>
    %c1_196 = arith.constant 1 : index
    %c0_197 = arith.constant 0 : index
    %c0_198 = arith.constant 0 : index
    %275 = vector.load %arg12[%c1_196, %c0_197, %c0_198] : memref<12x8x32xf32, #tpu.memory_space<vmem>>, vector<1x8x32xf32>
    %276 = vector.shape_cast %275 : vector<1x8x32xf32> to vector<8x32xf32>
    %cst_199 = arith.constant dense<0.000000e+00> : vector<9x8xf32>
    %277 = tpu.matmul %237, %276, %cst_199 {dimension_numbers = #tpu.dot_dimension_numbers<[1], [1], [0], [0], [0, 0, 1, 0], [], []>} : vector<9x32xf32>, vector<8x32xf32>, vector<9x8xf32> -> vector<9x8xf32>
    %c1_200 = arith.constant 1 : index
    %c0_201 = arith.constant 0 : index
    %c0_202 = arith.constant 0 : index
    %278 = vector.load %arg13[%c1_200, %c0_201, %c0_202] : memref<12x1x8xf32, #tpu.memory_space<vmem>>, vector<1x1x8xf32>
    %279 = vector.shape_cast %278 : vector<1x1x8xf32> to vector<1x8xf32>
    %280 = vector.broadcast %279 : vector<1x8xf32> to vector<9x8xf32>
    %281 = arith.addf %277, %280 : vector<9x8xf32>
    %c5_203 = arith.constant 5 : index
    %c0_204 = arith.constant 0 : index
    %c0_205 = arith.constant 0 : index
    %282 = vector.load %arg12[%c5_203, %c0_204, %c0_205] : memref<12x8x32xf32, #tpu.memory_space<vmem>>, vector<1x8x32xf32>
    %283 = vector.shape_cast %282 : vector<1x8x32xf32> to vector<8x32xf32>
    %cst_206 = arith.constant dense<0.000000e+00> : vector<9x8xf32>
    %284 = tpu.matmul %237, %283, %cst_206 {dimension_numbers = #tpu.dot_dimension_numbers<[1], [1], [0], [0], [0, 0, 1, 0], [], []>} : vector<9x32xf32>, vector<8x32xf32>, vector<9x8xf32> -> vector<9x8xf32>
    %c5_207 = arith.constant 5 : index
    %c0_208 = arith.constant 0 : index
    %c0_209 = arith.constant 0 : index
    %285 = vector.load %arg13[%c5_207, %c0_208, %c0_209] : memref<12x1x8xf32, #tpu.memory_space<vmem>>, vector<1x1x8xf32>
    %286 = vector.shape_cast %285 : vector<1x1x8xf32> to vector<1x8xf32>
    %287 = vector.broadcast %286 : vector<1x8xf32> to vector<9x8xf32>
    %288 = arith.addf %284, %287 : vector<9x8xf32>
    %c9_210 = arith.constant 9 : index
    %c0_211 = arith.constant 0 : index
    %c0_212 = arith.constant 0 : index
    %289 = vector.load %arg12[%c9_210, %c0_211, %c0_212] : memref<12x8x32xf32, #tpu.memory_space<vmem>>, vector<1x8x32xf32>
    %290 = vector.shape_cast %289 : vector<1x8x32xf32> to vector<8x32xf32>
    %cst_213 = arith.constant dense<0.000000e+00> : vector<9x8xf32>
    %291 = tpu.matmul %237, %290, %cst_213 {dimension_numbers = #tpu.dot_dimension_numbers<[1], [1], [0], [0], [0, 0, 1, 0], [], []>} : vector<9x32xf32>, vector<8x32xf32>, vector<9x8xf32> -> vector<9x8xf32>
    %c9_214 = arith.constant 9 : index
    %c0_215 = arith.constant 0 : index
    %c0_216 = arith.constant 0 : index
    %292 = vector.load %arg13[%c9_214, %c0_215, %c0_216] : memref<12x1x8xf32, #tpu.memory_space<vmem>>, vector<1x1x8xf32>
    %293 = vector.shape_cast %292 : vector<1x1x8xf32> to vector<1x8xf32>
    %294 = vector.broadcast %293 : vector<1x8xf32> to vector<9x8xf32>
    %295 = arith.addf %291, %294 : vector<9x8xf32>
    %cst_217 = arith.constant dense<0.000000e+00> : vector<9x9xf32>
    %296 = tpu.matmul %281, %288, %cst_217 {dimension_numbers = #tpu.dot_dimension_numbers<[1], [1], [0], [0], [0, 0, 1, 0], [], []>} : vector<9x8xf32>, vector<9x8xf32>, vector<9x9xf32> -> vector<9x9xf32>
    %cst_218 = arith.constant 0.353553385 : f32
    %297 = vector.broadcast %cst_218 : f32 to vector<9x9xf32>
    %298 = arith.mulf %296, %297 : vector<9x9xf32>
    %cst_219 = arith.constant dense<0xFF800000> : vector<9xf32>
    %299 = vector.multi_reduction <maximumf>, %298, %cst_219 [1] : vector<9x9xf32> to vector<9xf32>
    %300 = vector.shape_cast %299 : vector<9xf32> to vector<9x1xf32>
    %301 = vector.broadcast %300 : vector<9x1xf32> to vector<9x9xf32>
    %302 = arith.subf %298, %301 : vector<9x9xf32>
    %303 = math.exp %302 : vector<9x9xf32>
    %cst_220 = arith.constant dense<0.000000e+00> : vector<9xf32>
    %304 = vector.multi_reduction <add>, %303, %cst_220 [1] : vector<9x9xf32> to vector<9xf32>
    %305 = vector.shape_cast %304 : vector<9xf32> to vector<9x1xf32>
    %306 = tpu.reciprocal %305 {approx = true} : vector<9x1xf32> -> vector<9x1xf32>
    %307 = vector.broadcast %306 : vector<9x1xf32> to vector<9x9xf32>
    %308 = arith.mulf %303, %307 : vector<9x9xf32>
    %cst_221 = arith.constant dense<0.000000e+00> : vector<9x8xf32>
    %309 = tpu.matmul %308, %295, %cst_221 {dimension_numbers = #tpu.dot_dimension_numbers<[1], [0], [0], [1], [0, 0, 1, 1], [], []>} : vector<9x9xf32>, vector<9x8xf32>, vector<9x8xf32> -> vector<9x8xf32>
    %c8_222 = arith.constant 8 : index
    %c0_223 = arith.constant 0 : index
    %310 = vector.load %arg14[%c8_222, %c0_223] : memref<33x32xf32, #tpu.memory_space<vmem>>, vector<8x32xf32>
    %cst_224 = arith.constant dense<0.000000e+00> : vector<9x32xf32>
    %311 = tpu.matmul %309, %310, %cst_224 {dimension_numbers = #tpu.dot_dimension_numbers<[1], [0], [0], [1], [0, 0, 1, 1], [], []>} : vector<9x8xf32>, vector<8x32xf32>, vector<9x32xf32> -> vector<9x32xf32>
    %312 = arith.addf %274, %311 : vector<9x32xf32>
    %c2_225 = arith.constant 2 : index
    %c0_226 = arith.constant 0 : index
    %c0_227 = arith.constant 0 : index
    %313 = vector.load %arg12[%c2_225, %c0_226, %c0_227] : memref<12x8x32xf32, #tpu.memory_space<vmem>>, vector<1x8x32xf32>
    %314 = vector.shape_cast %313 : vector<1x8x32xf32> to vector<8x32xf32>
    %cst_228 = arith.constant dense<0.000000e+00> : vector<9x8xf32>
    %315 = tpu.matmul %237, %314, %cst_228 {dimension_numbers = #tpu.dot_dimension_numbers<[1], [1], [0], [0], [0, 0, 1, 0], [], []>} : vector<9x32xf32>, vector<8x32xf32>, vector<9x8xf32> -> vector<9x8xf32>
    %c2_229 = arith.constant 2 : index
    %c0_230 = arith.constant 0 : index
    %c0_231 = arith.constant 0 : index
    %316 = vector.load %arg13[%c2_229, %c0_230, %c0_231] : memref<12x1x8xf32, #tpu.memory_space<vmem>>, vector<1x1x8xf32>
    %317 = vector.shape_cast %316 : vector<1x1x8xf32> to vector<1x8xf32>
    %318 = vector.broadcast %317 : vector<1x8xf32> to vector<9x8xf32>
    %319 = arith.addf %315, %318 : vector<9x8xf32>
    %c6_232 = arith.constant 6 : index
    %c0_233 = arith.constant 0 : index
    %c0_234 = arith.constant 0 : index
    %320 = vector.load %arg12[%c6_232, %c0_233, %c0_234] : memref<12x8x32xf32, #tpu.memory_space<vmem>>, vector<1x8x32xf32>
    %321 = vector.shape_cast %320 : vector<1x8x32xf32> to vector<8x32xf32>
    %cst_235 = arith.constant dense<0.000000e+00> : vector<9x8xf32>
    %322 = tpu.matmul %237, %321, %cst_235 {dimension_numbers = #tpu.dot_dimension_numbers<[1], [1], [0], [0], [0, 0, 1, 0], [], []>} : vector<9x32xf32>, vector<8x32xf32>, vector<9x8xf32> -> vector<9x8xf32>
    %c6_236 = arith.constant 6 : index
    %c0_237 = arith.constant 0 : index
    %c0_238 = arith.constant 0 : index
    %323 = vector.load %arg13[%c6_236, %c0_237, %c0_238] : memref<12x1x8xf32, #tpu.memory_space<vmem>>, vector<1x1x8xf32>
    %324 = vector.shape_cast %323 : vector<1x1x8xf32> to vector<1x8xf32>
    %325 = vector.broadcast %324 : vector<1x8xf32> to vector<9x8xf32>
    %326 = arith.addf %322, %325 : vector<9x8xf32>
    %c10_239 = arith.constant 10 : index
    %c0_240 = arith.constant 0 : index
    %c0_241 = arith.constant 0 : index
    %327 = vector.load %arg12[%c10_239, %c0_240, %c0_241] : memref<12x8x32xf32, #tpu.memory_space<vmem>>, vector<1x8x32xf32>
    %328 = vector.shape_cast %327 : vector<1x8x32xf32> to vector<8x32xf32>
    %cst_242 = arith.constant dense<0.000000e+00> : vector<9x8xf32>
    %329 = tpu.matmul %237, %328, %cst_242 {dimension_numbers = #tpu.dot_dimension_numbers<[1], [1], [0], [0], [0, 0, 1, 0], [], []>} : vector<9x32xf32>, vector<8x32xf32>, vector<9x8xf32> -> vector<9x8xf32>
    %c10_243 = arith.constant 10 : index
    %c0_244 = arith.constant 0 : index
    %c0_245 = arith.constant 0 : index
    %330 = vector.load %arg13[%c10_243, %c0_244, %c0_245] : memref<12x1x8xf32, #tpu.memory_space<vmem>>, vector<1x1x8xf32>
    %331 = vector.shape_cast %330 : vector<1x1x8xf32> to vector<1x8xf32>
    %332 = vector.broadcast %331 : vector<1x8xf32> to vector<9x8xf32>
    %333 = arith.addf %329, %332 : vector<9x8xf32>
    %cst_246 = arith.constant dense<0.000000e+00> : vector<9x9xf32>
    %334 = tpu.matmul %319, %326, %cst_246 {dimension_numbers = #tpu.dot_dimension_numbers<[1], [1], [0], [0], [0, 0, 1, 0], [], []>} : vector<9x8xf32>, vector<9x8xf32>, vector<9x9xf32> -> vector<9x9xf32>
    %cst_247 = arith.constant 0.353553385 : f32
    %335 = vector.broadcast %cst_247 : f32 to vector<9x9xf32>
    %336 = arith.mulf %334, %335 : vector<9x9xf32>
    %cst_248 = arith.constant dense<0xFF800000> : vector<9xf32>
    %337 = vector.multi_reduction <maximumf>, %336, %cst_248 [1] : vector<9x9xf32> to vector<9xf32>
    %338 = vector.shape_cast %337 : vector<9xf32> to vector<9x1xf32>
    %339 = vector.broadcast %338 : vector<9x1xf32> to vector<9x9xf32>
    %340 = arith.subf %336, %339 : vector<9x9xf32>
    %341 = math.exp %340 : vector<9x9xf32>
    %cst_249 = arith.constant dense<0.000000e+00> : vector<9xf32>
    %342 = vector.multi_reduction <add>, %341, %cst_249 [1] : vector<9x9xf32> to vector<9xf32>
    %343 = vector.shape_cast %342 : vector<9xf32> to vector<9x1xf32>
    %344 = tpu.reciprocal %343 {approx = true} : vector<9x1xf32> -> vector<9x1xf32>
    %345 = vector.broadcast %344 : vector<9x1xf32> to vector<9x9xf32>
    %346 = arith.mulf %341, %345 : vector<9x9xf32>
    %cst_250 = arith.constant dense<0.000000e+00> : vector<9x8xf32>
    %347 = tpu.matmul %346, %333, %cst_250 {dimension_numbers = #tpu.dot_dimension_numbers<[1], [0], [0], [1], [0, 0, 1, 1], [], []>} : vector<9x9xf32>, vector<9x8xf32>, vector<9x8xf32> -> vector<9x8xf32>
    %c16_251 = arith.constant 16 : index
    %c0_252 = arith.constant 0 : index
    %348 = vector.load %arg14[%c16_251, %c0_252] : memref<33x32xf32, #tpu.memory_space<vmem>>, vector<8x32xf32>
    %cst_253 = arith.constant dense<0.000000e+00> : vector<9x32xf32>
    %349 = tpu.matmul %347, %348, %cst_253 {dimension_numbers = #tpu.dot_dimension_numbers<[1], [0], [0], [1], [0, 0, 1, 1], [], []>} : vector<9x8xf32>, vector<8x32xf32>, vector<9x32xf32> -> vector<9x32xf32>
    %350 = arith.addf %312, %349 : vector<9x32xf32>
    %c3_254 = arith.constant 3 : index
    %c0_255 = arith.constant 0 : index
    %c0_256 = arith.constant 0 : index
    %351 = vector.load %arg12[%c3_254, %c0_255, %c0_256] : memref<12x8x32xf32, #tpu.memory_space<vmem>>, vector<1x8x32xf32>
    %352 = vector.shape_cast %351 : vector<1x8x32xf32> to vector<8x32xf32>
    %cst_257 = arith.constant dense<0.000000e+00> : vector<9x8xf32>
    %353 = tpu.matmul %237, %352, %cst_257 {dimension_numbers = #tpu.dot_dimension_numbers<[1], [1], [0], [0], [0, 0, 1, 0], [], []>} : vector<9x32xf32>, vector<8x32xf32>, vector<9x8xf32> -> vector<9x8xf32>
    %c3_258 = arith.constant 3 : index
    %c0_259 = arith.constant 0 : index
    %c0_260 = arith.constant 0 : index
    %354 = vector.load %arg13[%c3_258, %c0_259, %c0_260] : memref<12x1x8xf32, #tpu.memory_space<vmem>>, vector<1x1x8xf32>
    %355 = vector.shape_cast %354 : vector<1x1x8xf32> to vector<1x8xf32>
    %356 = vector.broadcast %355 : vector<1x8xf32> to vector<9x8xf32>
    %357 = arith.addf %353, %356 : vector<9x8xf32>
    %c7_261 = arith.constant 7 : index
    %c0_262 = arith.constant 0 : index
    %c0_263 = arith.constant 0 : index
    %358 = vector.load %arg12[%c7_261, %c0_262, %c0_263] : memref<12x8x32xf32, #tpu.memory_space<vmem>>, vector<1x8x32xf32>
    %359 = vector.shape_cast %358 : vector<1x8x32xf32> to vector<8x32xf32>
    %cst_264 = arith.constant dense<0.000000e+00> : vector<9x8xf32>
    %360 = tpu.matmul %237, %359, %cst_264 {dimension_numbers = #tpu.dot_dimension_numbers<[1], [1], [0], [0], [0, 0, 1, 0], [], []>} : vector<9x32xf32>, vector<8x32xf32>, vector<9x8xf32> -> vector<9x8xf32>
    %c7_265 = arith.constant 7 : index
    %c0_266 = arith.constant 0 : index
    %c0_267 = arith.constant 0 : index
    %361 = vector.load %arg13[%c7_265, %c0_266, %c0_267] : memref<12x1x8xf32, #tpu.memory_space<vmem>>, vector<1x1x8xf32>
    %362 = vector.shape_cast %361 : vector<1x1x8xf32> to vector<1x8xf32>
    %363 = vector.broadcast %362 : vector<1x8xf32> to vector<9x8xf32>
    %364 = arith.addf %360, %363 : vector<9x8xf32>
    %c11_268 = arith.constant 11 : index
    %c0_269 = arith.constant 0 : index
    %c0_270 = arith.constant 0 : index
    %365 = vector.load %arg12[%c11_268, %c0_269, %c0_270] : memref<12x8x32xf32, #tpu.memory_space<vmem>>, vector<1x8x32xf32>
    %366 = vector.shape_cast %365 : vector<1x8x32xf32> to vector<8x32xf32>
    %cst_271 = arith.constant dense<0.000000e+00> : vector<9x8xf32>
    %367 = tpu.matmul %237, %366, %cst_271 {dimension_numbers = #tpu.dot_dimension_numbers<[1], [1], [0], [0], [0, 0, 1, 0], [], []>} : vector<9x32xf32>, vector<8x32xf32>, vector<9x8xf32> -> vector<9x8xf32>
    %c11_272 = arith.constant 11 : index
    %c0_273 = arith.constant 0 : index
    %c0_274 = arith.constant 0 : index
    %368 = vector.load %arg13[%c11_272, %c0_273, %c0_274] : memref<12x1x8xf32, #tpu.memory_space<vmem>>, vector<1x1x8xf32>
    %369 = vector.shape_cast %368 : vector<1x1x8xf32> to vector<1x8xf32>
    %370 = vector.broadcast %369 : vector<1x8xf32> to vector<9x8xf32>
    %371 = arith.addf %367, %370 : vector<9x8xf32>
    %cst_275 = arith.constant dense<0.000000e+00> : vector<9x9xf32>
    %372 = tpu.matmul %357, %364, %cst_275 {dimension_numbers = #tpu.dot_dimension_numbers<[1], [1], [0], [0], [0, 0, 1, 0], [], []>} : vector<9x8xf32>, vector<9x8xf32>, vector<9x9xf32> -> vector<9x9xf32>
    %cst_276 = arith.constant 0.353553385 : f32
    %373 = vector.broadcast %cst_276 : f32 to vector<9x9xf32>
    %374 = arith.mulf %372, %373 : vector<9x9xf32>
    %cst_277 = arith.constant dense<0xFF800000> : vector<9xf32>
    %375 = vector.multi_reduction <maximumf>, %374, %cst_277 [1] : vector<9x9xf32> to vector<9xf32>
    %376 = vector.shape_cast %375 : vector<9xf32> to vector<9x1xf32>
    %377 = vector.broadcast %376 : vector<9x1xf32> to vector<9x9xf32>
    %378 = arith.subf %374, %377 : vector<9x9xf32>
    %379 = math.exp %378 : vector<9x9xf32>
    %cst_278 = arith.constant dense<0.000000e+00> : vector<9xf32>
    %380 = vector.multi_reduction <add>, %379, %cst_278 [1] : vector<9x9xf32> to vector<9xf32>
    %381 = vector.shape_cast %380 : vector<9xf32> to vector<9x1xf32>
    %382 = tpu.reciprocal %381 {approx = true} : vector<9x1xf32> -> vector<9x1xf32>
    %383 = vector.broadcast %382 : vector<9x1xf32> to vector<9x9xf32>
    %384 = arith.mulf %379, %383 : vector<9x9xf32>
    %cst_279 = arith.constant dense<0.000000e+00> : vector<9x8xf32>
    %385 = tpu.matmul %384, %371, %cst_279 {dimension_numbers = #tpu.dot_dimension_numbers<[1], [0], [0], [1], [0, 0, 1, 1], [], []>} : vector<9x9xf32>, vector<9x8xf32>, vector<9x8xf32> -> vector<9x8xf32>
    %c24_280 = arith.constant 24 : index
    %c0_281 = arith.constant 0 : index
    %386 = vector.load %arg14[%c24_280, %c0_281] : memref<33x32xf32, #tpu.memory_space<vmem>>, vector<8x32xf32>
    %cst_282 = arith.constant dense<0.000000e+00> : vector<9x32xf32>
    %387 = tpu.matmul %385, %386, %cst_282 {dimension_numbers = #tpu.dot_dimension_numbers<[1], [0], [0], [1], [0, 0, 1, 1], [], []>} : vector<9x8xf32>, vector<8x32xf32>, vector<9x32xf32> -> vector<9x32xf32>
    %388 = arith.addf %350, %387 : vector<9x32xf32>
    %c32_283 = arith.constant 32 : index
    %c0_284 = arith.constant 0 : index
    %389 = vector.load %arg14[%c32_283, %c0_284] : memref<33x32xf32, #tpu.memory_space<vmem>>, vector<1x32xf32>
    %390 = vector.broadcast %389 : vector<1x32xf32> to vector<9x32xf32>
    %391 = arith.addf %388, %390 : vector<9x32xf32>
    %392 = arith.addf %237, %391 : vector<9x32xf32>
    %cst_285 = arith.constant dense<0.000000e+00> : vector<9xf32>
    %393 = vector.multi_reduction <add>, %392, %cst_285 [1] : vector<9x32xf32> to vector<9xf32>
    %394 = vector.shape_cast %393 : vector<9xf32> to vector<9x1xf32>
    %cst_286 = arith.constant 3.200000e+01 : f32
    %395 = vector.broadcast %cst_286 : f32 to vector<9x1xf32>
    %396 = arith.divf %394, %395 : vector<9x1xf32>
    %397 = vector.broadcast %396 : vector<9x1xf32> to vector<9x32xf32>
    %398 = arith.subf %392, %397 : vector<9x32xf32>
    %399 = arith.mulf %398, %398 : vector<9x32xf32>
    %cst_287 = arith.constant dense<0.000000e+00> : vector<9xf32>
    %400 = vector.multi_reduction <add>, %399, %cst_287 [1] : vector<9x32xf32> to vector<9xf32>
    %401 = vector.shape_cast %400 : vector<9xf32> to vector<9x1xf32>
    %cst_288 = arith.constant 3.200000e+01 : f32
    %402 = vector.broadcast %cst_288 : f32 to vector<9x1xf32>
    %403 = arith.divf %401, %402 : vector<9x1xf32>
    %cst_289 = arith.constant 9.99999974E-6 : f32
    %404 = vector.broadcast %cst_289 : f32 to vector<9x1xf32>
    %405 = arith.addf %403, %404 : vector<9x1xf32>
    %406 = math.rsqrt %405 : vector<9x1xf32>
    %407 = vector.broadcast %406 : vector<9x1xf32> to vector<9x32xf32>
    %408 = arith.mulf %398, %407 : vector<9x32xf32>
    %c0_290 = arith.constant 0 : index
    %c0_291 = arith.constant 0 : index
    %409 = vector.load %arg15[%c0_290, %c0_291] : memref<2x32xf32, #tpu.memory_space<vmem>>, vector<1x32xf32>
    %410 = vector.broadcast %409 : vector<1x32xf32> to vector<9x32xf32>
    %411 = arith.mulf %408, %410 : vector<9x32xf32>
    %c1_292 = arith.constant 1 : index
    %c0_293 = arith.constant 0 : index
    %412 = vector.load %arg15[%c1_292, %c0_293] : memref<2x32xf32, #tpu.memory_space<vmem>>, vector<1x32xf32>
    %413 = vector.broadcast %412 : vector<1x32xf32> to vector<9x32xf32>
    %414 = arith.addf %411, %413 : vector<9x32xf32>
    %c0_294 = arith.constant 0 : index
    %c0_295 = arith.constant 0 : index
    %c0_296 = arith.constant 0 : index
    %415 = vector.load %arg16[%c0_294, %c0_295, %c0_296] : memref<12x8x32xf32, #tpu.memory_space<vmem>>, vector<1x8x32xf32>
    %416 = vector.shape_cast %415 : vector<1x8x32xf32> to vector<8x32xf32>
    %cst_297 = arith.constant dense<0.000000e+00> : vector<9x8xf32>
    %417 = tpu.matmul %414, %416, %cst_297 {dimension_numbers = #tpu.dot_dimension_numbers<[1], [1], [0], [0], [0, 0, 1, 0], [], []>} : vector<9x32xf32>, vector<8x32xf32>, vector<9x8xf32> -> vector<9x8xf32>
    %c0_298 = arith.constant 0 : index
    %c0_299 = arith.constant 0 : index
    %c0_300 = arith.constant 0 : index
    %418 = vector.load %arg17[%c0_298, %c0_299, %c0_300] : memref<12x1x8xf32, #tpu.memory_space<vmem>>, vector<1x1x8xf32>
    %419 = vector.shape_cast %418 : vector<1x1x8xf32> to vector<1x8xf32>
    %420 = vector.broadcast %419 : vector<1x8xf32> to vector<9x8xf32>
    %421 = arith.addf %417, %420 : vector<9x8xf32>
    %c4_301 = arith.constant 4 : index
    %c0_302 = arith.constant 0 : index
    %c0_303 = arith.constant 0 : index
    %422 = vector.load %arg16[%c4_301, %c0_302, %c0_303] : memref<12x8x32xf32, #tpu.memory_space<vmem>>, vector<1x8x32xf32>
    %423 = vector.shape_cast %422 : vector<1x8x32xf32> to vector<8x32xf32>
    %cst_304 = arith.constant dense<0.000000e+00> : vector<8x8xf32>
    %424 = tpu.matmul %236, %423, %cst_304 {dimension_numbers = #tpu.dot_dimension_numbers<[1], [1], [0], [0], [0, 0, 1, 0], [], []>} : vector<8x32xf32>, vector<8x32xf32>, vector<8x8xf32> -> vector<8x8xf32>
    %c4_305 = arith.constant 4 : index
    %c0_306 = arith.constant 0 : index
    %c0_307 = arith.constant 0 : index
    %425 = vector.load %arg17[%c4_305, %c0_306, %c0_307] : memref<12x1x8xf32, #tpu.memory_space<vmem>>, vector<1x1x8xf32>
    %426 = vector.shape_cast %425 : vector<1x1x8xf32> to vector<1x8xf32>
    %427 = vector.broadcast %426 : vector<1x8xf32> to vector<8x8xf32>
    %428 = arith.addf %424, %427 : vector<8x8xf32>
    %c8_308 = arith.constant 8 : index
    %c0_309 = arith.constant 0 : index
    %c0_310 = arith.constant 0 : index
    %429 = vector.load %arg16[%c8_308, %c0_309, %c0_310] : memref<12x8x32xf32, #tpu.memory_space<vmem>>, vector<1x8x32xf32>
    %430 = vector.shape_cast %429 : vector<1x8x32xf32> to vector<8x32xf32>
    %cst_311 = arith.constant dense<0.000000e+00> : vector<8x8xf32>
    %431 = tpu.matmul %236, %430, %cst_311 {dimension_numbers = #tpu.dot_dimension_numbers<[1], [1], [0], [0], [0, 0, 1, 0], [], []>} : vector<8x32xf32>, vector<8x32xf32>, vector<8x8xf32> -> vector<8x8xf32>
    %c8_312 = arith.constant 8 : index
    %c0_313 = arith.constant 0 : index
    %c0_314 = arith.constant 0 : index
    %432 = vector.load %arg17[%c8_312, %c0_313, %c0_314] : memref<12x1x8xf32, #tpu.memory_space<vmem>>, vector<1x1x8xf32>
    %433 = vector.shape_cast %432 : vector<1x1x8xf32> to vector<1x8xf32>
    %434 = vector.broadcast %433 : vector<1x8xf32> to vector<8x8xf32>
    %435 = arith.addf %431, %434 : vector<8x8xf32>
    %cst_315 = arith.constant dense<0.000000e+00> : vector<9x8xf32>
    %436 = tpu.matmul %421, %428, %cst_315 {dimension_numbers = #tpu.dot_dimension_numbers<[1], [1], [0], [0], [0, 0, 1, 0], [], []>} : vector<9x8xf32>, vector<8x8xf32>, vector<9x8xf32> -> vector<9x8xf32>
    %cst_316 = arith.constant 0.353553385 : f32
    %437 = vector.broadcast %cst_316 : f32 to vector<9x8xf32>
    %438 = arith.mulf %436, %437 : vector<9x8xf32>
    %cst_317 = arith.constant dense<0xFF800000> : vector<9xf32>
    %439 = vector.multi_reduction <maximumf>, %438, %cst_317 [1] : vector<9x8xf32> to vector<9xf32>
    %440 = vector.shape_cast %439 : vector<9xf32> to vector<9x1xf32>
    %441 = vector.broadcast %440 : vector<9x1xf32> to vector<9x8xf32>
    %442 = arith.subf %438, %441 : vector<9x8xf32>
    %443 = math.exp %442 : vector<9x8xf32>
    %cst_318 = arith.constant dense<0.000000e+00> : vector<9xf32>
    %444 = vector.multi_reduction <add>, %443, %cst_318 [1] : vector<9x8xf32> to vector<9xf32>
    %445 = vector.shape_cast %444 : vector<9xf32> to vector<9x1xf32>
    %446 = tpu.reciprocal %445 {approx = true} : vector<9x1xf32> -> vector<9x1xf32>
    %447 = vector.broadcast %446 : vector<9x1xf32> to vector<9x8xf32>
    %448 = arith.mulf %443, %447 : vector<9x8xf32>
    %cst_319 = arith.constant dense<0.000000e+00> : vector<9x8xf32>
    %449 = tpu.matmul %448, %435, %cst_319 {dimension_numbers = #tpu.dot_dimension_numbers<[1], [0], [0], [1], [0, 0, 1, 1], [], []>} : vector<9x8xf32>, vector<8x8xf32>, vector<9x8xf32> -> vector<9x8xf32>
    %c0_320 = arith.constant 0 : index
    %c0_321 = arith.constant 0 : index
    %450 = vector.load %arg18[%c0_320, %c0_321] : memref<33x32xf32, #tpu.memory_space<vmem>>, vector<8x32xf32>
    %cst_322 = arith.constant dense<0.000000e+00> : vector<9x32xf32>
    %451 = tpu.matmul %449, %450, %cst_322 {dimension_numbers = #tpu.dot_dimension_numbers<[1], [0], [0], [1], [0, 0, 1, 1], [], []>} : vector<9x8xf32>, vector<8x32xf32>, vector<9x32xf32> -> vector<9x32xf32>
    %c1_323 = arith.constant 1 : index
    %c0_324 = arith.constant 0 : index
    %c0_325 = arith.constant 0 : index
    %452 = vector.load %arg16[%c1_323, %c0_324, %c0_325] : memref<12x8x32xf32, #tpu.memory_space<vmem>>, vector<1x8x32xf32>
    %453 = vector.shape_cast %452 : vector<1x8x32xf32> to vector<8x32xf32>
    %cst_326 = arith.constant dense<0.000000e+00> : vector<9x8xf32>
    %454 = tpu.matmul %414, %453, %cst_326 {dimension_numbers = #tpu.dot_dimension_numbers<[1], [1], [0], [0], [0, 0, 1, 0], [], []>} : vector<9x32xf32>, vector<8x32xf32>, vector<9x8xf32> -> vector<9x8xf32>
    %c1_327 = arith.constant 1 : index
    %c0_328 = arith.constant 0 : index
    %c0_329 = arith.constant 0 : index
    %455 = vector.load %arg17[%c1_327, %c0_328, %c0_329] : memref<12x1x8xf32, #tpu.memory_space<vmem>>, vector<1x1x8xf32>
    %456 = vector.shape_cast %455 : vector<1x1x8xf32> to vector<1x8xf32>
    %457 = vector.broadcast %456 : vector<1x8xf32> to vector<9x8xf32>
    %458 = arith.addf %454, %457 : vector<9x8xf32>
    %c5_330 = arith.constant 5 : index
    %c0_331 = arith.constant 0 : index
    %c0_332 = arith.constant 0 : index
    %459 = vector.load %arg16[%c5_330, %c0_331, %c0_332] : memref<12x8x32xf32, #tpu.memory_space<vmem>>, vector<1x8x32xf32>
    %460 = vector.shape_cast %459 : vector<1x8x32xf32> to vector<8x32xf32>
    %cst_333 = arith.constant dense<0.000000e+00> : vector<8x8xf32>
    %461 = tpu.matmul %236, %460, %cst_333 {dimension_numbers = #tpu.dot_dimension_numbers<[1], [1], [0], [0], [0, 0, 1, 0], [], []>} : vector<8x32xf32>, vector<8x32xf32>, vector<8x8xf32> -> vector<8x8xf32>
    %c5_334 = arith.constant 5 : index
    %c0_335 = arith.constant 0 : index
    %c0_336 = arith.constant 0 : index
    %462 = vector.load %arg17[%c5_334, %c0_335, %c0_336] : memref<12x1x8xf32, #tpu.memory_space<vmem>>, vector<1x1x8xf32>
    %463 = vector.shape_cast %462 : vector<1x1x8xf32> to vector<1x8xf32>
    %464 = vector.broadcast %463 : vector<1x8xf32> to vector<8x8xf32>
    %465 = arith.addf %461, %464 : vector<8x8xf32>
    %c9_337 = arith.constant 9 : index
    %c0_338 = arith.constant 0 : index
    %c0_339 = arith.constant 0 : index
    %466 = vector.load %arg16[%c9_337, %c0_338, %c0_339] : memref<12x8x32xf32, #tpu.memory_space<vmem>>, vector<1x8x32xf32>
    %467 = vector.shape_cast %466 : vector<1x8x32xf32> to vector<8x32xf32>
    %cst_340 = arith.constant dense<0.000000e+00> : vector<8x8xf32>
    %468 = tpu.matmul %236, %467, %cst_340 {dimension_numbers = #tpu.dot_dimension_numbers<[1], [1], [0], [0], [0, 0, 1, 0], [], []>} : vector<8x32xf32>, vector<8x32xf32>, vector<8x8xf32> -> vector<8x8xf32>
    %c9_341 = arith.constant 9 : index
    %c0_342 = arith.constant 0 : index
    %c0_343 = arith.constant 0 : index
    %469 = vector.load %arg17[%c9_341, %c0_342, %c0_343] : memref<12x1x8xf32, #tpu.memory_space<vmem>>, vector<1x1x8xf32>
    %470 = vector.shape_cast %469 : vector<1x1x8xf32> to vector<1x8xf32>
    %471 = vector.broadcast %470 : vector<1x8xf32> to vector<8x8xf32>
    %472 = arith.addf %468, %471 : vector<8x8xf32>
    %cst_344 = arith.constant dense<0.000000e+00> : vector<9x8xf32>
    %473 = tpu.matmul %458, %465, %cst_344 {dimension_numbers = #tpu.dot_dimension_numbers<[1], [1], [0], [0], [0, 0, 1, 0], [], []>} : vector<9x8xf32>, vector<8x8xf32>, vector<9x8xf32> -> vector<9x8xf32>
    %cst_345 = arith.constant 0.353553385 : f32
    %474 = vector.broadcast %cst_345 : f32 to vector<9x8xf32>
    %475 = arith.mulf %473, %474 : vector<9x8xf32>
    %cst_346 = arith.constant dense<0xFF800000> : vector<9xf32>
    %476 = vector.multi_reduction <maximumf>, %475, %cst_346 [1] : vector<9x8xf32> to vector<9xf32>
    %477 = vector.shape_cast %476 : vector<9xf32> to vector<9x1xf32>
    %478 = vector.broadcast %477 : vector<9x1xf32> to vector<9x8xf32>
    %479 = arith.subf %475, %478 : vector<9x8xf32>
    %480 = math.exp %479 : vector<9x8xf32>
    %cst_347 = arith.constant dense<0.000000e+00> : vector<9xf32>
    %481 = vector.multi_reduction <add>, %480, %cst_347 [1] : vector<9x8xf32> to vector<9xf32>
    %482 = vector.shape_cast %481 : vector<9xf32> to vector<9x1xf32>
    %483 = tpu.reciprocal %482 {approx = true} : vector<9x1xf32> -> vector<9x1xf32>
    %484 = vector.broadcast %483 : vector<9x1xf32> to vector<9x8xf32>
    %485 = arith.mulf %480, %484 : vector<9x8xf32>
    %cst_348 = arith.constant dense<0.000000e+00> : vector<9x8xf32>
    %486 = tpu.matmul %485, %472, %cst_348 {dimension_numbers = #tpu.dot_dimension_numbers<[1], [0], [0], [1], [0, 0, 1, 1], [], []>} : vector<9x8xf32>, vector<8x8xf32>, vector<9x8xf32> -> vector<9x8xf32>
    %c8_349 = arith.constant 8 : index
    %c0_350 = arith.constant 0 : index
    %487 = vector.load %arg18[%c8_349, %c0_350] : memref<33x32xf32, #tpu.memory_space<vmem>>, vector<8x32xf32>
    %cst_351 = arith.constant dense<0.000000e+00> : vector<9x32xf32>
    %488 = tpu.matmul %486, %487, %cst_351 {dimension_numbers = #tpu.dot_dimension_numbers<[1], [0], [0], [1], [0, 0, 1, 1], [], []>} : vector<9x8xf32>, vector<8x32xf32>, vector<9x32xf32> -> vector<9x32xf32>
    %489 = arith.addf %451, %488 : vector<9x32xf32>
    %c2_352 = arith.constant 2 : index
    %c0_353 = arith.constant 0 : index
    %c0_354 = arith.constant 0 : index
    %490 = vector.load %arg16[%c2_352, %c0_353, %c0_354] : memref<12x8x32xf32, #tpu.memory_space<vmem>>, vector<1x8x32xf32>
    %491 = vector.shape_cast %490 : vector<1x8x32xf32> to vector<8x32xf32>
    %cst_355 = arith.constant dense<0.000000e+00> : vector<9x8xf32>
    %492 = tpu.matmul %414, %491, %cst_355 {dimension_numbers = #tpu.dot_dimension_numbers<[1], [1], [0], [0], [0, 0, 1, 0], [], []>} : vector<9x32xf32>, vector<8x32xf32>, vector<9x8xf32> -> vector<9x8xf32>
    %c2_356 = arith.constant 2 : index
    %c0_357 = arith.constant 0 : index
    %c0_358 = arith.constant 0 : index
    %493 = vector.load %arg17[%c2_356, %c0_357, %c0_358] : memref<12x1x8xf32, #tpu.memory_space<vmem>>, vector<1x1x8xf32>
    %494 = vector.shape_cast %493 : vector<1x1x8xf32> to vector<1x8xf32>
    %495 = vector.broadcast %494 : vector<1x8xf32> to vector<9x8xf32>
    %496 = arith.addf %492, %495 : vector<9x8xf32>
    %c6_359 = arith.constant 6 : index
    %c0_360 = arith.constant 0 : index
    %c0_361 = arith.constant 0 : index
    %497 = vector.load %arg16[%c6_359, %c0_360, %c0_361] : memref<12x8x32xf32, #tpu.memory_space<vmem>>, vector<1x8x32xf32>
    %498 = vector.shape_cast %497 : vector<1x8x32xf32> to vector<8x32xf32>
    %cst_362 = arith.constant dense<0.000000e+00> : vector<8x8xf32>
    %499 = tpu.matmul %236, %498, %cst_362 {dimension_numbers = #tpu.dot_dimension_numbers<[1], [1], [0], [0], [0, 0, 1, 0], [], []>} : vector<8x32xf32>, vector<8x32xf32>, vector<8x8xf32> -> vector<8x8xf32>
    %c6_363 = arith.constant 6 : index
    %c0_364 = arith.constant 0 : index
    %c0_365 = arith.constant 0 : index
    %500 = vector.load %arg17[%c6_363, %c0_364, %c0_365] : memref<12x1x8xf32, #tpu.memory_space<vmem>>, vector<1x1x8xf32>
    %501 = vector.shape_cast %500 : vector<1x1x8xf32> to vector<1x8xf32>
    %502 = vector.broadcast %501 : vector<1x8xf32> to vector<8x8xf32>
    %503 = arith.addf %499, %502 : vector<8x8xf32>
    %c10_366 = arith.constant 10 : index
    %c0_367 = arith.constant 0 : index
    %c0_368 = arith.constant 0 : index
    %504 = vector.load %arg16[%c10_366, %c0_367, %c0_368] : memref<12x8x32xf32, #tpu.memory_space<vmem>>, vector<1x8x32xf32>
    %505 = vector.shape_cast %504 : vector<1x8x32xf32> to vector<8x32xf32>
    %cst_369 = arith.constant dense<0.000000e+00> : vector<8x8xf32>
    %506 = tpu.matmul %236, %505, %cst_369 {dimension_numbers = #tpu.dot_dimension_numbers<[1], [1], [0], [0], [0, 0, 1, 0], [], []>} : vector<8x32xf32>, vector<8x32xf32>, vector<8x8xf32> -> vector<8x8xf32>
    %c10_370 = arith.constant 10 : index
    %c0_371 = arith.constant 0 : index
    %c0_372 = arith.constant 0 : index
    %507 = vector.load %arg17[%c10_370, %c0_371, %c0_372] : memref<12x1x8xf32, #tpu.memory_space<vmem>>, vector<1x1x8xf32>
    %508 = vector.shape_cast %507 : vector<1x1x8xf32> to vector<1x8xf32>
    %509 = vector.broadcast %508 : vector<1x8xf32> to vector<8x8xf32>
    %510 = arith.addf %506, %509 : vector<8x8xf32>
    %cst_373 = arith.constant dense<0.000000e+00> : vector<9x8xf32>
    %511 = tpu.matmul %496, %503, %cst_373 {dimension_numbers = #tpu.dot_dimension_numbers<[1], [1], [0], [0], [0, 0, 1, 0], [], []>} : vector<9x8xf32>, vector<8x8xf32>, vector<9x8xf32> -> vector<9x8xf32>
    %cst_374 = arith.constant 0.353553385 : f32
    %512 = vector.broadcast %cst_374 : f32 to vector<9x8xf32>
    %513 = arith.mulf %511, %512 : vector<9x8xf32>
    %cst_375 = arith.constant dense<0xFF800000> : vector<9xf32>
    %514 = vector.multi_reduction <maximumf>, %513, %cst_375 [1] : vector<9x8xf32> to vector<9xf32>
    %515 = vector.shape_cast %514 : vector<9xf32> to vector<9x1xf32>
    %516 = vector.broadcast %515 : vector<9x1xf32> to vector<9x8xf32>
    %517 = arith.subf %513, %516 : vector<9x8xf32>
    %518 = math.exp %517 : vector<9x8xf32>
    %cst_376 = arith.constant dense<0.000000e+00> : vector<9xf32>
    %519 = vector.multi_reduction <add>, %518, %cst_376 [1] : vector<9x8xf32> to vector<9xf32>
    %520 = vector.shape_cast %519 : vector<9xf32> to vector<9x1xf32>
    %521 = tpu.reciprocal %520 {approx = true} : vector<9x1xf32> -> vector<9x1xf32>
    %522 = vector.broadcast %521 : vector<9x1xf32> to vector<9x8xf32>
    %523 = arith.mulf %518, %522 : vector<9x8xf32>
    %cst_377 = arith.constant dense<0.000000e+00> : vector<9x8xf32>
    %524 = tpu.matmul %523, %510, %cst_377 {dimension_numbers = #tpu.dot_dimension_numbers<[1], [0], [0], [1], [0, 0, 1, 1], [], []>} : vector<9x8xf32>, vector<8x8xf32>, vector<9x8xf32> -> vector<9x8xf32>
    %c16_378 = arith.constant 16 : index
    %c0_379 = arith.constant 0 : index
    %525 = vector.load %arg18[%c16_378, %c0_379] : memref<33x32xf32, #tpu.memory_space<vmem>>, vector<8x32xf32>
    %cst_380 = arith.constant dense<0.000000e+00> : vector<9x32xf32>
    %526 = tpu.matmul %524, %525, %cst_380 {dimension_numbers = #tpu.dot_dimension_numbers<[1], [0], [0], [1], [0, 0, 1, 1], [], []>} : vector<9x8xf32>, vector<8x32xf32>, vector<9x32xf32> -> vector<9x32xf32>
    %527 = arith.addf %489, %526 : vector<9x32xf32>
    %c3_381 = arith.constant 3 : index
    %c0_382 = arith.constant 0 : index
    %c0_383 = arith.constant 0 : index
    %528 = vector.load %arg16[%c3_381, %c0_382, %c0_383] : memref<12x8x32xf32, #tpu.memory_space<vmem>>, vector<1x8x32xf32>
    %529 = vector.shape_cast %528 : vector<1x8x32xf32> to vector<8x32xf32>
    %cst_384 = arith.constant dense<0.000000e+00> : vector<9x8xf32>
    %530 = tpu.matmul %414, %529, %cst_384 {dimension_numbers = #tpu.dot_dimension_numbers<[1], [1], [0], [0], [0, 0, 1, 0], [], []>} : vector<9x32xf32>, vector<8x32xf32>, vector<9x8xf32> -> vector<9x8xf32>
    %c3_385 = arith.constant 3 : index
    %c0_386 = arith.constant 0 : index
    %c0_387 = arith.constant 0 : index
    %531 = vector.load %arg17[%c3_385, %c0_386, %c0_387] : memref<12x1x8xf32, #tpu.memory_space<vmem>>, vector<1x1x8xf32>
    %532 = vector.shape_cast %531 : vector<1x1x8xf32> to vector<1x8xf32>
    %533 = vector.broadcast %532 : vector<1x8xf32> to vector<9x8xf32>
    %534 = arith.addf %530, %533 : vector<9x8xf32>
    %c7_388 = arith.constant 7 : index
    %c0_389 = arith.constant 0 : index
    %c0_390 = arith.constant 0 : index
    %535 = vector.load %arg16[%c7_388, %c0_389, %c0_390] : memref<12x8x32xf32, #tpu.memory_space<vmem>>, vector<1x8x32xf32>
    %536 = vector.shape_cast %535 : vector<1x8x32xf32> to vector<8x32xf32>
    %cst_391 = arith.constant dense<0.000000e+00> : vector<8x8xf32>
    %537 = tpu.matmul %236, %536, %cst_391 {dimension_numbers = #tpu.dot_dimension_numbers<[1], [1], [0], [0], [0, 0, 1, 0], [], []>} : vector<8x32xf32>, vector<8x32xf32>, vector<8x8xf32> -> vector<8x8xf32>
    %c7_392 = arith.constant 7 : index
    %c0_393 = arith.constant 0 : index
    %c0_394 = arith.constant 0 : index
    %538 = vector.load %arg17[%c7_392, %c0_393, %c0_394] : memref<12x1x8xf32, #tpu.memory_space<vmem>>, vector<1x1x8xf32>
    %539 = vector.shape_cast %538 : vector<1x1x8xf32> to vector<1x8xf32>
    %540 = vector.broadcast %539 : vector<1x8xf32> to vector<8x8xf32>
    %541 = arith.addf %537, %540 : vector<8x8xf32>
    %c11_395 = arith.constant 11 : index
    %c0_396 = arith.constant 0 : index
    %c0_397 = arith.constant 0 : index
    %542 = vector.load %arg16[%c11_395, %c0_396, %c0_397] : memref<12x8x32xf32, #tpu.memory_space<vmem>>, vector<1x8x32xf32>
    %543 = vector.shape_cast %542 : vector<1x8x32xf32> to vector<8x32xf32>
    %cst_398 = arith.constant dense<0.000000e+00> : vector<8x8xf32>
    %544 = tpu.matmul %236, %543, %cst_398 {dimension_numbers = #tpu.dot_dimension_numbers<[1], [1], [0], [0], [0, 0, 1, 0], [], []>} : vector<8x32xf32>, vector<8x32xf32>, vector<8x8xf32> -> vector<8x8xf32>
    %c11_399 = arith.constant 11 : index
    %c0_400 = arith.constant 0 : index
    %c0_401 = arith.constant 0 : index
    %545 = vector.load %arg17[%c11_399, %c0_400, %c0_401] : memref<12x1x8xf32, #tpu.memory_space<vmem>>, vector<1x1x8xf32>
    %546 = vector.shape_cast %545 : vector<1x1x8xf32> to vector<1x8xf32>
    %547 = vector.broadcast %546 : vector<1x8xf32> to vector<8x8xf32>
    %548 = arith.addf %544, %547 : vector<8x8xf32>
    %cst_402 = arith.constant dense<0.000000e+00> : vector<9x8xf32>
    %549 = tpu.matmul %534, %541, %cst_402 {dimension_numbers = #tpu.dot_dimension_numbers<[1], [1], [0], [0], [0, 0, 1, 0], [], []>} : vector<9x8xf32>, vector<8x8xf32>, vector<9x8xf32> -> vector<9x8xf32>
    %cst_403 = arith.constant 0.353553385 : f32
    %550 = vector.broadcast %cst_403 : f32 to vector<9x8xf32>
    %551 = arith.mulf %549, %550 : vector<9x8xf32>
    %cst_404 = arith.constant dense<0xFF800000> : vector<9xf32>
    %552 = vector.multi_reduction <maximumf>, %551, %cst_404 [1] : vector<9x8xf32> to vector<9xf32>
    %553 = vector.shape_cast %552 : vector<9xf32> to vector<9x1xf32>
    %554 = vector.broadcast %553 : vector<9x1xf32> to vector<9x8xf32>
    %555 = arith.subf %551, %554 : vector<9x8xf32>
    %556 = math.exp %555 : vector<9x8xf32>
    %cst_405 = arith.constant dense<0.000000e+00> : vector<9xf32>
    %557 = vector.multi_reduction <add>, %556, %cst_405 [1] : vector<9x8xf32> to vector<9xf32>
    %558 = vector.shape_cast %557 : vector<9xf32> to vector<9x1xf32>
    %559 = tpu.reciprocal %558 {approx = true} : vector<9x1xf32> -> vector<9x1xf32>
    %560 = vector.broadcast %559 : vector<9x1xf32> to vector<9x8xf32>
    %561 = arith.mulf %556, %560 : vector<9x8xf32>
    %cst_406 = arith.constant dense<0.000000e+00> : vector<9x8xf32>
    %562 = tpu.matmul %561, %548, %cst_406 {dimension_numbers = #tpu.dot_dimension_numbers<[1], [0], [0], [1], [0, 0, 1, 1], [], []>} : vector<9x8xf32>, vector<8x8xf32>, vector<9x8xf32> -> vector<9x8xf32>
    %c24_407 = arith.constant 24 : index
    %c0_408 = arith.constant 0 : index
    %563 = vector.load %arg18[%c24_407, %c0_408] : memref<33x32xf32, #tpu.memory_space<vmem>>, vector<8x32xf32>
    %cst_409 = arith.constant dense<0.000000e+00> : vector<9x32xf32>
    %564 = tpu.matmul %562, %563, %cst_409 {dimension_numbers = #tpu.dot_dimension_numbers<[1], [0], [0], [1], [0, 0, 1, 1], [], []>} : vector<9x8xf32>, vector<8x32xf32>, vector<9x32xf32> -> vector<9x32xf32>
    %565 = arith.addf %527, %564 : vector<9x32xf32>
    %c32_410 = arith.constant 32 : index
    %c0_411 = arith.constant 0 : index
    %566 = vector.load %arg18[%c32_410, %c0_411] : memref<33x32xf32, #tpu.memory_space<vmem>>, vector<1x32xf32>
    %567 = vector.broadcast %566 : vector<1x32xf32> to vector<9x32xf32>
    %568 = arith.addf %565, %567 : vector<9x32xf32>
    %569 = arith.addf %414, %568 : vector<9x32xf32>
    %cst_412 = arith.constant dense<0.000000e+00> : vector<9xf32>
    %570 = vector.multi_reduction <add>, %569, %cst_412 [1] : vector<9x32xf32> to vector<9xf32>
    %571 = vector.shape_cast %570 : vector<9xf32> to vector<9x1xf32>
    %cst_413 = arith.constant 3.200000e+01 : f32
    %572 = vector.broadcast %cst_413 : f32 to vector<9x1xf32>
    %573 = arith.divf %571, %572 : vector<9x1xf32>
    %574 = vector.broadcast %573 : vector<9x1xf32> to vector<9x32xf32>
    %575 = arith.subf %569, %574 : vector<9x32xf32>
    %576 = arith.mulf %575, %575 : vector<9x32xf32>
    %cst_414 = arith.constant dense<0.000000e+00> : vector<9xf32>
    %577 = vector.multi_reduction <add>, %576, %cst_414 [1] : vector<9x32xf32> to vector<9xf32>
    %578 = vector.shape_cast %577 : vector<9xf32> to vector<9x1xf32>
    %cst_415 = arith.constant 3.200000e+01 : f32
    %579 = vector.broadcast %cst_415 : f32 to vector<9x1xf32>
    %580 = arith.divf %578, %579 : vector<9x1xf32>
    %cst_416 = arith.constant 9.99999974E-6 : f32
    %581 = vector.broadcast %cst_416 : f32 to vector<9x1xf32>
    %582 = arith.addf %580, %581 : vector<9x1xf32>
    %583 = math.rsqrt %582 : vector<9x1xf32>
    %584 = vector.broadcast %583 : vector<9x1xf32> to vector<9x32xf32>
    %585 = arith.mulf %575, %584 : vector<9x32xf32>
    %c0_417 = arith.constant 0 : index
    %c0_418 = arith.constant 0 : index
    %586 = vector.load %arg19[%c0_417, %c0_418] : memref<2x32xf32, #tpu.memory_space<vmem>>, vector<1x32xf32>
    %587 = vector.broadcast %586 : vector<1x32xf32> to vector<9x32xf32>
    %588 = arith.mulf %585, %587 : vector<9x32xf32>
    %c1_419 = arith.constant 1 : index
    %c0_420 = arith.constant 0 : index
    %589 = vector.load %arg19[%c1_419, %c0_420] : memref<2x32xf32, #tpu.memory_space<vmem>>, vector<1x32xf32>
    %590 = vector.broadcast %589 : vector<1x32xf32> to vector<9x32xf32>
    %591 = arith.addf %588, %590 : vector<9x32xf32>
    %c0_421 = arith.constant 0 : index
    %c0_422 = arith.constant 0 : index
    %592 = vector.load %arg20[%c0_421, %c0_422] : memref<33x8xf32, #tpu.memory_space<vmem>>, vector<32x8xf32>
    %cst_423 = arith.constant dense<0.000000e+00> : vector<9x8xf32>
    %593 = tpu.matmul %591, %592, %cst_423 {dimension_numbers = #tpu.dot_dimension_numbers<[1], [0], [0], [1], [0, 0, 1, 1], [], []>} : vector<9x32xf32>, vector<32x8xf32>, vector<9x8xf32> -> vector<9x8xf32>
    %c32_424 = arith.constant 32 : index
    %c0_425 = arith.constant 0 : index
    %594 = vector.load %arg20[%c32_424, %c0_425] : memref<33x8xf32, #tpu.memory_space<vmem>>, vector<1x8xf32>
    %595 = vector.broadcast %594 : vector<1x8xf32> to vector<9x8xf32>
    %596 = arith.addf %593, %595 : vector<9x8xf32>
    %cst_426 = arith.constant 0.000000e+00 : f32
    %597 = vector.broadcast %cst_426 : f32 to vector<9x8xf32>
    %598 = arith.maximumf %596, %597 : vector<9x8xf32>
    %c0_427 = arith.constant 0 : index
    %c0_428 = arith.constant 0 : index
    %599 = vector.load %arg21[%c0_427, %c0_428] : memref<9x32xf32, #tpu.memory_space<vmem>>, vector<8x32xf32>
    %cst_429 = arith.constant dense<0.000000e+00> : vector<9x32xf32>
    %600 = tpu.matmul %598, %599, %cst_429 {dimension_numbers = #tpu.dot_dimension_numbers<[1], [0], [0], [1], [0, 0, 1, 1], [], []>} : vector<9x8xf32>, vector<8x32xf32>, vector<9x32xf32> -> vector<9x32xf32>
    %c8_430 = arith.constant 8 : index
    %c0_431 = arith.constant 0 : index
    %601 = vector.load %arg21[%c8_430, %c0_431] : memref<9x32xf32, #tpu.memory_space<vmem>>, vector<1x32xf32>
    %602 = vector.broadcast %601 : vector<1x32xf32> to vector<9x32xf32>
    %603 = arith.addf %600, %602 : vector<9x32xf32>
    %604 = arith.addf %591, %603 : vector<9x32xf32>
    %cst_432 = arith.constant dense<0.000000e+00> : vector<9xf32>
    %605 = vector.multi_reduction <add>, %604, %cst_432 [1] : vector<9x32xf32> to vector<9xf32>
    %606 = vector.shape_cast %605 : vector<9xf32> to vector<9x1xf32>
    %cst_433 = arith.constant 3.200000e+01 : f32
    %607 = vector.broadcast %cst_433 : f32 to vector<9x1xf32>
    %608 = arith.divf %606, %607 : vector<9x1xf32>
    %609 = vector.broadcast %608 : vector<9x1xf32> to vector<9x32xf32>
    %610 = arith.subf %604, %609 : vector<9x32xf32>
    %611 = arith.mulf %610, %610 : vector<9x32xf32>
    %cst_434 = arith.constant dense<0.000000e+00> : vector<9xf32>
    %612 = vector.multi_reduction <add>, %611, %cst_434 [1] : vector<9x32xf32> to vector<9xf32>
    %613 = vector.shape_cast %612 : vector<9xf32> to vector<9x1xf32>
    %cst_435 = arith.constant 3.200000e+01 : f32
    %614 = vector.broadcast %cst_435 : f32 to vector<9x1xf32>
    %615 = arith.divf %613, %614 : vector<9x1xf32>
    %cst_436 = arith.constant 9.99999974E-6 : f32
    %616 = vector.broadcast %cst_436 : f32 to vector<9x1xf32>
    %617 = arith.addf %615, %616 : vector<9x1xf32>
    %618 = math.rsqrt %617 : vector<9x1xf32>
    %619 = vector.broadcast %618 : vector<9x1xf32> to vector<9x32xf32>
    %620 = arith.mulf %610, %619 : vector<9x32xf32>
    %c0_437 = arith.constant 0 : index
    %c0_438 = arith.constant 0 : index
    %621 = vector.load %arg22[%c0_437, %c0_438] : memref<2x32xf32, #tpu.memory_space<vmem>>, vector<1x32xf32>
    %622 = vector.broadcast %621 : vector<1x32xf32> to vector<9x32xf32>
    %623 = arith.mulf %620, %622 : vector<9x32xf32>
    %c1_439 = arith.constant 1 : index
    %c0_440 = arith.constant 0 : index
    %624 = vector.load %arg22[%c1_439, %c0_440] : memref<2x32xf32, #tpu.memory_space<vmem>>, vector<1x32xf32>
    %625 = vector.broadcast %624 : vector<1x32xf32> to vector<9x32xf32>
    %626 = arith.addf %623, %625 : vector<9x32xf32>
    %c0_441 = arith.constant 0 : index
    %c0_442 = arith.constant 0 : index
    %627 = vector.load %arg23[%c0_441, %c0_442] : memref<33x128xf32, #tpu.memory_space<vmem>>, vector<32x128xf32>
    %cst_443 = arith.constant dense<0.000000e+00> : vector<9x128xf32>
    %628 = tpu.matmul %626, %627, %cst_443 {dimension_numbers = #tpu.dot_dimension_numbers<[1], [0], [0], [1], [0, 0, 1, 1], [], []>} : vector<9x32xf32>, vector<32x128xf32>, vector<9x128xf32> -> vector<9x128xf32>
    %c32_444 = arith.constant 32 : index
    %c0_445 = arith.constant 0 : index
    %629 = vector.load %arg23[%c32_444, %c0_445] : memref<33x128xf32, #tpu.memory_space<vmem>>, vector<1x128xf32>
    %630 = vector.broadcast %629 : vector<1x128xf32> to vector<9x128xf32>
    %631 = arith.addf %628, %630 : vector<9x128xf32>
    %cst_446 = arith.constant dense<0xFF800000> : vector<9xf32>
    %632 = vector.multi_reduction <maximumf>, %631, %cst_446 [1] : vector<9x128xf32> to vector<9xf32>
    %633 = vector.shape_cast %632 : vector<9xf32> to vector<9x1xf32>
    %634 = vector.broadcast %633 : vector<9x1xf32> to vector<9x128xf32>
    %635 = arith.subf %631, %634 : vector<9x128xf32>
    %636 = math.exp %635 : vector<9x128xf32>
    %cst_447 = arith.constant dense<0.000000e+00> : vector<9xf32>
    %637 = vector.multi_reduction <add>, %636, %cst_447 [1] : vector<9x128xf32> to vector<9xf32>
    %638 = vector.shape_cast %637 : vector<9xf32> to vector<9x1xf32>
    %639 = math.log %638 : vector<9x1xf32>
    %640 = arith.addf %633, %639 : vector<9x1xf32>
    %641 = vector.broadcast %640 : vector<9x1xf32> to vector<9x128xf32>
    %642 = arith.subf %631, %641 : vector<9x128xf32>
    %c0_448 = arith.constant 0 : index
    %c0_449 = arith.constant 0 : index
    %c0_450 = arith.constant 0 : index
    %643 = vector.load %arg24[%c0_448, %c0_449, %c0_450] : memref<1x9x128xf32, #tpu.memory_space<vmem>>, vector<1x9x128xf32>
    %644 = vector.shape_cast %643 : vector<1x9x128xf32> to vector<9x128xf32>
    %645 = vector.shape_cast %642 : vector<9x128xf32> to vector<1x9x128xf32>
    tpu.vector_store %arg24[%c0_448, %c0_449, %c0_450], %645 {strides = array<i32>} : memref<1x9x128xf32, #tpu.memory_space<vmem>>, vector<1x9x128xf32>,
    return
  }
  func.func @transform_0(%arg0: i32) -> (i32, i32, i32, i32) {
    %c0_i32 = arith.constant 0 : i32
    %c0_i32_0 = arith.constant 0 : i32
    %c0_i32_1 = arith.constant 0 : i32
    %c0_i32_2 = arith.constant 0 : i32
    return %arg0, %c0_i32, %c0_i32_0, %c0_i32_1 : i32, i32, i32, i32
  }
  func.func @transform_1(%arg0: i32) -> (i32, i32, i32) {
    %c0_i32 = arith.constant 0 : i32
    %c0_i32_0 = arith.constant 0 : i32
    %c0_i32_1 = arith.constant 0 : i32
    %c0_i32_2 = arith.constant 0 : i32
    return %c0_i32, %c0_i32_0, %c0_i32_1 : i32, i32, i32
  }
  func.func @transform_2(%arg0: i32) -> (i32, i32) {
    %c0_i32 = arith.constant 0 : i32
    %c0_i32_0 = arith.constant 0 : i32
    %c0_i32_1 = arith.constant 0 : i32
    return %c0_i32, %c0_i32_0 : i32, i32
  }
  func.func @transform_3(%arg0: i32) -> (i32, i32) {
    %c0_i32 = arith.constant 0 : i32
    %c0_i32_0 = arith.constant 0 : i32
    %c0_i32_1 = arith.constant 0 : i32
    return %c0_i32, %c0_i32_0 : i32, i32
  }
  func.func @transform_4(%arg0: i32) -> (i32, i32, i32) {
    %c0_i32 = arith.constant 0 : i32
    %c0_i32_0 = arith.constant 0 : i32
    %c0_i32_1 = arith.constant 0 : i32
    %c0_i32_2 = arith.constant 0 : i32
    return %c0_i32, %c0_i32_0, %c0_i32_1 : i32, i32, i32
  }
  func.func @transform_5(%arg0: i32) -> (i32, i32, i32) {
    %c0_i32 = arith.constant 0 : i32
    %c0_i32_0 = arith.constant 0 : i32
    %c0_i32_1 = arith.constant 0 : i32
    %c0_i32_2 = arith.constant 0 : i32
    return %c0_i32, %c0_i32_0, %c0_i32_1 : i32, i32, i32
  }
  func.func @transform_6(%arg0: i32) -> (i32, i32) {
    %c0_i32 = arith.constant 0 : i32
    %c0_i32_0 = arith.constant 0 : i32
    %c0_i32_1 = arith.constant 0 : i32
    return %c0_i32, %c0_i32_0 : i32, i32
  }
  func.func @transform_7(%arg0: i32) -> (i32, i32) {
    %c0_i32 = arith.constant 0 : i32
    %c0_i32_0 = arith.constant 0 : i32
    %c0_i32_1 = arith.constant 0 : i32
    return %c0_i32, %c0_i32_0 : i32, i32
  }
  func.func @transform_8(%arg0: i32) -> (i32, i32) {
    %c0_i32 = arith.constant 0 : i32
    %c0_i32_0 = arith.constant 0 : i32
    %c0_i32_1 = arith.constant 0 : i32
    return %c0_i32, %c0_i32_0 : i32, i32
  }
  func.func @transform_9(%arg0: i32) -> (i32, i32) {
    %c0_i32 = arith.constant 0 : i32
    %c0_i32_0 = arith.constant 0 : i32
    %c0_i32_1 = arith.constant 0 : i32
    return %c0_i32, %c0_i32_0 : i32, i32
  }
  func.func @transform_10(%arg0: i32) -> (i32, i32) {
    %c0_i32 = arith.constant 0 : i32
    %c0_i32_0 = arith.constant 0 : i32
    %c0_i32_1 = arith.constant 0 : i32
    return %c0_i32, %c0_i32_0 : i32, i32
  }
  func.func @transform_11(%arg0: i32) -> (i32, i32, i32) {
    %c0_i32 = arith.constant 0 : i32
    %c0_i32_0 = arith.constant 0 : i32
    %c0_i32_1 = arith.constant 0 : i32
    %c0_i32_2 = arith.constant 0 : i32
    return %c0_i32, %c0_i32_0, %c0_i32_1 : i32, i32, i32
  }
  func.func @transform_12(%arg0: i32) -> (i32, i32, i32) {
    %c0_i32 = arith.constant 0 : i32
    %c0_i32_0 = arith.constant 0 : i32
    %c0_i32_1 = arith.constant 0 : i32
    %c0_i32_2 = arith.constant 0 : i32
    return %c0_i32, %c0_i32_0, %c0_i32_1 : i32, i32, i32
  }
  func.func @transform_13(%arg0: i32) -> (i32, i32) {
    %c0_i32 = arith.constant 0 : i32
    %c0_i32_0 = arith.constant 0 : i32
    %c0_i32_1 = arith.constant 0 : i32
    return %c0_i32, %c0_i32_0 : i32, i32
  }
  func.func @transform_14(%arg0: i32) -> (i32, i32) {
    %c0_i32 = arith.constant 0 : i32
    %c0_i32_0 = arith.constant 0 : i32
    %c0_i32_1 = arith.constant 0 : i32
    return %c0_i32, %c0_i32_0 : i32, i32
  }
  func.func @transform_15(%arg0: i32) -> (i32, i32, i32) {
    %c0_i32 = arith.constant 0 : i32
    %c0_i32_0 = arith.constant 0 : i32
    %c0_i32_1 = arith.constant 0 : i32
    %c0_i32_2 = arith.constant 0 : i32
    return %c0_i32, %c0_i32_0, %c0_i32_1 : i32, i32, i32
  }
  func.func @transform_16(%arg0: i32) -> (i32, i32, i32) {
    %c0_i32 = arith.constant 0 : i32
    %c0_i32_0 = arith.constant 0 : i32
    %c0_i32_1 = arith.constant 0 : i32
    %c0_i32_2 = arith.constant 0 : i32
    return %c0_i32, %c0_i32_0, %c0_i32_1 : i32, i32, i32
  }
  func.func @transform_17(%arg0: i32) -> (i32, i32) {
    %c0_i32 = arith.constant 0 : i32
    %c0_i32_0 = arith.constant 0 : i32
    %c0_i32_1 = arith.constant 0 : i32
    return %c0_i32, %c0_i32_0 : i32, i32
  }
  func.func @transform_18(%arg0: i32) -> (i32, i32) {
    %c0_i32 = arith.constant 0 : i32
    %c0_i32_0 = arith.constant 0 : i32
    %c0_i32_1 = arith.constant 0 : i32
    return %c0_i32, %c0_i32_0 : i32, i32
  }
  func.func @transform_19(%arg0: i32) -> (i32, i32) {
    %c0_i32 = arith.constant 0 : i32
    %c0_i32_0 = arith.constant 0 : i32
    %c0_i32_1 = arith.constant 0 : i32
    return %c0_i32, %c0_i32_0 : i32, i32
  }
  func.func @transform_20(%arg0: i32) -> (i32, i32) {
    %c0_i32 = arith.constant 0 : i32
    %c0_i32_0 = arith.constant 0 : i32
    %c0_i32_1 = arith.constant 0 : i32
    return %c0_i32, %c0_i32_0 : i32, i32
  }
  func.func @transform_21(%arg0: i32) -> (i32, i32) {
    %c0_i32 = arith.constant 0 : i32
    %c0_i32_0 = arith.constant 0 : i32
    %c0_i32_1 = arith.constant 0 : i32
    return %c0_i32, %c0_i32_0 : i32, i32
  }
  func.func @transform_22(%arg0: i32) -> (i32, i32) {
    %c0_i32 = arith.constant 0 : i32
    %c0_i32_0 = arith.constant 0 : i32
    %c0_i32_1 = arith.constant 0 : i32
    return %c0_i32, %c0_i32_0 : i32, i32
  }
  func.func @transform_23(%arg0: i32) -> (i32, i32, i32) {
    %c0_i32 = arith.constant 0 : i32
    %c0_i32_0 = arith.constant 0 : i32
    %c0_i32_1 = arith.constant 0 : i32
    return %arg0, %c0_i32, %c0_i32_0 : i32, i32, i32
  }
}

</mosaic_0001>

<llo_original>
// kernel: _forward_core.1
$region0: #{_forward_core.1}
  #allocation0 [shape = 'u32[]', space=smem, size = 0x4, offset = 0x4, fixed_abs, tag = 'smem constant byte address 0x4 - core index']
  #allocation1 [shape = 'u32[72,128]{1,0:T(1,128)}', space=vmem, size = 0x9000, scoped, tag = 'internal scratch']
  %s0 = inlined_call_operand.vmem [shape: f32[2,4,8,16], index: 0, kind: input, shape index: {}]
  %s1 = inlined_call_operand.vmem [shape: f32[4,16,32], index: 1, kind: input, shape index: {}]
  %s2 = inlined_call_operand.vmem [shape: f32[8,32], index: 2, kind: input, shape index: {}]
  %s3 = inlined_call_operand.vmem [shape: f32[9,32], index: 3, kind: input, shape index: {}]
  %s4 = inlined_call_operand.vmem [shape: f32[12,8,32], index: 4, kind: input, shape index: {}]
  %s5 = inlined_call_operand.vmem [shape: f32[12,1,8], index: 5, kind: input, shape index: {}]
  %s6 = inlined_call_operand.vmem [shape: f32[33,32], index: 6, kind: input, shape index: {}]
  %s7 = inlined_call_operand.vmem [shape: f32[2,32], index: 7, kind: input, shape index: {}]
  %s8 = inlined_call_operand.vmem [shape: f32[33,8], index: 8, kind: input, shape index: {}]
  %s9 = inlined_call_operand.vmem [shape: f32[9,32], index: 9, kind: input, shape index: {}]
  %s10 = inlined_call_operand.vmem [shape: f32[2,32], index: 10, kind: input, shape index: {}]
  %s11 = inlined_call_operand.vmem [shape: f32[12,8,32], index: 11, kind: input, shape index: {}]
  %s12 = inlined_call_operand.vmem [shape: f32[12,1,8], index: 12, kind: input, shape index: {}]
  %s13 = inlined_call_operand.vmem [shape: f32[33,32], index: 13, kind: input, shape index: {}]
  %s14 = inlined_call_operand.vmem [shape: f32[2,32], index: 14, kind: input, shape index: {}]
  %s15 = inlined_call_operand.vmem [shape: f32[12,8,32], index: 15, kind: input, shape index: {}]
  %s16 = inlined_call_operand.vmem [shape: f32[12,1,8], index: 16, kind: input, shape index: {}]
  %s17 = inlined_call_operand.vmem [shape: f32[33,32], index: 17, kind: input, shape index: {}]
  %s18 = inlined_call_operand.vmem [shape: f32[2,32], index: 18, kind: input, shape index: {}]
  %s19 = inlined_call_operand.vmem [shape: f32[33,8], index: 19, kind: input, shape index: {}]
  %s20 = inlined_call_operand.vmem [shape: f32[9,32], index: 20, kind: input, shape index: {}]
  %s21 = inlined_call_operand.vmem [shape: f32[2,32], index: 21, kind: input, shape index: {}]
  %s22 = inlined_call_operand.vmem [shape: f32[33,128], index: 22, kind: input, shape index: {}]
  %s23 = inlined_call_operand.vmem [shape: f32[2,9,128], index: 23, kind: output, shape index: {}]
  %s24 = sld [smem:[#allocation0]]
  $region125: #{_forward_core.1} parent=0
    _
  %s26 = ssub.s32 1, %s24
  %s27 = scalar_select 0, %s26, %s24
  loop: start=0, step=1, limit=4
  $region2: #{_forward_core.1} parent=0 // loop_pre_header
    _
  $region3: #{_forward_core.1} parent=0 // loop_header
    %s29 = sphi 0, %s33
    %p30 = scmp.ge.s32.totalorder %s29, 4
    %s39 = sphi 0, %s41
    %s42 = sphi 0, %s39
    %s43 = sphi 0, %s42
    %s59 = sphi 0, %s43
    %s63 = sphi 0, %s63
    %s65 = sphi 0, %s63
    %s66 = sphi 0, %s65
    %s80 = sphi 0, %s66
    %s84 = sphi 0, %s84
    %s86 = sphi 0, %s84
    %s87 = sphi 0, %s86
    %s101 = sphi 0, %s87
    %s105 = sphi 0, %s105
    %s107 = sphi 0, %s105
    %s108 = sphi 0, %s107
    %s122 = sphi 0, %s108
    %s126 = sphi 0, %s126
    %s128 = sphi 0, %s126
    %s129 = sphi 0, %s128
    %s143 = sphi 0, %s129
    %s147 = sphi 0, %s147
    %s149 = sphi 0, %s147
    %s150 = sphi 0, %s149
    %s164 = sphi 0, %s150
    %s168 = sphi 0, %s168
    %s170 = sphi 0, %s168
    %s171 = sphi 0, %s170
    %s185 = sphi 0, %s171
    %s189 = sphi 0, %s189
    %s191 = sphi 0, %s189
    %s192 = sphi 0, %s191
    %s206 = sphi 0, %s192
    %s210 = sphi 0, %s210
    %s212 = sphi 0, %s210
    %s213 = sphi 0, %s212
    %s227 = sphi 0, %s213
    %s231 = sphi 0, %s231
    %s233 = sphi 0, %s231
    %s234 = sphi 0, %s233
    %s248 = sphi 0, %s234
    %s252 = sphi 0, %s252
    %s254 = sphi 0, %s252
    %s255 = sphi 0, %s254
    %s269 = sphi 0, %s255
    %s273 = sphi 0, %s273
    %s275 = sphi 0, %s273
    %s276 = sphi 0, %s275
    %s290 = sphi 0, %s276
    %s294 = sphi 0, %s294
    %s296 = sphi 0, %s294
    %s297 = sphi 0, %s296
    %s311 = sphi 0, %s297
    %s315 = sphi 0, %s315
    %s317 = sphi 0, %s315
    %s318 = sphi 0, %s317
    %s332 = sphi 0, %s318
    %s336 = sphi 0, %s336
    %s338 = sphi 0, %s336
    %s339 = sphi 0, %s338
    %s353 = sphi 0, %s339
    %s357 = sphi 0, %s357
    %s359 = sphi 0, %s357
    %s360 = sphi 0, %s359
    %s374 = sphi 0, %s360
    %s378 = sphi 0, %s378
    %s380 = sphi 0, %s378
    %s381 = sphi 0, %s380
    %s395 = sphi 0, %s381
    %s399 = sphi 0, %s399
    %s401 = sphi 0, %s399
    %s402 = sphi 0, %s401
    %s416 = sphi 0, %s402
    %s420 = sphi 0, %s420
    %s422 = sphi 0, %s420
    %s423 = sphi 0, %s422
    %s437 = sphi 0, %s423
    %s441 = sphi 0, %s441
    %s443 = sphi 0, %s441
    %s444 = sphi 0, %s443
    %s458 = sphi 0, %s444
    %s462 = sphi 0, %s462
    %s464 = sphi 0, %s462
    %s465 = sphi 0, %s464
    %s479 = sphi 0, %s465
    %s483 = sphi 0, %s483
    %s485 = sphi 0, %s483
    %s486 = sphi 0, %s485
    %s500 = sphi 0, %s486
    %s504 = sphi 0, %s504
    %s506 = sphi 0, %s504
    %s507 = sphi 0, %s506
    %s521 = sphi 0, %s507
    %s527 = sphi 0, %s529
    %s530 = sphi 0, %s527
    %s531 = sphi 0, %s530
    %s547 = sphi 0, %s531
  $region4: #{_forward_core.1} parent=0 // loop_header_branch
    %32 = sbr.rel (%p30) target = $region8
  $region5: #{_forward_core.1} parent=0 // loop_body
    %s34 = ssub.s32 %s29, 1
    %s35 = ssub.s32 %s29, 2
    %s36 = sadd.s32 %s29, 1
    %s37 = ssub.s32 %s29, %s36
    %p38 = scmp.eq.s32.totalorder %s37, 0
    %s40 = sadd.s32 %s39, 1
    %s41 = scalar_select %p38, %s39, %s40
    %p44 = pneg %p38
    %p45 = scmp.eq.s32.totalorder %s29, 1
    %p46 = por %p44, %p45
    %p47 = scmp.ne.s32.totalorder %s39, %s42
    %p48 = scmp.eq.s32.totalorder %s29, 0
    %p49 = por %p47, %p48
    %p50 = scmp.ne.s32.totalorder %s39, %s42
    %p51 = scmp.eq.s32.totalorder %s34, 1
    %p52 = por %p50, %p51
    %p53 = scmp.ne.s32.totalorder %s42, %s43
    %p54 = scmp.eq.s32.totalorder %s34, 0
    %p55 = por %p53, %p54
    %p56 = scmp.ne.s32.totalorder %s42, %s43
    %p57 = scmp.eq.s32.totalorder %s35, 1
    %p58 = por %p56, %p57
    %p60 = scmp.ne.s32.totalorder %s43, %s59
    %p61 = scmp.eq.s32.totalorder %s35, 0
    %p62 = por %p60, %p61
    %s64 = sadd.s32 %s63, 1
    %p67 = scmp.eq.s32.totalorder %s29, 1
    %p68 = scmp.ne.s32.totalorder %s63, %s65
    %p69 = scmp.eq.s32.totalorder %s29, 0
    %p70 = por %p68, %p69
    %p71 = scmp.ne.s32.totalorder %s63, %s65
    %p72 = scmp.eq.s32.totalorder %s34, 1
    %p73 = por %p71, %p72
    %p74 = scmp.ne.s32.totalorder %s65, %s66
    %p75 = scmp.eq.s32.totalorder %s34, 0
    %p76 = por %p74, %p75
    %p77 = scmp.ne.s32.totalorder %s65, %s66
    %p78 = scmp.eq.s32.totalorder %s35, 1
    %p79 = por %p77, %p78
    %p81 = scmp.ne.s32.totalorder %s66, %s80
    %p82 = scmp.eq.s32.totalorder %s35, 0
    %p83 = por %p81, %p82
    %s85 = sadd.s32 %s84, 1
    %p88 = scmp.eq.s32.totalorder %s29, 1
    %p89 = scmp.ne.s32.totalorder %s84, %s86
    %p90 = scmp.eq.s32.totalorder %s29, 0
    %p91 = por %p89, %p90
    %p92 = scmp.ne.s32.totalorder %s84, %s86
    %p93 = scmp.eq.s32.totalorder %s34, 1
    %p94 = por %p92, %p93
    %p95 = scmp.ne.s32.totalorder %s86, %s87
    %p96 = scmp.eq.s32.totalorder %s34, 0
    %p97 = por %p95, %p96
    %p98 = scmp.ne.s32.totalorder %s86, %s87
    %p99 = scmp.eq.s32.totalorder %s35, 1
    %p100 = por %p98, %p99
    %p102 = scmp.ne.s32.totalorder %s87, %s101
    %p103 = scmp.eq.s32.totalorder %s35, 0
    %p104 = por %p102, %p103
    %s106 = sadd.s32 %s105, 1
    %p109 = scmp.eq.s32.totalorder %s29, 1
    %p110 = scmp.ne.s32.totalorder %s105, %s107
    %p111 = scmp.eq.s32.totalorder %s29, 0
    %p112 = por %p110, %p111
    %p113 = scmp.ne.s32.totalorder %s105, %s107
    %p114 = scmp.eq.s32.totalorder %s34, 1
    %p115 = por %p113, %p114
    %p116 = scmp.ne.s32.totalorder %s107, %s108
    %p117 = scmp.eq.s32.totalorder %s34, 0
    %p118 = por %p116, %p117
    %p119 = scmp.ne.s32.totalorder %s107, %s108
    %p120 = scmp.eq.s32.totalorder %s35, 1
    %p121 = por %p119, %p120
    %p123 = scmp.ne.s32.totalorder %s108, %s122
    %p124 = scmp.eq.s32.totalorder %s35, 0
    %p125 = por %p123, %p124
    %s127 = sadd.s32 %s126, 1
    %p130 = scmp.eq.s32.totalorder %s29, 1
    %p131 = scmp.ne.s32.totalorder %s126, %s128
    %p132 = scmp.eq.s32.totalorder %s29, 0
    %p133 = por %p131, %p132
    %p134 = scmp.ne.s32.totalorder %s126, %s128
    %p135 = scmp.eq.s32.totalorder %s34, 1
    %p136 = por %p134, %p135
    %p137 = scmp.ne.s32.totalorder %s128, %s129
    %p138 = scmp.eq.s32.totalorder %s34, 0
    %p139 = por %p137, %p138
    %p140 = scmp.ne.s32.totalorder %s128, %s129
    %p141 = scmp.eq.s32.totalorder %s35, 1
    %p142 = por %p140, %p141
    %p144 = scmp.ne.s32.totalorder %s129, %s143
    %p145 = scmp.eq.s32.totalorder %s35, 0
    %p146 = por %p144, %p145
    %s148 = sadd.s32 %s147, 1
    %p151 = scmp.eq.s32.totalorder %s29, 1
    %p152 = scmp.ne.s32.totalorder %s147, %s149
    %p153 = scmp.eq.s32.totalorder %s29, 0
    %p154 = por %p152, %p153
    %p155 = scmp.ne.s32.totalorder %s147, %s149
    %p156 = scmp.eq.s32.totalorder %s34, 1
    %p157 = por %p155, %p156
    %p158 = scmp.ne.s32.totalorder %s149, %s150
    %p159 = scmp.eq.s32.totalorder %s34, 0
    %p160 = por %p158, %p159
    %p161 = scmp.ne.s32.totalorder %s149, %s150
    %p162 = scmp.eq.s32.totalorder %s35, 1
    %p163 = por %p161, %p162
    %p165 = scmp.ne.s32.totalorder %s150, %s164
    %p166 = scmp.eq.s32.totalorder %s35, 0
    %p167 = por %p165, %p166
    %s169 = sadd.s32 %s168, 1
    %p172 = scmp.eq.s32.totalorder %s29, 1
    %p173 = scmp.ne.s32.totalorder %s168, %s170
    %p174 = scmp.eq.s32.totalorder %s29, 0
    %p175 = por %p173, %p174
    %p176 = scmp.ne.s32.totalorder %s168, %s170
    %p177 = scmp.eq.s32.totalorder %s34, 1
    %p178 = por %p176, %p177
    %p179 = scmp.ne.s32.totalorder %s170, %s171
    %p180 = scmp.eq.s32.totalorder %s34, 0
    %p181 = por %p179, %p180
    %p182 = scmp.ne.s32.totalorder %s170, %s171
    %p183 = scmp.eq.s32.totalorder %s35, 1
    %p184 = por %p182, %p183
    %p186 = scmp.ne.s32.totalorder %s171, %s185
    %p187 = scmp.eq.s32.totalorder %s35, 0
    %p188 = por %p186, %p187
    %s190 = sadd.s32 %s189, 1
    %p193 = scmp.eq.s32.totalorder %s29, 1
    %p194 = scmp.ne.s32.totalorder %s189, %s191
    %p195 = scmp.eq.s32.totalorder %s29, 0
    %p196 = por %p194, %p195
    %p197 = scmp.ne.s32.totalorder %s189, %s191
    %p198 = scmp.eq.s32.totalorder %s34, 1
    %p199 = por %p197, %p198
    %p200 = scmp.ne.s32.totalorder %s191, %s192
    %p201 = scmp.eq.s32.totalorder %s34, 0
    %p202 = por %p200, %p201
    %p203 = scmp.ne.s32.totalorder %s191, %s192
    %p204 = scmp.eq.s32.totalorder %s35, 1
    %p205 = por %p203, %p204
    %p207 = scmp.ne.s32.totalorder %s192, %s206
    %p208 = scmp.eq.s32.totalorder %s35, 0
    %p209 = por %p207, %p208
    %s211 = sadd.s32 %s210, 1
    %p214 = scmp.eq.s32.totalorder %s29, 1
    %p215 = scmp.ne.s32.totalorder %s210, %s212
    %p216 = scmp.eq.s32.totalorder %s29, 0
    %p217 = por %p215, %p216
    %p218 = scmp.ne.s32.totalorder %s210, %s212
    %p219 = scmp.eq.s32.totalorder %s34, 1
    %p220 = por %p218, %p219
    %p221 = scmp.ne.s32.totalorder %s212, %s213
    %p222 = scmp.eq.s32.totalorder %s34, 0
    %p223 = por %p221, %p222
    %p224 = scmp.ne.s32.totalorder %s212, %s213
    %p225 = scmp.eq.s32.totalorder %s35, 1
    %p226 = por %p224, %p225
    %p228 = scmp.ne.s32.totalorder %s213, %s227
    %p229 = scmp.eq.s32.totalorder %s35, 0
    %p230 = por %p228, %p229
    %s232 = sadd.s32 %s231, 1
    %p235 = scmp.eq.s32.totalorder %s29, 1
    %p236 = scmp.ne.s32.totalorder %s231, %s233
    %p237 = scmp.eq.s32.totalorder %s29, 0
    %p238 = por %p236, %p237
    %p239 = scmp.ne.s32.totalorder %s231, %s233
    %p240 = scmp.eq.s32.totalorder %s34, 1
    %p241 = por %p239, %p240
    %p242 = scmp.ne.s32.totalorder %s233, %s234
    %p243 = scmp.eq.s32.totalorder %s34, 0
    %p244 = por %p242, %p243
    %p245 = scmp.ne.s32.totalorder %s233, %s234
    %p246 = scmp.eq.s32.totalorder %s35, 1
    %p247 = por %p245, %p246
    %p249 = scmp.ne.s32.totalorder %s234, %s248
    %p250 = scmp.eq.s32.totalorder %s35, 0
    %p251 = por %p249, %p250
    %s253 = sadd.s32 %s252, 1
    %p256 = scmp.eq.s32.totalorder %s29, 1
    %p257 = scmp.ne.s32.totalorder %s252, %s254
    %p258 = scmp.eq.s32.totalorder %s29, 0
    %p259 = por %p257, %p258
    %p260 = scmp.ne.s32.totalorder %s252, %s254
    %p261 = scmp.eq.s32.totalorder %s34, 1
    %p262 = por %p260, %p261
    %p263 = scmp.ne.s32.totalorder %s254, %s255
    %p264 = scmp.eq.s32.totalorder %s34, 0
    %p265 = por %p263, %p264
    %p266 = scmp.ne.s32.totalorder %s254, %s255
    %p267 = scmp.eq.s32.totalorder %s35, 1
    %p268 = por %p266, %p267
    %p270 = scmp.ne.s32.totalorder %s255, %s269
    %p271 = scmp.eq.s32.totalorder %s35, 0
    %p272 = por %p270, %p271
    %s274 = sadd.s32 %s273, 1
    %p277 = scmp.eq.s32.totalorder %s29, 1
    %p278 = scmp.ne.s32.totalorder %s273, %s275
    %p279 = scmp.eq.s32.totalorder %s29, 0
    %p280 = por %p278, %p279
    %p281 = scmp.ne.s32.totalorder %s273, %s275
    %p282 = scmp.eq.s32.totalorder %s34, 1
    %p283 = por %p281, %p282
    %p284 = scmp.ne.s32.totalorder %s275, %s276
    %p285 = scmp.eq.s32.totalorder %s34, 0
    %p286 = por %p284, %p285
    %p287 = scmp.ne.s32.totalorder %s275, %s276
    %p288 = scmp.eq.s32.totalorder %s35, 1
    %p289 = por %p287, %p288
    %p291 = scmp.ne.s32.totalorder %s276, %s290
    %p292 = scmp.eq.s32.totalorder %s35, 0
    %p293 = por %p291, %p292
    %s295 = sadd.s32 %s294, 1
    %p298 = scmp.eq.s32.totalorder %s29, 1
    %p299 = scmp.ne.s32.totalorder %s294, %s296
    %p300 = scmp.eq.s32.totalorder %s29, 0
    %p301 = por %p299, %p300
    %p302 = scmp.ne.s32.totalorder %s294, %s296
    %p303 = scmp.eq.s32.totalorder %s34, 1
    %p304 = por %p302, %p303
    %p305 = scmp.ne.s32.totalorder %s296, %s297
    %p306 = scmp.eq.s32.totalorder %s34, 0
    %p307 = por %p305, %p306
    %p308 = scmp.ne.s32.totalorder %s296, %s297
    %p309 = scmp.eq.s32.totalorder %s35, 1
    %p310 = por %p308, %p309
    %p312 = scmp.ne.s32.totalorder %s297, %s311
    %p313 = scmp.eq.s32.totalorder %s35, 0
    %p314 = por %p312, %p313
    %s316 = sadd.s32 %s315, 1
    %p319 = scmp.eq.s32.totalorder %s29, 1
    %p320 = scmp.ne.s32.totalorder %s315, %s317
    %p321 = scmp.eq.s32.totalorder %s29, 0
    %p322 = por %p320, %p321
    %p323 = scmp.ne.s32.totalorder %s315, %s317
    %p324 = scmp.eq.s32.totalorder %s34, 1
    %p325 = por %p323, %p324
    %p326 = scmp.ne.s32.totalorder %s317, %s318
    %p327 = scmp.eq.s32.totalorder %s34, 0
    %p328 = por %p326, %p327
    %p329 = scmp.ne.s32.totalorder %s317, %s318
    %p330 = scmp.eq.s32.totalorder %s35, 1
    %p331 = por %p329, %p330
    %p333 = scmp.ne.s32.totalorder %s318, %s332
    %p334 = scmp.eq.s32.totalorder %s35, 0
    %p335 = por %p333, %p334
    %s337 = sadd.s32 %s336, 1
    %p340 = scmp.eq.s32.totalorder %s29, 1
    %p341 = scmp.ne.s32.totalorder %s336, %s338
    %p342 = scmp.eq.s32.totalorder %s29, 0
    %p343 = por %p341, %p342
    %p344 = scmp.ne.s32.totalorder %s336, %s338
    %p345 = scmp.eq.s32.totalorder %s34, 1
    %p346 = por %p344, %p345
    %p347 = scmp.ne.s32.totalorder %s338, %s339
    %p348 = scmp.eq.s32.totalorder %s34, 0
    %p349 = por %p347, %p348
    %p350 = scmp.ne.s32.totalorder %s338, %s339
    %p351 = scmp.eq.s32.totalorder %s35, 1
    %p352 = por %p350, %p351
    %p354 = scmp.ne.s32.totalorder %s339, %s353
    %p355 = scmp.eq.s32.totalorder %s35, 0
    %p356 = por %p354, %p355
    %s358 = sadd.s32 %s357, 1
    %p361 = scmp.eq.s32.totalorder %s29, 1
    %p362 = scmp.ne.s32.totalorder %s357, %s359
    %p363 = scmp.eq.s32.totalorder %s29, 0
    %p364 = por %p362, %p363
    %p365 = scmp.ne.s32.totalorder %s357, %s359
    %p366 = scmp.eq.s32.totalorder %s34, 1
    %p367 = por %p365, %p366
    %p368 = scmp.ne.s32.totalorder %s359, %s360
    %p369 = scmp.eq.s32.totalorder %s34, 0
    %p370 = por %p368, %p369
    %p371 = scmp.ne.s32.totalorder %s359, %s360
    %p372 = scmp.eq.s32.totalorder %s35, 1
    %p373 = por %p371, %p372
    %p375 = scmp.ne.s32.totalorder %s360, %s374
    %p376 = scmp.eq.s32.totalorder %s35, 0
    %p377 = por %p375, %p376
    %s379 = sadd.s32 %s378, 1
    %p382 = scmp.eq.s32.totalorder %s29, 1
    %p383 = scmp.ne.s32.totalorder %s378, %s380
    %p384 = scmp.eq.s32.totalorder %s29, 0
    %p385 = por %p383, %p384
    %p386 = scmp.ne.s32.totalorder %s378, %s380
    %p387 = scmp.eq.s32.totalorder %s34, 1
    %p388 = por %p386, %p387
    %p389 = scmp.ne.s32.totalorder %s380, %s381
    %p390 = scmp.eq.s32.totalorder %s34, 0
    %p391 = por %p389, %p390
    %p392 = scmp.ne.s32.totalorder %s380, %s381
    %p393 = scmp.eq.s32.totalorder %s35, 1
    %p394 = por %p392, %p393
    %p396 = scmp.ne.s32.totalorder %s381, %s395
    %p397 = scmp.eq.s32.totalorder %s35, 0
    %p398 = por %p396, %p397
    %s400 = sadd.s32 %s399, 1
    %p403 = scmp.eq.s32.totalorder %s29, 1
    %p404 = scmp.ne.s32.totalorder %s399, %s401
    %p405 = scmp.eq.s32.totalorder %s29, 0
    %p406 = por %p404, %p405
    %p407 = scmp.ne.s32.totalorder %s399, %s401
    %p408 = scmp.eq.s32.totalorder %s34, 1
    %p409 = por %p407, %p408
    %p410 = scmp.ne.s32.totalorder %s401, %s402
    %p411 = scmp.eq.s32.totalorder %s34, 0
    %p412 = por %p410, %p411
    %p413 = scmp.ne.s32.totalorder %s401, %s402
    %p414 = scmp.eq.s32.totalorder %s35, 1
    %p415 = por %p413, %p414
    %p417 = scmp.ne.s32.totalorder %s402, %s416
    %p418 = scmp.eq.s32.totalorder %s35, 0
    %p419 = por %p417, %p418
    %s421 = sadd.s32 %s420, 1
    %p424 = scmp.eq.s32.totalorder %s29, 1
    %p425 = scmp.ne.s32.totalorder %s420, %s422
    %p426 = scmp.eq.s32.totalorder %s29, 0
    %p427 = por %p425, %p426
    %p428 = scmp.ne.s32.totalorder %s420, %s422
    %p429 = scmp.eq.s32.totalorder %s34, 1
    %p430 = por %p428, %p429
    %p431 = scmp.ne.s32.totalorder %s422, %s423
    %p432 = scmp.eq.s32.totalorder %s34, 0
    %p433 = por %p431, %p432
    %p434 = scmp.ne.s32.totalorder %s422, %s423
    %p435 = scmp.eq.s32.totalorder %s35, 1
    %p436 = por %p434, %p435
    %p438 = scmp.ne.s32.totalorder %s423, %s437
    %p439 = scmp.eq.s32.totalorder %s35, 0
    %p440 = por %p438, %p439
    %s442 = sadd.s32 %s441, 1
    %p445 = scmp.eq.s32.totalorder %s29, 1
    %p446 = scmp.ne.s32.totalorder %s441, %s443
    %p447 = scmp.eq.s32.totalorder %s29, 0
    %p448 = por %p446, %p447
    %p449 = scmp.ne.s32.totalorder %s441, %s443
    %p450 = scmp.eq.s32.totalorder %s34, 1
    %p451 = por %p449, %p450
    %p452 = scmp.ne.s32.totalorder %s443, %s444
    %p453 = scmp.eq.s32.totalorder %s34, 0
    %p454 = por %p452, %p453
    %p455 = scmp.ne.s32.totalorder %s443, %s444
    %p456 = scmp.eq.s32.totalorder %s35, 1
    %p457 = por %p455, %p456
    %p459 = scmp.ne.s32.totalorder %s444, %s458
    %p460 = scmp.eq.s32.totalorder %s35, 0
    %p461 = por %p459, %p460
    %s463 = sadd.s32 %s462, 1
    %p466 = scmp.eq.s32.totalorder %s29, 1
    %p467 = scmp.ne.s32.totalorder %s462, %s464
    %p468 = scmp.eq.s32.totalorder %s29, 0
    %p469 = por %p467, %p468
    %p470 = scmp.ne.s32.totalorder %s462, %s464
    %p471 = scmp.eq.s32.totalorder %s34, 1
    %p472 = por %p470, %p471
    %p473 = scmp.ne.s32.totalorder %s464, %s465
    %p474 = scmp.eq.s32.totalorder %s34, 0
    %p475 = por %p473, %p474
    %p476 = scmp.ne.s32.totalorder %s464, %s465
    %p477 = scmp.eq.s32.totalorder %s35, 1
    %p478 = por %p476, %p477
    %p480 = scmp.ne.s32.totalorder %s465, %s479
    %p481 = scmp.eq.s32.totalorder %s35, 0
    %p482 = por %p480, %p481
    %s484 = sadd.s32 %s483, 1
    %p487 = scmp.eq.s32.totalorder %s29, 1
    %p488 = scmp.ne.s32.totalorder %s483, %s485
    %p489 = scmp.eq.s32.totalorder %s29, 0
    %p490 = por %p488, %p489
    %p491 = scmp.ne.s32.totalorder %s483, %s485
    %p492 = scmp.eq.s32.totalorder %s34, 1
    %p493 = por %p491, %p492
    %p494 = scmp.ne.s32.totalorder %s485, %s486
    %p495 = scmp.eq.s32.totalorder %s34, 0
    %p496 = por %p494, %p495
    %p497 = scmp.ne.s32.totalorder %s485, %s486
    %p498 = scmp.eq.s32.totalorder %s35, 1
    %p499 = por %p497, %p498
    %p501 = scmp.ne.s32.totalorder %s486, %s500
    %p502 = scmp.eq.s32.totalorder %s35, 0
    %p503 = por %p501, %p502
    %s505 = sadd.s32 %s504, 1
    %p508 = scmp.eq.s32.totalorder %s29, 1
    %p509 = scmp.ne.s32.totalorder %s504, %s506
    %p510 = scmp.eq.s32.totalorder %s29, 0
    %p511 = por %p509, %p510
    %p512 = scmp.ne.s32.totalorder %s504, %s506
    %p513 = scmp.eq.s32.totalorder %s34, 1
    %p514 = por %p512, %p513
    %p515 = scmp.ne.s32.totalorder %s506, %s507
    %p516 = scmp.eq.s32.totalorder %s34, 0
    %p517 = por %p515, %p516
    %p518 = scmp.ne.s32.totalorder %s506, %s507
    %p519 = scmp.eq.s32.totalorder %s35, 1
    %p520 = por %p518, %p519
    %p522 = scmp.ne.s32.totalorder %s507, %s521
    %p523 = scmp.eq.s32.totalorder %s35, 0
    %p524 = por %p522, %p523
    %s525 = ssub.s32 %s29, %s36
    %p526 = scmp.eq.s32.totalorder %s525, 0
    %s528 = sadd.s32 %s527, 1
    %s529 = scalar_select %p526, %s527, %s528
    %p532 = pneg %p526
    %p533 = scmp.eq.s32.totalorder %s29, 1
    %p534 = por %p532, %p533
    %p535 = scmp.ne.s32.totalorder %s527, %s530
    %p536 = scmp.eq.s32.totalorder %s29, 0
    %p537 = por %p535, %p536
    %p538 = scmp.ne.s32.totalorder %s527, %s530
    %p539 = scmp.eq.s32.totalorder %s34, 1
    %p540 = por %p538, %p539
    %p541 = scmp.ne.s32.totalorder %s530, %s531
    %p542 = scmp.eq.s32.totalorder %s34, 0
    %p543 = por %p541, %p542
    %p544 = scmp.ne.s32.totalorder %s530, %s531
    %p545 = scmp.eq.s32.totalorder %s35, 1
    %p546 = por %p544, %p545
    %p548 = scmp.ne.s32.totalorder %s531, %s547
    %p549 = scmp.eq.s32.totalorder %s35, 0
    %p550 = por %p548, %p549
    %p551 = scmp.le.s32.totalorder 1, %s29
    %p552 = scmp.lt.s32.totalorder %s29, 3
    %p553 = pnand %p551, %p552
    %p554 = pneg %p553
    // Predicated region
    $region9: #{_forward_core.1} parent=5 // pred_check
      _
    $region10: #{_forward_core.1} parent=5 // pred_check_branch
      %556 = sbr.rel (%p553) target = $region12
    $region11: #{_forward_core.1} parent=5 // pred_region
      %s557 = ssub.s32 %s29, 1
      // Predicated region
      $region13: #{_forward_core.1} parent=11 // pred_check
        %p558 = pneg %p76
      $region14: #{_forward_core.1} parent=11 // pred_check_branch
        %560 = sbr.rel (%p558) target = $region16
      $region15: #{_forward_core.1} parent=11 // pred_region
        _
      $region16: #{_forward_core.1} parent=11 // pred_fallthru
        _
      // Predicated region
      $region17: #{_forward_core.1} parent=11 // pred_check
        %p561 = pneg %p97
      $region18: #{_forward_core.1} parent=11 // pred_check_branch
        %563 = sbr.rel (%p561) target = $region20
      $region19: #{_forward_core.1} parent=11 // pred_region
        _
      $region20: #{_forward_core.1} parent=11 // pred_fallthru
        _
      // Predicated region
      $region21: #{_forward_core.1} parent=11 // pred_check
        %p564 = pneg %p118
      $region22: #{_forward_core.1} parent=11 // pred_check_branch
        %566 = sbr.rel (%p564) target = $region24
      $region23: #{_forward_core.1} parent=11 // pred_region
        _
      $region24: #{_forward_core.1} parent=11 // pred_fallthru
        _
      // Predicated region
      $region25: #{_forward_core.1} parent=11 // pred_check
        %p567 = pneg %p139
      $region26: #{_forward_core.1} parent=11 // pred_check_branch
        %569 = sbr.rel (%p567) target = $region28
      $region27: #{_forward_core.1} parent=11 // pred_region
        _
      $region28: #{_forward_core.1} parent=11 // pred_fallthru
        _
      // Predicated region
      $region29: #{_forward_core.1} parent=11 // pred_check
        %p570 = pneg %p160
      $region30: #{_forward_core.1} parent=11 // pred_check_branch
        %572 = sbr.rel (%p570) target = $region32
      $region31: #{_forward_core.1} parent=11 // pred_region
        _
      $region32: #{_forward_core.1} parent=11 // pred_fallthru
        _
      // Predicated region
      $region33: #{_forward_core.1} parent=11 // pred_check
        %p573 = pneg %p181
      $region34: #{_forward_core.1} parent=11 // pred_check_branch
        %575 = sbr.rel (%p573) target = $region36
      $region35: #{_forward_core.1} parent=11 // pred_region
        _
      $region36: #{_forward_core.1} parent=11 // pred_fallthru
        _
      // Predicated region
      $region37: #{_forward_core.1} parent=11 // pred_check
        %p576 = pneg %p202
      $region38: #{_forward_core.1} parent=11 // pred_check_branch
        %578 = sbr.rel (%p576) target = $region40
      $region39: #{_forward_core.1} parent=11 // pred_region
        _
      $region40: #{_forward_core.1} parent=11 // pred_fallthru
        _
      // Predicated region
      $region41: #{_forward_core.1} parent=11 // pred_check
        %p579 = pneg %p223
      $region42: #{_forward_core.1} parent=11 // pred_check_branch
        %581 = sbr.rel (%p579) target = $region44
      $region43: #{_forward_core.1} parent=11 // pred_region
        _
      $region44: #{_forward_core.1} parent=11 // pred_fallthru
        _
      // Predicated region
      $region45: #{_forward_core.1} parent=11 // pred_check
        %p582 = pneg %p244
      $region46: #{_forward_core.1} parent=11 // pred_check_branch
        %584 = sbr.rel (%p582) target = $region48
      $region47: #{_forward_core.1} parent=11 // pred_region
        _
      $region48: #{_forward_core.1} parent=11 // pred_fallthru
        _
      // Predicated region
      $region49: #{_forward_core.1} parent=11 // pred_check
        %p585 = pneg %p265
      $region50: #{_forward_core.1} parent=11 // pred_check_branch
        %587 = sbr.rel (%p585) target = $region52
      $region51: #{_forward_core.1} parent=11 // pred_region
        _
      $region52: #{_forward_core.1} parent=11 // pred_fallthru
        _
      // Predicated region
      $region53: #{_forward_core.1} parent=11 // pred_check
        %p588 = pneg %p286
      $region54: #{_forward_core.1} parent=11 // pred_check_branch
        %590 = sbr.rel (%p588) target = $region56
      $region55: #{_forward_core.1} parent=11 // pred_region
        _
      $region56: #{_forward_core.1} parent=11 // pred_fallthru
        _
      // Predicated region
      $region57: #{_forward_core.1} parent=11 // pred_check
        %p591 = pneg %p307
      $region58: #{_forward_core.1} parent=11 // pred_check_branch
        %593 = sbr.rel (%p591) target = $region60
      $region59: #{_forward_core.1} parent=11 // pred_region
        _
      $region60: #{_forward_core.1} parent=11 // pred_fallthru
        _
      // Predicated region
      $region61: #{_forward_core.1} parent=11 // pred_check
        %p594 = pneg %p328
      $region62: #{_forward_core.1} parent=11 // pred_check_branch
        %596 = sbr.rel (%p594) target = $region64
      $region63: #{_forward_core.1} parent=11 // pred_region
        _
      $region64: #{_forward_core.1} parent=11 // pred_fallthru
        _
      // Predicated region
      $region65: #{_forward_core.1} parent=11 // pred_check
        %p597 = pneg %p349
      $region66: #{_forward_core.1} parent=11 // pred_check_branch
        %599 = sbr.rel (%p597) target = $region68
      $region67: #{_forward_core.1} parent=11 // pred_region
        _
      $region68: #{_forward_core.1} parent=11 // pred_fallthru
        _
      // Predicated region
      $region69: #{_forward_core.1} parent=11 // pred_check
        %p600 = pneg %p370
      $region70: #{_forward_core.1} parent=11 // pred_check_branch
        %602 = sbr.rel (%p600) target = $region72
      $region71: #{_forward_core.1} parent=11 // pred_region
        _
      $region72: #{_forward_core.1} parent=11 // pred_fallthru
        _
      // Predicated region
      $region73: #{_forward_core.1} parent=11 // pred_check
        %p603 = pneg %p391
      $region74: #{_forward_core.1} parent=11 // pred_check_branch
        %605 = sbr.rel (%p603) target = $region76
      $region75: #{_forward_core.1} parent=11 // pred_region
        _
      $region76: #{_forward_core.1} parent=11 // pred_fallthru
        _
      // Predicated region
      $region77: #{_forward_core.1} parent=11 // pred_check
        %p606 = pneg %p412
      $region78: #{_forward_core.1} parent=11 // pred_check_branch
        %608 = sbr.rel (%p606) target = $region80
      $region79: #{_forward_core.1} parent=11 // pred_region
        _
      $region80: #{_forward_core.1} parent=11 // pred_fallthru
        _
      // Predicated region
      $region81: #{_forward_core.1} parent=11 // pred_check
        %p609 = pneg %p433
      $region82: #{_forward_core.1} parent=11 // pred_check_branch
        %611 = sbr.rel (%p609) target = $region84
      $region83: #{_forward_core.1} parent=11 // pred_region
        _
      $region84: #{_forward_core.1} parent=11 // pred_fallthru
        _
      // Predicated region
      $region85: #{_forward_core.1} parent=11 // pred_check
        %p612 = pneg %p454
      $region86: #{_forward_core.1} parent=11 // pred_check_branch
        %614 = sbr.rel (%p612) target = $region88
      $region87: #{_forward_core.1} parent=11 // pred_region
        _
      $region88: #{_forward_core.1} parent=11 // pred_fallthru
        _
      // Predicated region
      $region89: #{_forward_core.1} parent=11 // pred_check
        %p615 = pneg %p475
      $region90: #{_forward_core.1} parent=11 // pred_check_branch
        %617 = sbr.rel (%p615) target = $region92
      $region91: #{_forward_core.1} parent=11 // pred_region
        _
      $region92: #{_forward_core.1} parent=11 // pred_fallthru
        _
      // Predicated region
      $region93: #{_forward_core.1} parent=11 // pred_check
        %p618 = pneg %p496
      $region94: #{_forward_core.1} parent=11 // pred_check_branch
        %620 = sbr.rel (%p618) target = $region96
      $region95: #{_forward_core.1} parent=11 // pred_region
        _
      $region96: #{_forward_core.1} parent=11 // pred_fallthru
        _
      // Predicated region
      $region97: #{_forward_core.1} parent=11 // pred_check
        %p621 = pneg %p517
      $region98: #{_forward_core.1} parent=11 // pred_check_branch
        %623 = sbr.rel (%p621) target = $region100
      $region99: #{_forward_core.1} parent=11 // pred_region
        _
      $region100: #{_forward_core.1} parent=11 // pred_fallthru
        _
    $region12: #{_forward_core.1} parent=5 // pred_fallthru
      _
    %p624 = scmp.lt.s32.totalorder %s29, 2
    // Predicated region
    $region101: #{_forward_core.1} parent=5 // pred_check
      %p625 = pneg %p624
    $region102: #{_forward_core.1} parent=5 // pred_check_branch
      %627 = sbr.rel (%p625) target = $region104
    $region103: #{_forward_core.1} parent=5 // pred_region
      // Predicated region
      $region105: #{_forward_core.1} parent=103 // pred_check
        %p628 = pneg %p49
      $region106: #{_forward_core.1} parent=103 // pred_check_branch
        %630 = sbr.rel (%p628) target = $region108
      $region107: #{_forward_core.1} parent=103 // pred_region
        %p631 = scmp.lt.s32.totalorder %s29, 1
        %s632 = scalar_select %p631, %s29, 1
        %s633 = smul.addr %s632, 4
        %s634 = smul.addr %s633, 8
        %s635 = scalar_lea.vmem %s0, %s634
      $region108: #{_forward_core.1} parent=103 // pred_fallthru
        _
    $region104: #{_forward_core.1} parent=5 // pred_fallthru
      _
    %p636 = scmp.le.s32.totalorder 1, %s29
    %p637 = scmp.lt.s32.totalorder %s29, 3
    %p638 = pnand %p636, %p637
    %p639 = pneg %p638
    // Predicated region
    $region109: #{_forward_core.1} parent=5 // pred_check
      _
    $region110: #{_forward_core.1} parent=5 // pred_check_branch
      %641 = sbr.rel (%p638) target = $region112
    $region111: #{_forward_core.1} parent=5 // pred_region
      %s642 = ssub.s32 %s29, 1
      %p643 = scmp.lt.s32.totalorder %s34, 1
      %s644 = scalar_select %p643, %s34, 1
      %s645 = smul.addr %s644, 4
      %s646 = smul.addr %s645, 8
      %s647 = scalar_lea.vmem %s0, %s646
      %p648 = pneg %p55
      %p649 = pneg %p52
      %p650 = pneg %p76
      %p651 = pneg %p73
      %p652 = pneg %p97
      %p653 = pneg %p94
      %p654 = pneg %p118
      %p655 = pneg %p115
      %p656 = pneg %p139
      %p657 = pneg %p136
      %p658 = pneg %p160
      %p659 = pneg %p157
      %p660 = pneg %p181
      %p661 = pneg %p178
      %p662 = pneg %p202
      %p663 = pneg %p199
      %p664 = pneg %p223
      %p665 = pneg %p220
      %p666 = pneg %p244
      %p667 = pneg %p241
      %p668 = pneg %p265
      %p669 = pneg %p262
      %p670 = pneg %p286
      %p671 = pneg %p283
      %p672 = pneg %p307
      %p673 = pneg %p304
      %p674 = pneg %p328
      %p675 = pneg %p325
      %p676 = pneg %p349
      %p677 = pneg %p346
      %p678 = pneg %p370
      %p679 = pneg %p367
      %p680 = pneg %p391
      %p681 = pneg %p388
      %p682 = pneg %p412
      %p683 = pneg %p409
      %p684 = pneg %p433
      %p685 = pneg %p430
      %p686 = pneg %p454
      %p687 = pneg %p451
      %p688 = pneg %p475
      %p689 = pneg %p472
      %p690 = pneg %p496
      %p691 = pneg %p493
      %p692 = pneg %p517
      %p693 = pneg %p514
      %p694 = pneg %p543
      %p695 = pneg %p540
      %p696 = scmp.lt.s32.totalorder %s34, 1
      %s697 = scalar_select %p696, %s34, 1
      %s698 = smul.addr %s697, 2
      %s699 = smul.addr %s698, 8
      %s700 = scalar_lea.vmem %s23, %s699
      %p701 = scmp.lt.s32.totalorder %s34, 1
      %s702 = scalar_select %p701, %s34, 1
      %s703 = smul.addr %s702, 4
      %s704 = smul.addr %s703, 8
      %s705 = scalar_lea.vmem %s0, %s704
      %p706 = scmp.lt.s32.totalorder %s34, 1
      %s707 = scalar_select %p706, %s34, 1
      %s708 = smul.addr %s707, 2
      %s709 = smul.addr %s708, 8
      %s710 = scalar_lea.vmem %s23, %s709
      %v711 = vld [vmem:[%s2] sm:$0xff]
      %v712 = vld [vmem:[%s705] sm:$0xff]
      %v713 = vld [vmem:[%s1] sm:$0xff]
      %v714 = vld [vmem:[%s1 + $0x8] sm:$0xff]
      %vm715 = vcmask 130048
      %v717 = vsel %vm715, %v712, 0
      %719 = vmatpush.msra.mxu0 0.0
      %720 = vmatpush.msra.mxu0 0.0
      %721 = vmatpush.msra.mxu0 0.0
      %722 = vmatpush.msra.mxu0 0.0
      %723 = vmatpush.msra.mxu0 0.0
      %724 = vmatpush.msra.mxu0 0.0
      %725 = vmatpush.msra.mxu0 0.0
      %726 = vmatpush.msra.mxu0 0.0
      %727 = vmatpush.msra.mxu0 0.0
      %728 = vmatpush.msra.mxu0 0.0
      %729 = vmatpush.msra.mxu0 0.0
      %730 = vmatpush.msra.mxu0 0.0
      %731 = vmatpush.msra.mxu0 0.0
      %732 = vmatpush.msra.mxu0 0.0
      %733 = vmatpush.msra.mxu0 %v714
      %734 = vmatpush.msra.mxu0 %v713
      %735 = vmatmul.f32.gmra.mxu0 %v717
      %v736 = vpop.f32.mrf.mxu0
      %v737 = vadd.f32 0.0, %v736
      %738 = vdwg.mxu0
      %v739 = vadd.f32 %v711, %v737
      %s740 = scalar_lea.vmem %s705, 8
      %v741 = vld [vmem:[%s740] sm:$0xff]
      %s742 = scalar_lea.vmem %s1, 16
      %v743 = vld [vmem:[%s742] sm:$0xff]
      %v744 = vld [vmem:[%s742 + $0x8] sm:$0xff]
      %v746 = vsel %vm715, %v741, 0
      %748 = vmatpush.msra.mxu0 0.0
      %749 = vmatpush.msra.mxu0 0.0
      %750 = vmatpush.msra.mxu0 0.0
      %751 = vmatpush.msra.mxu0 0.0
      %752 = vmatpush.msra.mxu0 0.0
      %753 = vmatpush.msra.mxu0 0.0
      %754 = vmatpush.msra.mxu0 0.0
      %755 = vmatpush.msra.mxu0 0.0
      %756 = vmatpush.msra.mxu0 0.0
      %757 = vmatpush.msra.mxu0 0.0
      %758 = vmatpush.msra.mxu0 0.0
      %759 = vmatpush.msra.mxu0 0.0
      %760 = vmatpush.msra.mxu0 0.0
      %761 = vmatpush.msra.mxu0 0.0
      %762 = vmatpush.msra.mxu0 %v744
      %763 = vmatpush.msra.mxu0 %v743
      %764 = vmatmul.f32.gmra.mxu0 %v746
      %v765 = vpop.f32.mrf.mxu0
      %v766 = vadd.f32 0.0, %v765
      %767 = vdwg.mxu0
      %v768 = vadd.f32 %v739, %v766
      %s769 = scalar_lea.vmem %s705, 16
      %v770 = vld [vmem:[%s769] sm:$0xff]
      %s771 = scalar_lea.vmem %s1, 32
      %v772 = vld [vmem:[%s771] sm:$0xff]
      %v773 = vld [vmem:[%s771 + $0x8] sm:$0xff]
      %v775 = vsel %vm715, %v770, 0
      %777 = vmatpush.msra.mxu0 0.0
      %778 = vmatpush.msra.mxu0 0.0
      %779 = vmatpush.msra.mxu0 0.0
      %780 = vmatpush.msra.mxu0 0.0
      %781 = vmatpush.msra.mxu0 0.0
      %782 = vmatpush.msra.mxu0 0.0
      %783 = vmatpush.msra.mxu0 0.0
      %784 = vmatpush.msra.mxu0 0.0
      %785 = vmatpush.msra.mxu0 0.0
      %786 = vmatpush.msra.mxu0 0.0
      %787 = vmatpush.msra.mxu0 0.0
      %788 = vmatpush.msra.mxu0 0.0
      %789 = vmatpush.msra.mxu0 0.0
      %790 = vmatpush.msra.mxu0 0.0
      %791 = vmatpush.msra.mxu0 %v773
      %792 = vmatpush.msra.mxu0 %v772
      %793 = vmatmul.f32.gmra.mxu0 %v775
      %v794 = vpop.f32.mrf.mxu0
      %v795 = vadd.f32 0.0, %v794
      %796 = vdwg.mxu0
      %v797 = vadd.f32 %v768, %v795
      %s798 = scalar_lea.vmem %s705, 24
      %v799 = vld [vmem:[%s798] sm:$0xff]
      %s800 = scalar_lea.vmem %s1, 48
      %v801 = vld [vmem:[%s800] sm:$0xff]
      %v802 = vld [vmem:[%s800 + $0x8] sm:$0xff]
      %v804 = vsel %vm715, %v799, 0
      %806 = vmatpush.msra.mxu0 0.0
      %807 = vmatpush.msra.mxu0 0.0
      %808 = vmatpush.msra.mxu0 0.0
      %809 = vmatpush.msra.mxu0 0.0
      %810 = vmatpush.msra.mxu0 0.0
      %811 = vmatpush.msra.mxu0 0.0
      %812 = vmatpush.msra.mxu0 0.0
      %813 = vmatpush.msra.mxu0 0.0
      %814 = vmatpush.msra.mxu0 0.0
      %815 = vmatpush.msra.mxu0 0.0
      %816 = vmatpush.msra.mxu0 0.0
      %817 = vmatpush.msra.mxu0 0.0
      %818 = vmatpush.msra.mxu0 0.0
      %819 = vmatpush.msra.mxu0 0.0
      %820 = vmatpush.msra.mxu0 %v802
      %821 = vmatpush.msra.mxu0 %v801
      %822 = vmatmul.f32.gmra.mxu0 %v804
      %v823 = vpop.f32.mrf.mxu0
      %v824 = vadd.f32 0.0, %v823
      %825 = vdwg.mxu0
      %v826 = vadd.f32 %v797, %v824
      %v827 = vld [vmem:[%s4] sm:$0xff]
      %v828 = vld [vmem:[%s5] sm:$0x1]
      %v830 = vperm.slane %v828, 0
      %vm832 = vcmask 261120
      %v834 = vsel %vm832, %v826, 0
      %v837 = vsel %vm832, %v827, 0
      %839 = vmatpush.xpose.msra.mxu0 0.0
      %840 = vmatpush.xpose.msra.mxu0 0.0
      %841 = vmatpush.xpose.msra.mxu0 0.0
      %842 = vmatpush.xpose.msra.mxu0 0.0
      %843 = vmatpush.xpose.msra.mxu0 0.0
      %844 = vmatpush.xpose.msra.mxu0 0.0
      %845 = vmatpush.xpose.msra.mxu0 0.0
      %846 = vmatpush.xpose.msra.mxu0 0.0
      %847 = vmatpush.xpose.msra.mxu0 0.0
      %848 = vmatpush.xpose.msra.mxu0 0.0
      %849 = vmatpush.xpose.msra.mxu0 0.0
      %850 = vmatpush.xpose.msra.mxu0 0.0
      %851 = vmatpush.xpose.msra.mxu0 0.0
      %852 = vmatpush.xpose.msra.mxu0 0.0
      %853 = vmatpush.xpose.msra.mxu0 0.0
      %854 = vmatpush.xpose.msra.mxu0 %v837
      %855 = vmatmul.f32.gmra.mxu0 %v834
      %v856 = vpop.f32.mrf.mxu0
      %v857 = vadd.f32 %v830, %v856
      %858 = vdwg.mxu0
      %s859 = scalar_lea.vmem %s4, 32
      %v860 = vld [vmem:[%s859] sm:$0xff]
      %s861 = scalar_lea.vmem %s5, 4
      %v862 = vld [vmem:[%s861] sm:$0x1]
      %v864 = vperm.slane %v862, 0
      %v867 = vsel %vm832, %v860, 0
      %869 = vmatpush.xpose.msra.mxu0 0.0
      %870 = vmatpush.xpose.msra.mxu0 0.0
      %871 = vmatpush.xpose.msra.mxu0 0.0
      %872 = vmatpush.xpose.msra.mxu0 0.0
      %873 = vmatpush.xpose.msra.mxu0 0.0
      %874 = vmatpush.xpose.msra.mxu0 0.0
      %875 = vmatpush.xpose.msra.mxu0 0.0
      %876 = vmatpush.xpose.msra.mxu0 0.0
      %877 = vmatpush.xpose.msra.mxu0 0.0
      %878 = vmatpush.xpose.msra.mxu0 0.0
      %879 = vmatpush.xpose.msra.mxu0 0.0
      %880 = vmatpush.xpose.msra.mxu0 0.0
      %881 = vmatpush.xpose.msra.mxu0 0.0
      %882 = vmatpush.xpose.msra.mxu0 0.0
      %883 = vmatpush.xpose.msra.mxu0 0.0
      %884 = vmatpush.xpose.msra.mxu0 %v867
      %885 = vmatmul.f32.gmra.mxu0 %v834
      %v886 = vpop.f32.mrf.mxu0
      %v887 = vadd.f32 %v864, %v886
      %888 = vdwg.mxu0
      %s889 = scalar_lea.vmem %s4, 64
      %v890 = vld [vmem:[%s889] sm:$0xff]
      %s891 = scalar_lea.vmem %s5, 8
      %v892 = vld [vmem:[%s891] sm:$0x1]
      %v894 = vperm.slane %v892, 0
      %v897 = vsel %vm832, %v890, 0
      %899 = vmatpush.xpose.msra.mxu0 0.0
      %900 = vmatpush.xpose.msra.mxu0 0.0
      %901 = vmatpush.xpose.msra.mxu0 0.0
      %902 = vmatpush.xpose.msra.mxu0 0.0
      %903 = vmatpush.xpose.msra.mxu0 0.0
      %904 = vmatpush.xpose.msra.mxu0 0.0
      %905 = vmatpush.xpose.msra.mxu0 0.0
      %906 = vmatpush.xpose.msra.mxu0 0.0
      %907 = vmatpush.xpose.msra.mxu0 0.0
      %908 = vmatpush.xpose.msra.mxu0 0.0
      %909 = vmatpush.xpose.msra.mxu0 0.0
      %910 = vmatpush.xpose.msra.mxu0 0.0
      %911 = vmatpush.xpose.msra.mxu0 0.0
      %912 = vmatpush.xpose.msra.mxu0 0.0
      %913 = vmatpush.xpose.msra.mxu0 0.0
      %914 = vmatpush.xpose.msra.mxu0 %v897
      %915 = vmatmul.f32.gmra.mxu0 %v834
      %v916 = vpop.f32.mrf.mxu0
      %v917 = vadd.f32 %v894, %v916
      %918 = vdwg.mxu0
      %vm919 = vcmask 64512
      %v921 = vsel %vm919, %v857, 0
      %v924 = vsel %vm919, %v887, 0
      %926 = vmatpush.xpose.msra.mxu0 0.0
      %927 = vmatpush.xpose.msra.mxu0 0.0
      %928 = vmatpush.xpose.msra.mxu0 0.0
      %929 = vmatpush.xpose.msra.mxu0 0.0
      %930 = vmatpush.xpose.msra.mxu0 0.0
      %931 = vmatpush.xpose.msra.mxu0 0.0
      %932 = vmatpush.xpose.msra.mxu0 0.0
      %933 = vmatpush.xpose.msra.mxu0 0.0
      %934 = vmatpush.xpose.msra.mxu0 0.0
      %935 = vmatpush.xpose.msra.mxu0 0.0
      %936 = vmatpush.xpose.msra.mxu0 0.0
      %937 = vmatpush.xpose.msra.mxu0 0.0
      %938 = vmatpush.xpose.msra.mxu0 0.0
      %939 = vmatpush.xpose.msra.mxu0 0.0
      %940 = vmatpush.xpose.msra.mxu0 0.0
      %941 = vmatpush.xpose.msra.mxu0 %v924
      %942 = vmatmul.f32.gmra.mxu0 %v921
      %v943 = vpop.f32.mrf.mxu0
      %v944 = vadd.f32 0.0, %v943
      %945 = vdwg.mxu0
      %v946 = vmul.f32 %v944, 0.35355338
      %v947 = vsel %vm919, %v946, -inf
      %948 = vmax.xlane.f32.xlu0 %v947
      %v949 = vpop.xlane.xlu0 %948
      %v950 = vsub.f32 %v946, %v949
      %v951 = vmul.f32 %v950, 1.442695
      %v952 = vpow.pop %v951
      %v953 = vsel %vm919, %v952, 0.0
      %954 = vadd.xlane.f32.xlu0 %v953
      %v955 = vpop.xlane.xlu0 %954
      %v956 = vrcp.pop %v955
      %v957 = vmul.f32 %v952, %v956
      %v959 = vsel %vm919, %v957, 0
      %961 = vmatpush.msra.mxu0 0.0
      %962 = vmatpush.msra.mxu0 0.0
      %963 = vmatpush.msra.mxu0 0.0
      %964 = vmatpush.msra.mxu0 0.0
      %965 = vmatpush.msra.mxu0 0.0
      %966 = vmatpush.msra.mxu0 0.0
      %967 = vmatpush.msra.mxu0 0.0
      %968 = vmatpush.msra.mxu0 0.0
      %969 = vmatpush.msra.mxu0 0.0
      %970 = vmatpush.msra.mxu0 0.0
      %971 = vmatpush.msra.mxu0 0.0
      %972 = vmatpush.msra.mxu0 0.0
      %973 = vmatpush.msra.mxu0 0.0
      %974 = vmatpush.msra.mxu0 0.0
      %975 = vmatpush.msra.mxu0 0.0
      %976 = vmatpush.msra.mxu0 %v917
      %977 = vmatmul.f32.gmra.mxu0 %v959
      %v978 = vpop.f32.mrf.mxu0
      %v979 = vadd.f32 0.0, %v978
      %980 = vdwg.mxu0
      %v981 = vld [vmem:[%s6] sm:$0xff]
      %s982 = scalar_lea.vmem %s4, 8
      %v983 = vld [vmem:[%s982] sm:$0xff]
      %s984 = scalar_lea.vmem %s5, 1
      %v985 = vld [vmem:[%s984] sm:$0x1]
      %v987 = vperm.slane %v985, 0
      %v990 = vsel %vm832, %v983, 0
      %992 = vmatpush.xpose.msra.mxu0 0.0
      %993 = vmatpush.xpose.msra.mxu0 0.0
      %994 = vmatpush.xpose.msra.mxu0 0.0
      %995 = vmatpush.xpose.msra.mxu0 0.0
      %996 = vmatpush.xpose.msra.mxu0 0.0
      %997 = vmatpush.xpose.msra.mxu0 0.0
      %998 = vmatpush.xpose.msra.mxu0 0.0
      %999 = vmatpush.xpose.msra.mxu0 0.0
      %1000 = vmatpush.xpose.msra.mxu0 0.0
      %1001 = vmatpush.xpose.msra.mxu0 0.0
      %1002 = vmatpush.xpose.msra.mxu0 0.0
      %1003 = vmatpush.xpose.msra.mxu0 0.0
      %1004 = vmatpush.xpose.msra.mxu0 0.0
      %1005 = vmatpush.xpose.msra.mxu0 0.0
      %1006 = vmatpush.xpose.msra.mxu0 0.0
      %1007 = vmatpush.xpose.msra.mxu0 %v990
      %1008 = vmatmul.f32.gmra.mxu0 %v834
      %v1009 = vpop.f32.mrf.mxu0
      %v1010 = vadd.f32 %v987, %v1009
      %1011 = vdwg.mxu0
      %s1012 = scalar_lea.vmem %s4, 40
      %v1013 = vld [vmem:[%s1012] sm:$0xff]
      %s1014 = scalar_lea.vmem %s5, 5
      %v1015 = vld [vmem:[%s1014] sm:$0x1]
      %v1017 = vperm.slane %v1015, 0
      %v1020 = vsel %vm832, %v1013, 0
      %1022 = vmatpush.xpose.msra.mxu0 0.0
      %1023 = vmatpush.xpose.msra.mxu0 0.0
      %1024 = vmatpush.xpose.msra.mxu0 0.0
      %1025 = vmatpush.xpose.msra.mxu0 0.0
      %1026 = vmatpush.xpose.msra.mxu0 0.0
      %1027 = vmatpush.xpose.msra.mxu0 0.0
      %1028 = vmatpush.xpose.msra.mxu0 0.0
      %1029 = vmatpush.xpose.msra.mxu0 0.0
      %1030 = vmatpush.xpose.msra.mxu0 0.0
      %1031 = vmatpush.xpose.msra.mxu0 0.0
      %1032 = vmatpush.xpose.msra.mxu0 0.0
      %1033 = vmatpush.xpose.msra.mxu0 0.0
      %1034 = vmatpush.xpose.msra.mxu0 0.0
      %1035 = vmatpush.xpose.msra.mxu0 0.0
      %1036 = vmatpush.xpose.msra.mxu0 0.0
      %1037 = vmatpush.xpose.msra.mxu0 %v1020
      %1038 = vmatmul.f32.gmra.mxu0 %v834
      %v1039 = vpop.f32.mrf.mxu0
      %v1040 = vadd.f32 %v1017, %v1039
      %1041 = vdwg.mxu0
      %s1042 = scalar_lea.vmem %s4, 72
      %v1043 = vld [vmem:[%s1042] sm:$0xff]
      %s1044 = scalar_lea.vmem %s5, 9
      %v1045 = vld [vmem:[%s1044] sm:$0x1]
      %v1047 = vperm.slane %v1045, 0
      %v1050 = vsel %vm832, %v1043, 0
      %1052 = vmatpush.xpose.msra.mxu0 0.0
      %1053 = vmatpush.xpose.msra.mxu0 0.0
      %1054 = vmatpush.xpose.msra.mxu0 0.0
      %1055 = vmatpush.xpose.msra.mxu0 0.0
      %1056 = vmatpush.xpose.msra.mxu0 0.0
      %1057 = vmatpush.xpose.msra.mxu0 0.0
      %1058 = vmatpush.xpose.msra.mxu0 0.0
      %1059 = vmatpush.xpose.msra.mxu0 0.0
      %1060 = vmatpush.xpose.msra.mxu0 0.0
      %1061 = vmatpush.xpose.msra.mxu0 0.0
      %1062 = vmatpush.xpose.msra.mxu0 0.0
      %1063 = vmatpush.xpose.msra.mxu0 0.0
      %1064 = vmatpush.xpose.msra.mxu0 0.0
      %1065 = vmatpush.xpose.msra.mxu0 0.0
      %1066 = vmatpush.xpose.msra.mxu0 0.0
      %1067 = vmatpush.xpose.msra.mxu0 %v1050
      %1068 = vmatmul.f32.gmra.mxu0 %v834
      %v1069 = vpop.f32.mrf.mxu0
      %v1070 = vadd.f32 %v1047, %v1069
      %1071 = vdwg.mxu0
      %v1073 = vsel %vm919, %v1010, 0
      %v1076 = vsel %vm919, %v1040, 0
      %1078 = vmatpush.xpose.msra.mxu0 0.0
      %1079 = vmatpush.xpose.msra.mxu0 0.0
      %1080 = vmatpush.xpose.msra.mxu0 0.0
      %1081 = vmatpush.xpose.msra.mxu0 0.0
      %1082 = vmatpush.xpose.msra.mxu0 0.0
      %1083 = vmatpush.xpose.msra.mxu0 0.0
      %1084 = vmatpush.xpose.msra.mxu0 0.0
      %1085 = vmatpush.xpose.msra.mxu0 0.0
      %1086 = vmatpush.xpose.msra.mxu0 0.0
      %1087 = vmatpush.xpose.msra.mxu0 0.0
      %1088 = vmatpush.xpose.msra.mxu0 0.0
      %1089 = vmatpush.xpose.msra.mxu0 0.0
      %1090 = vmatpush.xpose.msra.mxu0 0.0
      %1091 = vmatpush.xpose.msra.mxu0 0.0
      %1092 = vmatpush.xpose.msra.mxu0 0.0
      %1093 = vmatpush.xpose.msra.mxu0 %v1076
      %1094 = vmatmul.f32.gmra.mxu0 %v1073
      %v1095 = vpop.f32.mrf.mxu0
      %v1096 = vadd.f32 0.0, %v1095
      %1097 = vdwg.mxu0
      %v1098 = vmul.f32 %v1096, 0.35355338
      %v1099 = vsel %vm919, %v1098, -inf
      %1100 = vmax.xlane.f32.xlu0 %v1099
      %v1101 = vpop.xlane.xlu0 %1100
      %v1102 = vsub.f32 %v1098, %v1101
      %v1103 = vmul.f32 %v1102, 1.442695
      %v1104 = vpow.pop %v1103
      %v1105 = vsel %vm919, %v1104, 0.0
      %1106 = vadd.xlane.f32.xlu0 %v1105
      %v1107 = vpop.xlane.xlu0 %1106
      %v1108 = vrcp.pop %v1107
      %v1109 = vmul.f32 %v1104, %v1108
      %v1111 = vsel %vm919, %v1109, 0
      %1113 = vmatpush.msra.mxu0 0.0
      %1114 = vmatpush.msra.mxu0 0.0
      %1115 = vmatpush.msra.mxu0 0.0
      %1116 = vmatpush.msra.mxu0 0.0
      %1117 = vmatpush.msra.mxu0 0.0
      %1118 = vmatpush.msra.mxu0 0.0
      %1119 = vmatpush.msra.mxu0 0.0
      %1120 = vmatpush.msra.mxu0 0.0
      %1121 = vmatpush.msra.mxu0 0.0
      %1122 = vmatpush.msra.mxu0 0.0
      %1123 = vmatpush.msra.mxu0 0.0
      %1124 = vmatpush.msra.mxu0 0.0
      %1125 = vmatpush.msra.mxu0 0.0
      %1126 = vmatpush.msra.mxu0 0.0
      %1127 = vmatpush.msra.mxu0 0.0
      %1128 = vmatpush.msra.mxu0 %v1070
      %1129 = vmatmul.f32.gmra.mxu0 %v1111
      %v1130 = vpop.f32.mrf.mxu0
      %v1131 = vadd.f32 0.0, %v1130
      %1132 = vdwg.mxu0
      %v1133 = vld [vmem:[%s6 + $0x8] sm:$0xff]
      %v1135 = vsel %vm919, %v1131, 0
      %1137 = vmatpush.msra.mxu0 0.0
      %1138 = vmatpush.msra.mxu0 0.0
      %1139 = vmatpush.msra.mxu0 0.0
      %1140 = vmatpush.msra.mxu0 0.0
      %1141 = vmatpush.msra.mxu0 0.0
      %1142 = vmatpush.msra.mxu0 0.0
      %1143 = vmatpush.msra.mxu0 0.0
      %1144 = vmatpush.msra.mxu0 0.0
      %1145 = vmatpush.msra.mxu0 0.0
      %1146 = vmatpush.msra.mxu0 0.0
      %1147 = vmatpush.msra.mxu0 0.0
      %1148 = vmatpush.msra.mxu0 0.0
      %1149 = vmatpush.msra.mxu0 0.0
      %1150 = vmatpush.msra.mxu0 0.0
      %1151 = vmatpush.msra.mxu0 0.0
      %1152 = vmatpush.msra.mxu0 %v1133
      %1153 = vmatmul.f32.gmra.mxu0 %v1135
      %v1154 = vpop.f32.mrf.mxu0
      %v1155 = vadd.f32 0.0, %v1154
      %1156 = vdwg.mxu0
      %v1158 = vsel %vm919, %v979, 0
      %1160 = vmatpush.msra.mxu0 0.0
      %1161 = vmatpush.msra.mxu0 0.0
      %1162 = vmatpush.msra.mxu0 0.0
      %1163 = vmatpush.msra.mxu0 0.0
      %1164 = vmatpush.msra.mxu0 0.0
      %1165 = vmatpush.msra.mxu0 0.0
      %1166 = vmatpush.msra.mxu0 0.0
      %1167 = vmatpush.msra.mxu0 0.0
      %1168 = vmatpush.msra.mxu0 0.0
      %1169 = vmatpush.msra.mxu0 0.0
      %1170 = vmatpush.msra.mxu0 0.0
      %1171 = vmatpush.msra.mxu0 0.0
      %1172 = vmatpush.msra.mxu0 0.0
      %1173 = vmatpush.msra.mxu0 0.0
      %1174 = vmatpush.msra.mxu0 0.0
      %1175 = vmatpush.msra.mxu0 %v981
      %1176 = vmatmul.f32.gmra.mxu0 %v1158
      %v1177 = vpop.f32.mrf.mxu0
      %v1178 = vadd.f32 %v1155, %v1177
      %1179 = vdwg.mxu0
      %s1180 = scalar_lea.vmem %s4, 16
      %v1181 = vld [vmem:[%s1180] sm:$0xff]
      %s1182 = scalar_lea.vmem %s5, 2
      %v1183 = vld [vmem:[%s1182] sm:$0x1]
      %v1185 = vperm.slane %v1183, 0
      %v1188 = vsel %vm832, %v1181, 0
      %1190 = vmatpush.xpose.msra.mxu0 0.0
      %1191 = vmatpush.xpose.msra.mxu0 0.0
      %1192 = vmatpush.xpose.msra.mxu0 0.0
      %1193 = vmatpush.xpose.msra.mxu0 0.0
      %1194 = vmatpush.xpose.msra.mxu0 0.0
      %1195 = vmatpush.xpose.msra.mxu0 0.0
      %1196 = vmatpush.xpose.msra.mxu0 0.0
      %1197 = vmatpush.xpose.msra.mxu0 0.0
      %1198 = vmatpush.xpose.msra.mxu0 0.0
      %1199 = vmatpush.xpose.msra.mxu0 0.0
      %1200 = vmatpush.xpose.msra.mxu0 0.0
      %1201 = vmatpush.xpose.msra.mxu0 0.0
      %1202 = vmatpush.xpose.msra.mxu0 0.0
      %1203 = vmatpush.xpose.msra.mxu0 0.0
      %1204 = vmatpush.xpose.msra.mxu0 0.0
      %1205 = vmatpush.xpose.msra.mxu0 %v1188
      %1206 = vmatmul.f32.gmra.mxu0 %v834
      %v1207 = vpop.f32.mrf.mxu0
      %v1208 = vadd.f32 %v1185, %v1207
      %1209 = vdwg.mxu0
      %s1210 = scalar_lea.vmem %s4, 48
      %v1211 = vld [vmem:[%s1210] sm:$0xff]
      %s1212 = scalar_lea.vmem %s5, 6
      %v1213 = vld [vmem:[%s1212] sm:$0x1]
      %v1215 = vperm.slane %v1213, 0
      %v1218 = vsel %vm832, %v1211, 0
      %1220 = vmatpush.xpose.msra.mxu0 0.0
      %1221 = vmatpush.xpose.msra.mxu0 0.0
      %1222 = vmatpush.xpose.msra.mxu0 0.0
      %1223 = vmatpush.xpose.msra.mxu0 0.0
      %1224 = vmatpush.xpose.msra.mxu0 0.0
      %1225 = vmatpush.xpose.msra.mxu0 0.0
      %1226 = vmatpush.xpose.msra.mxu0 0.0
      %1227 = vmatpush.xpose.msra.mxu0 0.0
      %1228 = vmatpush.xpose.msra.mxu0 0.0
      %1229 = vmatpush.xpose.msra.mxu0 0.0
      %1230 = vmatpush.xpose.msra.mxu0 0.0
      %1231 = vmatpush.xpose.msra.mxu0 0.0
      %1232 = vmatpush.xpose.msra.mxu0 0.0
      %1233 = vmatpush.xpose.msra.mxu0 0.0
      %1234 = vmatpush.xpose.msra.mxu0 0.0
      %1235 = vmatpush.xpose.msra.mxu0 %v1218
      %1236 = vmatmul.f32.gmra.mxu0 %v834
      %v1237 = vpop.f32.mrf.mxu0
      %v1238 = vadd.f32 %v1215, %v1237
      %1239 = vdwg.mxu0
      %s1240 = scalar_lea.vmem %s4, 80
      %v1241 = vld [vmem:[%s1240] sm:$0xff]
      %s1242 = scalar_lea.vmem %s5, 10
      %v1243 = vld [vmem:[%s1242] sm:$0x1]
      %v1245 = vperm.slane %v1243, 0
      %v1248 = vsel %vm832, %v1241, 0
      %1250 = vmatpush.xpose.msra.mxu0 0.0
      %1251 = vmatpush.xpose.msra.mxu0 0.0
      %1252 = vmatpush.xpose.msra.mxu0 0.0
      %1253 = vmatpush.xpose.msra.mxu0 0.0
      %1254 = vmatpush.xpose.msra.mxu0 0.0
      %1255 = vmatpush.xpose.msra.mxu0 0.0
      %1256 = vmatpush.xpose.msra.mxu0 0.0
      %1257 = vmatpush.xpose.msra.mxu0 0.0
      %1258 = vmatpush.xpose.msra.mxu0 0.0
      %1259 = vmatpush.xpose.msra.mxu0 0.0
      %1260 = vmatpush.xpose.msra.mxu0 0.0
      %1261 = vmatpush.xpose.msra.mxu0 0.0
      %1262 = vmatpush.xpose.msra.mxu0 0.0
      %1263 = vmatpush.xpose.msra.mxu0 0.0
      %1264 = vmatpush.xpose.msra.mxu0 0.0
      %1265 = vmatpush.xpose.msra.mxu0 %v1248
      %1266 = vmatmul.f32.gmra.mxu0 %v834
      %v1267 = vpop.f32.mrf.mxu0
      %v1268 = vadd.f32 %v1245, %v1267
      %1269 = vdwg.mxu0
      %v1271 = vsel %vm919, %v1208, 0
      %v1274 = vsel %vm919, %v1238, 0
      %1276 = vmatpush.xpose.msra.mxu0 0.0
      %1277 = vmatpush.xpose.msra.mxu0 0.0
      %1278 = vmatpush.xpose.msra.mxu0 0.0
      %1279 = vmatpush.xpose.msra.mxu0 0.0
      %1280 = vmatpush.xpose.msra.mxu0 0.0
      %1281 = vmatpush.xpose.msra.mxu0 0.0
      %1282 = vmatpush.xpose.msra.mxu0 0.0
      %1283 = vmatpush.xpose.msra.mxu0 0.0
      %1284 = vmatpush.xpose.msra.mxu0 0.0
      %1285 = vmatpush.xpose.msra.mxu0 0.0
      %1286 = vmatpush.xpose.msra.mxu0 0.0
      %1287 = vmatpush.xpose.msra.mxu0 0.0
      %1288 = vmatpush.xpose.msra.mxu0 0.0
      %1289 = vmatpush.xpose.msra.mxu0 0.0
      %1290 = vmatpush.xpose.msra.mxu0 0.0
      %1291 = vmatpush.xpose.msra.mxu0 %v1274
      %1292 = vmatmul.f32.gmra.mxu0 %v1271
      %v1293 = vpop.f32.mrf.mxu0
      %v1294 = vadd.f32 0.0, %v1293
      %1295 = vdwg.mxu0
      %v1296 = vmul.f32 %v1294, 0.35355338
      %v1297 = vsel %vm919, %v1296, -inf
      %1298 = vmax.xlane.f32.xlu0 %v1297
      %v1299 = vpop.xlane.xlu0 %1298
      %v1300 = vsub.f32 %v1296, %v1299
      %v1301 = vmul.f32 %v1300, 1.442695
      %v1302 = vpow.pop %v1301
      %v1303 = vsel %vm919, %v1302, 0.0
      %1304 = vadd.xlane.f32.xlu0 %v1303
      %v1305 = vpop.xlane.xlu0 %1304
      %v1306 = vrcp.pop %v1305
      %v1307 = vmul.f32 %v1302, %v1306
      %v1309 = vsel %vm919, %v1307, 0
      %1311 = vmatpush.msra.mxu0 0.0
      %1312 = vmatpush.msra.mxu0 0.0
      %1313 = vmatpush.msra.mxu0 0.0
      %1314 = vmatpush.msra.mxu0 0.0
      %1315 = vmatpush.msra.mxu0 0.0
      %1316 = vmatpush.msra.mxu0 0.0
      %1317 = vmatpush.msra.mxu0 0.0
      %1318 = vmatpush.msra.mxu0 0.0
      %1319 = vmatpush.msra.mxu0 0.0
      %1320 = vmatpush.msra.mxu0 0.0
      %1321 = vmatpush.msra.mxu0 0.0
      %1322 = vmatpush.msra.mxu0 0.0
      %1323 = vmatpush.msra.mxu0 0.0
      %1324 = vmatpush.msra.mxu0 0.0
      %1325 = vmatpush.msra.mxu0 0.0
      %1326 = vmatpush.msra.mxu0 %v1268
      %1327 = vmatmul.f32.gmra.mxu0 %v1309
      %v1328 = vpop.f32.mrf.mxu0
      %v1329 = vadd.f32 0.0, %v1328
      %1330 = vdwg.mxu0
      %v1331 = vld [vmem:[%s6 + $0x10] sm:$0xff]
      %v1333 = vsel %vm919, %v1329, 0
      %1335 = vmatpush.msra.mxu0 0.0
      %1336 = vmatpush.msra.mxu0 0.0
      %1337 = vmatpush.msra.mxu0 0.0
      %1338 = vmatpush.msra.mxu0 0.0
      %1339 = vmatpush.msra.mxu0 0.0
      %1340 = vmatpush.msra.mxu0 0.0
      %1341 = vmatpush.msra.mxu0 0.0
      %1342 = vmatpush.msra.mxu0 0.0
      %1343 = vmatpush.msra.mxu0 0.0
      %1344 = vmatpush.msra.mxu0 0.0
      %1345 = vmatpush.msra.mxu0 0.0
      %1346 = vmatpush.msra.mxu0 0.0
      %1347 = vmatpush.msra.mxu0 0.0
      %1348 = vmatpush.msra.mxu0 0.0
      %1349 = vmatpush.msra.mxu0 0.0
      %1350 = vmatpush.msra.mxu0 %v1331
      %1351 = vmatmul.f32.gmra.mxu0 %v1333
      %v1352 = vpop.f32.mrf.mxu0
      %v1353 = vadd.f32 0.0, %v1352
      %1354 = vdwg.mxu0
      %v1355 = vadd.f32 %v1178, %v1353
      %s1356 = scalar_lea.vmem %s4, 24
      %v1357 = vld [vmem:[%s1356] sm:$0xff]
      %s1358 = scalar_lea.vmem %s5, 3
      %v1359 = vld [vmem:[%s1358] sm:$0x1]
      %v1361 = vperm.slane %v1359, 0
      %v1364 = vsel %vm832, %v1357, 0
      %1366 = vmatpush.xpose.msra.mxu0 0.0
      %1367 = vmatpush.xpose.msra.mxu0 0.0
      %1368 = vmatpush.xpose.msra.mxu0 0.0
      %1369 = vmatpush.xpose.msra.mxu0 0.0
      %1370 = vmatpush.xpose.msra.mxu0 0.0
      %1371 = vmatpush.xpose.msra.mxu0 0.0
      %1372 = vmatpush.xpose.msra.mxu0 0.0
      %1373 = vmatpush.xpose.msra.mxu0 0.0
      %1374 = vmatpush.xpose.msra.mxu0 0.0
      %1375 = vmatpush.xpose.msra.mxu0 0.0
      %1376 = vmatpush.xpose.msra.mxu0 0.0
      %1377 = vmatpush.xpose.msra.mxu0 0.0
      %1378 = vmatpush.xpose.msra.mxu0 0.0
      %1379 = vmatpush.xpose.msra.mxu0 0.0
      %1380 = vmatpush.xpose.msra.mxu0 0.0
      %1381 = vmatpush.xpose.msra.mxu0 %v1364
      %1382 = vmatmul.f32.gmra.mxu0 %v834
      %v1383 = vpop.f32.mrf.mxu0
      %v1384 = vadd.f32 %v1361, %v1383
      %1385 = vdwg.mxu0
      %s1386 = scalar_lea.vmem %s4, 56
      %v1387 = vld [vmem:[%s1386] sm:$0xff]
      %s1388 = scalar_lea.vmem %s5, 7
      %v1389 = vld [vmem:[%s1388] sm:$0x1]
      %v1391 = vperm.slane %v1389, 0
      %v1394 = vsel %vm832, %v1387, 0
      %1396 = vmatpush.xpose.msra.mxu0 0.0
      %1397 = vmatpush.xpose.msra.mxu0 0.0
      %1398 = vmatpush.xpose.msra.mxu0 0.0
      %1399 = vmatpush.xpose.msra.mxu0 0.0
      %1400 = vmatpush.xpose.msra.mxu0 0.0
      %1401 = vmatpush.xpose.msra.mxu0 0.0
      %1402 = vmatpush.xpose.msra.mxu0 0.0
      %1403 = vmatpush.xpose.msra.mxu0 0.0
      %1404 = vmatpush.xpose.msra.mxu0 0.0
      %1405 = vmatpush.xpose.msra.mxu0 0.0
      %1406 = vmatpush.xpose.msra.mxu0 0.0
      %1407 = vmatpush.xpose.msra.mxu0 0.0
      %1408 = vmatpush.xpose.msra.mxu0 0.0
      %1409 = vmatpush.xpose.msra.mxu0 0.0
      %1410 = vmatpush.xpose.msra.mxu0 0.0
      %1411 = vmatpush.xpose.msra.mxu0 %v1394
      %1412 = vmatmul.f32.gmra.mxu0 %v834
      %v1413 = vpop.f32.mrf.mxu0
      %v1414 = vadd.f32 %v1391, %v1413
      %1415 = vdwg.mxu0
      %s1416 = scalar_lea.vmem %s4, 88
      %v1417 = vld [vmem:[%s1416] sm:$0xff]
      %s1418 = scalar_lea.vmem %s5, 11
      %v1419 = vld [vmem:[%s1418] sm:$0x1]
      %v1421 = vperm.slane %v1419, 0
      %v1424 = vsel %vm832, %v1417, 0
      %1426 = vmatpush.xpose.msra.mxu0 0.0
      %1427 = vmatpush.xpose.msra.mxu0 0.0
      %1428 = vmatpush.xpose.msra.mxu0 0.0
      %1429 = vmatpush.xpose.msra.mxu0 0.0
      %1430 = vmatpush.xpose.msra.mxu0 0.0
      %1431 = vmatpush.xpose.msra.mxu0 0.0
      %1432 = vmatpush.xpose.msra.mxu0 0.0
      %1433 = vmatpush.xpose.msra.mxu0 0.0
      %1434 = vmatpush.xpose.msra.mxu0 0.0
      %1435 = vmatpush.xpose.msra.mxu0 0.0
      %1436 = vmatpush.xpose.msra.mxu0 0.0
      %1437 = vmatpush.xpose.msra.mxu0 0.0
      %1438 = vmatpush.xpose.msra.mxu0 0.0
      %1439 = vmatpush.xpose.msra.mxu0 0.0
      %1440 = vmatpush.xpose.msra.mxu0 0.0
      %1441 = vmatpush.xpose.msra.mxu0 %v1424
      %1442 = vmatmul.f32.gmra.mxu0 %v834
      %v1443 = vpop.f32.mrf.mxu0
      %v1444 = vadd.f32 %v1421, %v1443
      %1445 = vdwg.mxu0
      %v1447 = vsel %vm919, %v1384, 0
      %v1450 = vsel %vm919, %v1414, 0
      %1452 = vmatpush.xpose.msra.mxu0 0.0
      %1453 = vmatpush.xpose.msra.mxu0 0.0
      %1454 = vmatpush.xpose.msra.mxu0 0.0
      %1455 = vmatpush.xpose.msra.mxu0 0.0
      %1456 = vmatpush.xpose.msra.mxu0 0.0
      %1457 = vmatpush.xpose.msra.mxu0 0.0
      %1458 = vmatpush.xpose.msra.mxu0 0.0
      %1459 = vmatpush.xpose.msra.mxu0 0.0
      %1460 = vmatpush.xpose.msra.mxu0 0.0
      %1461 = vmatpush.xpose.msra.mxu0 0.0
      %1462 = vmatpush.xpose.msra.mxu0 0.0
      %1463 = vmatpush.xpose.msra.mxu0 0.0
      %1464 = vmatpush.xpose.msra.mxu0 0.0
      %1465 = vmatpush.xpose.msra.mxu0 0.0
      %1466 = vmatpush.xpose.msra.mxu0 0.0
      %1467 = vmatpush.xpose.msra.mxu0 %v1450
      %1468 = vmatmul.f32.gmra.mxu0 %v1447
      %v1469 = vpop.f32.mrf.mxu0
      %v1470 = vadd.f32 0.0, %v1469
      %1471 = vdwg.mxu0
      %v1472 = vmul.f32 %v1470, 0.35355338
      %v1473 = vsel %vm919, %v1472, -inf
      %1474 = vmax.xlane.f32.xlu0 %v1473
      %v1475 = vpop.xlane.xlu0 %1474
      %v1476 = vsub.f32 %v1472, %v1475
      %v1477 = vmul.f32 %v1476, 1.442695
      %v1478 = vpow.pop %v1477
      %v1479 = vsel %vm919, %v1478, 0.0
      %1480 = vadd.xlane.f32.xlu0 %v1479
      %v1481 = vpop.xlane.xlu0 %1480
      %v1482 = vrcp.pop %v1481
      %v1483 = vmul.f32 %v1478, %v1482
      %v1485 = vsel %vm919, %v1483, 0
      %1487 = vmatpush.msra.mxu0 0.0
      %1488 = vmatpush.msra.mxu0 0.0
      %1489 = vmatpush.msra.mxu0 0.0
      %1490 = vmatpush.msra.mxu0 0.0
      %1491 = vmatpush.msra.mxu0 0.0
      %1492 = vmatpush.msra.mxu0 0.0
      %1493 = vmatpush.msra.mxu0 0.0
      %1494 = vmatpush.msra.mxu0 0.0
      %1495 = vmatpush.msra.mxu0 0.0
      %1496 = vmatpush.msra.mxu0 0.0
      %1497 = vmatpush.msra.mxu0 0.0
      %1498 = vmatpush.msra.mxu0 0.0
      %1499 = vmatpush.msra.mxu0 0.0
      %1500 = vmatpush.msra.mxu0 0.0
      %1501 = vmatpush.msra.mxu0 0.0
      %1502 = vmatpush.msra.mxu0 %v1444
      %1503 = vmatmul.f32.gmra.mxu0 %v1485
      %v1504 = vpop.f32.mrf.mxu0
      %v1505 = vadd.f32 0.0, %v1504
      %1506 = vdwg.mxu0
      %v1507 = vld [vmem:[%s6 + $0x18] sm:$0xff]
      %v1509 = vsel %vm919, %v1505, 0
      %1511 = vmatpush.msra.mxu0 0.0
      %1512 = vmatpush.msra.mxu0 0.0
      %1513 = vmatpush.msra.mxu0 0.0
      %1514 = vmatpush.msra.mxu0 0.0
      %1515 = vmatpush.msra.mxu0 0.0
      %1516 = vmatpush.msra.mxu0 0.0
      %1517 = vmatpush.msra.mxu0 0.0
      %1518 = vmatpush.msra.mxu0 0.0
      %1519 = vmatpush.msra.mxu0 0.0
      %1520 = vmatpush.msra.mxu0 0.0
      %1521 = vmatpush.msra.mxu0 0.0
      %1522 = vmatpush.msra.mxu0 0.0
      %1523 = vmatpush.msra.mxu0 0.0
      %1524 = vmatpush.msra.mxu0 0.0
      %1525 = vmatpush.msra.mxu0 0.0
      %1526 = vmatpush.msra.mxu0 %v1507
      %1527 = vmatmul.f32.gmra.mxu0 %v1509
      %v1528 = vpop.f32.mrf.mxu0
      %v1529 = vadd.f32 0.0, %v1528
      %1530 = vdwg.mxu0
      %v1531 = vadd.f32 %v1355, %v1529
      %v1532 = vld [vmem:[%s6 + $0x20] sm:$0x1]
      %v1533 = vperm.slane %v1532, 0
      %v1534 = vadd.f32 %v1531, %v1533
      %v1535 = vadd.f32 %v826, %v1534
      %v1536 = vsel %vm832, %v1535, 0.0
      %1537 = vadd.xlane.f32.xlu0 %v1536
      %v1538 = vpop.xlane.xlu0 %1537
      %v1539 = vrcp.pop 32.0
      %v1540 = vmul.f32 32.0, %v1539
      %v1541 = vsub.f32 1.0, %v1540
      %v1542 = vmul.f32 %v1539, %v1541
      %v1543 = vadd.f32 %v1539, %v1542
      %vm1544 = vweird.f32 %v1539
      %v1545 = vsel %vm1544, %v1539, %v1543
      %v1546 = vmul.f32 %v1538, %v1545
      %v1547 = vsub.f32 %v1535, %v1546
      %v1548 = vmul.f32 %v1547, %v1547
      %v1549 = vsel %vm832, %v1548, 0.0
      %1550 = vadd.xlane.f32.xlu0 %v1549
      %v1551 = vpop.xlane.xlu0 %1550
      %v1552 = vmul.f32 %v1551, %v1545
      %v1553 = vadd.f32 %v1552, 1e-05
      %v1554 = vrsqrt.pop %v1553
      %v1555 = vmul.f32 %v1554, %v1553
      %v1556 = vmul.f32 %v1555, %v1554
      %v1557 = vmul.f32 0.5, %v1556
      %v1558 = vsub.f32 1.5, %v1557
      %v1559 = vmul.f32 %v1554, %v1558
      %vm1560 = vweird.f32 %v1553
      %vm1561 = vweird.f32 %v1554
      %vm1562 = vmor %vm1560, %vm1561
      %v1563 = vsel %vm1562, %v1554, %v1559
      %v1564 = vmul.f32 %v1547, %v1563
      %v1565 = vld [vmem:[%s7] sm:$0x1]
      %v1566 = vperm.slane %v1565, 0
      %v1567 = vmul.f32 %v1564, %v1566
      %v1568 = vld [vmem:[%s7 + $0x1] sm:$0x1]
      %v1569 = vperm.slane %v1568, 0
      %v1570 = vadd.f32 %v1567, %v1569
      %v1571 = vld [vmem:[%s8] sm:$0xff]
      %v1572 = vld [vmem:[%s8 + $0x8] sm:$0xff]
      %v1573 = vld [vmem:[%s8 + $0x10] sm:$0xff]
      %v1574 = vld [vmem:[%s8 + $0x18] sm:$0xff]
      %v1575 = vld [vmem:[%s8 + $0x20] sm:$0x1]
      %v1576 = vperm.slane %v1575, 0
      %v1578 = vsel %vm832, %v1570, 0
      %1580 = vmatpush.msra.mxu0 0.0
      %1581 = vmatpush.msra.mxu0 0.0
      %1582 = vmatpush.msra.mxu0 0.0
      %1583 = vmatpush.msra.mxu0 0.0
      %1584 = vmatpush.msra.mxu0 0.0
      %1585 = vmatpush.msra.mxu0 0.0
      %1586 = vmatpush.msra.mxu0 0.0
      %1587 = vmatpush.msra.mxu0 0.0
      %1588 = vmatpush.msra.mxu0 0.0
      %1589 = vmatpush.msra.mxu0 0.0
      %1590 = vmatpush.msra.mxu0 0.0
      %1591 = vmatpush.msra.mxu0 0.0
      %1592 = vmatpush.msra.mxu0 %v1574
      %1593 = vmatpush.msra.mxu0 %v1573
      %1594 = vmatpush.msra.mxu0 %v1572
      %1595 = vmatpush.msra.mxu0 %v1571
      %1596 = vmatmul.f32.gmra.mxu0 %v1578
      %v1597 = vpop.f32.mrf.mxu0
      %v1598 = vadd.f32 %v1576, %v1597
      %1599 = vdwg.mxu0
      %v1600 = vmax.f32 %v1598, 0.0
      %v1601 = vld [vmem:[%s9] sm:$0xff]
      %v1602 = vld [vmem:[%s9 + $0x8] sm:$0x1]
      %v1603 = vperm.slane %v1602, 0
      %v1605 = vsel %vm919, %v1600, 0
      %1607 = vmatpush.msra.mxu0 0.0
      %1608 = vmatpush.msra.mxu0 0.0
      %1609 = vmatpush.msra.mxu0 0.0
      %1610 = vmatpush.msra.mxu0 0.0
      %1611 = vmatpush.msra.mxu0 0.0
      %1612 = vmatpush.msra.mxu0 0.0
      %1613 = vmatpush.msra.mxu0 0.0
      %1614 = vmatpush.msra.mxu0 0.0
      %1615 = vmatpush.msra.mxu0 0.0
      %1616 = vmatpush.msra.mxu0 0.0
      %1617 = vmatpush.msra.mxu0 0.0
      %1618 = vmatpush.msra.mxu0 0.0
      %1619 = vmatpush.msra.mxu0 0.0
      %1620 = vmatpush.msra.mxu0 0.0
      %1621 = vmatpush.msra.mxu0 0.0
      %1622 = vmatpush.msra.mxu0 %v1601
      %1623 = vmatmul.f32.gmra.mxu0 %v1605
      %v1624 = vpop.f32.mrf.mxu0
      %v1625 = vadd.f32 %v1603, %v1624
      %1626 = vdwg.mxu0
      %v1627 = vadd.f32 %v1570, %v1625
      %v1628 = vsel %vm832, %v1627, 0.0
      %1629 = vadd.xlane.f32.xlu0 %v1628
      %v1630 = vpop.xlane.xlu0 %1629
      %v1631 = vmul.f32 %v1630, %v1545
      %v1632 = vsub.f32 %v1627, %v1631
      %v1633 = vmul.f32 %v1632, %v1632
      %v1634 = vsel %vm832, %v1633, 0.0
      %1635 = vadd.xlane.f32.xlu0 %v1634
      %v1636 = vpop.xlane.xlu0 %1635
      %v1637 = vmul.f32 %v1636, %v1545
      %v1638 = vadd.f32 %v1637, 1e-05
      %v1639 = vrsqrt.pop %v1638
      %v1640 = vmul.f32 %v1639, %v1638
      %v1641 = vmul.f32 %v1640, %v1639
      %v1642 = vmul.f32 0.5, %v1641
      %v1643 = vsub.f32 1.5, %v1642
      %v1644 = vmul.f32 %v1639, %v1643
      %vm1645 = vweird.f32 %v1638
      %vm1646 = vweird.f32 %v1639
      %vm1647 = vmor %vm1645, %vm1646
      %v1648 = vsel %vm1647, %v1639, %v1644
      %v1649 = vmul.f32 %v1632, %v1648
      %v1650 = vld [vmem:[%s10] sm:$0x1]
      %v1651 = vperm.slane %v1650, 0
      %v1652 = vmul.f32 %v1649, %v1651
      %v1653 = vld [vmem:[%s10 + $0x1] sm:$0x1]
      %v1654 = vperm.slane %v1653, 0
      %v1655 = vadd.f32 %v1652, %v1654
      %v1656 = vld [vmem:[%s3] sm:$0xff]
      %v1657 = vld [vmem:[%s3 + $0x8] sm:$0x1]
      %v1658 = vld [vmem:[%s11] sm:$0xff]
      %v1659 = vld [vmem:[%s12] sm:$0x1]
      %v1661 = vperm.slane %v1659, 0
      %v1664 = vsel %vm832, %v1656, 0
      %v1667 = vsel %vm832, %v1657, 0
      %v1670 = vsel %vm832, %v1658, 0
      %1672 = vmatpush.xpose.msra.mxu0 0.0
      %1673 = vmatpush.xpose.msra.mxu0 0.0
      %1674 = vmatpush.xpose.msra.mxu0 0.0
      %1675 = vmatpush.xpose.msra.mxu0 0.0
      %1676 = vmatpush.xpose.msra.mxu0 0.0
      %1677 = vmatpush.xpose.msra.mxu0 0.0
      %1678 = vmatpush.xpose.msra.mxu0 0.0
      %1679 = vmatpush.xpose.msra.mxu0 0.0
      %1680 = vmatpush.xpose.msra.mxu0 0.0
      %1681 = vmatpush.xpose.msra.mxu0 0.0
      %1682 = vmatpush.xpose.msra.mxu0 0.0
      %1683 = vmatpush.xpose.msra.mxu0 0.0
      %1684 = vmatpush.xpose.msra.mxu0 0.0
      %1685 = vmatpush.xpose.msra.mxu0 0.0
      %1686 = vmatpush.xpose.msra.mxu0 0.0
      %1687 = vmatpush.xpose.msra.mxu0 %v1670
      %1688 = vmatmul.f32.gmra.mxu0 %v1664
      %v1689 = vpop.f32.mrf.mxu0
      %v1690 = vadd.f32 %v1661, %v1689
      %1691 = vmatmul.f32.gmra.mxu0 %v1667
      %v1692 = vpop.f32.mrf.mxu0
      %v1693 = vadd.f32 %v1661, %v1692
      %1694 = vdwg.mxu0
      %s1695 = scalar_lea.vmem %s11, 32
      %v1696 = vld [vmem:[%s1695] sm:$0xff]
      %s1697 = scalar_lea.vmem %s12, 4
      %v1698 = vld [vmem:[%s1697] sm:$0x1]
      %v1700 = vperm.slane %v1698, 0
      %v1703 = vsel %vm832, %v1696, 0
      %1705 = vmatpush.xpose.msra.mxu0 0.0
      %1706 = vmatpush.xpose.msra.mxu0 0.0
      %1707 = vmatpush.xpose.msra.mxu0 0.0
      %1708 = vmatpush.xpose.msra.mxu0 0.0
      %1709 = vmatpush.xpose.msra.mxu0 0.0
      %1710 = vmatpush.xpose.msra.mxu0 0.0
      %1711 = vmatpush.xpose.msra.mxu0 0.0
      %1712 = vmatpush.xpose.msra.mxu0 0.0
      %1713 = vmatpush.xpose.msra.mxu0 0.0
      %1714 = vmatpush.xpose.msra.mxu0 0.0
      %1715 = vmatpush.xpose.msra.mxu0 0.0
      %1716 = vmatpush.xpose.msra.mxu0 0.0
      %1717 = vmatpush.xpose.msra.mxu0 0.0
      %1718 = vmatpush.xpose.msra.mxu0 0.0
      %1719 = vmatpush.xpose.msra.mxu0 0.0
      %1720 = vmatpush.xpose.msra.mxu0 %v1703
      %1721 = vmatmul.f32.gmra.mxu0 %v1664
      %v1722 = vpop.f32.mrf.mxu0
      %v1723 = vadd.f32 %v1700, %v1722
      %1724 = vmatmul.f32.gmra.mxu0 %v1667
      %v1725 = vpop.f32.mrf.mxu0
      %v1726 = vadd.f32 %v1700, %v1725
      %1727 = vdwg.mxu0
      %s1728 = scalar_lea.vmem %s11, 64
      %v1729 = vld [vmem:[%s1728] sm:$0xff]
      %s1730 = scalar_lea.vmem %s12, 8
      %v1731 = vld [vmem:[%s1730] sm:$0x1]
      %v1733 = vperm.slane %v1731, 0
      %v1736 = vsel %vm832, %v1729, 0
      %1738 = vmatpush.xpose.msra.mxu0 0.0
      %1739 = vmatpush.xpose.msra.mxu0 0.0
      %1740 = vmatpush.xpose.msra.mxu0 0.0
      %1741 = vmatpush.xpose.msra.mxu0 0.0
      %1742 = vmatpush.xpose.msra.mxu0 0.0
      %1743 = vmatpush.xpose.msra.mxu0 0.0
      %1744 = vmatpush.xpose.msra.mxu0 0.0
      %1745 = vmatpush.xpose.msra.mxu0 0.0
      %1746 = vmatpush.xpose.msra.mxu0 0.0
      %1747 = vmatpush.xpose.msra.mxu0 0.0
      %1748 = vmatpush.xpose.msra.mxu0 0.0
      %1749 = vmatpush.xpose.msra.mxu0 0.0
      %1750 = vmatpush.xpose.msra.mxu0 0.0
      %1751 = vmatpush.xpose.msra.mxu0 0.0
      %1752 = vmatpush.xpose.msra.mxu0 0.0
      %1753 = vmatpush.xpose.msra.mxu0 %v1736
      %1754 = vmatmul.f32.gmra.mxu0 %v1664
      %v1755 = vpop.f32.mrf.mxu0
      %v1756 = vadd.f32 %v1733, %v1755
      %1757 = vmatmul.f32.gmra.mxu0 %v1667
      %v1758 = vpop.f32.mrf.mxu0
      %v1759 = vadd.f32 %v1733, %v1758
      %1760 = vdwg.mxu0
      %v1762 = vsel %vm919, %v1690, 0
      %v1765 = vsel %vm919, %v1693, 0
      %v1768 = vsel %vm919, %v1723, 0
      %v1771 = vsel %vm919, %v1726, 0
      %1773 = vmatpush.xpose.msra.mxu0 0.0
      %1774 = vmatpush.xpose.msra.mxu0 0.0
      %1775 = vmatpush.xpose.msra.mxu0 0.0
      %1776 = vmatpush.xpose.msra.mxu0 0.0
      %1777 = vmatpush.xpose.msra.mxu0 0.0
      %1778 = vmatpush.xpose.msra.mxu0 0.0
      %1779 = vmatpush.xpose.msra.mxu0 0.0
      %1780 = vmatpush.xpose.msra.mxu0 0.0
      %1781 = vmatpush.xpose.msra.mxu0 0.0
      %1782 = vmatpush.xpose.msra.mxu0 0.0
      %1783 = vmatpush.xpose.msra.mxu0 0.0
      %1784 = vmatpush.xpose.msra.mxu0 0.0
      %1785 = vmatpush.xpose.msra.mxu0 0.0
      %1786 = vmatpush.xpose.msra.mxu0 0.0
      %1787 = vmatpush.xpose.msra.mxu0 %v1771
      %1788 = vmatpush.xpose.msra.mxu0 %v1768
      %1789 = vmatmul.f32.gmra.mxu0 %v1762
      %v1790 = vpop.f32.mrf.mxu0
      %v1791 = vadd.f32 0.0, %v1790
      %1792 = vmatmul.f32.gmra.mxu0 %v1765
      %v1793 = vpop.f32.mrf.mxu0
      %v1794 = vadd.f32 0.0, %v1793
      %1795 = vdwg.mxu0
      %v1796 = vmul.f32 %v1791, 0.35355338
      %v1797 = vmul.f32 %v1794, 0.35355338
      %vm1798 = vcmask 72704
      %v1799 = vsel %vm1798, %v1796, -inf
      %1800 = vmax.xlane.f32.xlu0 %v1799
      %v1801 = vpop.xlane.xlu0 %1800
      %vm1802 = vcmask 65536
      %v1803 = vsel %vm1802, %v1797, -inf
      %1804 = vmax.xlane.f32.xlu0 %v1803
      %v1805 = vpop.xlane.xlu0 %1804
      %v1806 = vsub.f32 %v1796, %v1801
      %v1807 = vsub.f32 %v1797, %v1805
      %v1808 = vmul.f32 %v1806, 1.442695
      %v1809 = vpow.pop %v1808
      %v1810 = vmul.f32 %v1807, 1.442695
      %v1811 = vpow.pop %v1810
      %v1812 = vsel %vm1798, %v1809, 0.0
      %1813 = vadd.xlane.f32.xlu0 %v1812
      %v1814 = vpop.xlane.xlu0 %1813
      %v1815 = vsel %vm1802, %v1811, 0.0
      %1816 = vadd.xlane.f32.xlu0 %v1815
      %v1817 = vpop.xlane.xlu0 %1816
      %v1818 = vrcp.pop %v1814
      %v1819 = vrcp.pop %v1817
      %v1820 = vmul.f32 %v1809, %v1818
      %v1821 = vmul.f32 %v1811, %v1819
      %v1823 = vsel %vm1798, %v1820, 0
      %v1826 = vsel %vm1798, %v1821, 0
      %vm1828 = vcmask 1040384
      %v1830 = vsel %vm1828, %v1759, 0
      %1832 = vmatpush.msra.mxu0 0.0
      %1833 = vmatpush.msra.mxu0 0.0
      %1834 = vmatpush.msra.mxu0 0.0
      %1835 = vmatpush.msra.mxu0 0.0
      %1836 = vmatpush.msra.mxu0 0.0
      %1837 = vmatpush.msra.mxu0 0.0
      %1838 = vmatpush.msra.mxu0 0.0
      %1839 = vmatpush.msra.mxu0 0.0
      %1840 = vmatpush.msra.mxu0 0.0
      %1841 = vmatpush.msra.mxu0 0.0
      %1842 = vmatpush.msra.mxu0 0.0
      %1843 = vmatpush.msra.mxu0 0.0
      %1844 = vmatpush.msra.mxu0 0.0
      %1845 = vmatpush.msra.mxu0 0.0
      %1846 = vmatpush.msra.mxu0 %v1830
      %1847 = vmatpush.msra.mxu0 %v1756
      %1848 = vmatmul.f32.gmra.mxu0 %v1823
      %v1849 = vpop.f32.mrf.mxu0
      %v1850 = vadd.f32 0.0, %v1849
      %1851 = vmatmul.f32.gmra.mxu0 %v1826
      %v1852 = vpop.f32.mrf.mxu0
      %v1853 = vadd.f32 0.0, %v1852
      %1854 = vdwg.mxu0
      %v1855 = vld [vmem:[%s13] sm:$0xff]
      %s1856 = scalar_lea.vmem %s11, 8
      %v1857 = vld [vmem:[%s1856] sm:$0xff]
      %s1858 = scalar_lea.vmem %s12, 1
      %v1859 = vld [vmem:[%s1858] sm:$0x1]
      %v1861 = vperm.slane %v1859, 0
      %v1864 = vsel %vm832, %v1857, 0
      %1866 = vmatpush.xpose.msra.mxu0 0.0
      %1867 = vmatpush.xpose.msra.mxu0 0.0
      %1868 = vmatpush.xpose.msra.mxu0 0.0
      %1869 = vmatpush.xpose.msra.mxu0 0.0
      %1870 = vmatpush.xpose.msra.mxu0 0.0
      %1871 = vmatpush.xpose.msra.mxu0 0.0
      %1872 = vmatpush.xpose.msra.mxu0 0.0
      %1873 = vmatpush.xpose.msra.mxu0 0.0
      %1874 = vmatpush.xpose.msra.mxu0 0.0
      %1875 = vmatpush.xpose.msra.mxu0 0.0
      %1876 = vmatpush.xpose.msra.mxu0 0.0
      %1877 = vmatpush.xpose.msra.mxu0 0.0
      %1878 = vmatpush.xpose.msra.mxu0 0.0
      %1879 = vmatpush.xpose.msra.mxu0 0.0
      %1880 = vmatpush.xpose.msra.mxu0 0.0
      %1881 = vmatpush.xpose.msra.mxu0 %v1864
      %1882 = vmatmul.f32.gmra.mxu0 %v1664
      %v1883 = vpop.f32.mrf.mxu0
      %v1884 = vadd.f32 %v1861, %v1883
      %1885 = vmatmul.f32.gmra.mxu0 %v1667
      %v1886 = vpop.f32.mrf.mxu0
      %v1887 = vadd.f32 %v1861, %v1886
      %1888 = vdwg.mxu0
      %s1889 = scalar_lea.vmem %s11, 40
      %v1890 = vld [vmem:[%s1889] sm:$0xff]
      %s1891 = scalar_lea.vmem %s12, 5
      %v1892 = vld [vmem:[%s1891] sm:$0x1]
      %v1894 = vperm.slane %v1892, 0
      %v1897 = vsel %vm832, %v1890, 0
      %1899 = vmatpush.xpose.msra.mxu0 0.0
      %1900 = vmatpush.xpose.msra.mxu0 0.0
      %1901 = vmatpush.xpose.msra.mxu0 0.0
      %1902 = vmatpush.xpose.msra.mxu0 0.0
      %1903 = vmatpush.xpose.msra.mxu0 0.0
      %1904 = vmatpush.xpose.msra.mxu0 0.0
      %1905 = vmatpush.xpose.msra.mxu0 0.0
      %1906 = vmatpush.xpose.msra.mxu0 0.0
      %1907 = vmatpush.xpose.msra.mxu0 0.0
      %1908 = vmatpush.xpose.msra.mxu0 0.0
      %1909 = vmatpush.xpose.msra.mxu0 0.0
      %1910 = vmatpush.xpose.msra.mxu0 0.0
      %1911 = vmatpush.xpose.msra.mxu0 0.0
      %1912 = vmatpush.xpose.msra.mxu0 0.0
      %1913 = vmatpush.xpose.msra.mxu0 0.0
      %1914 = vmatpush.xpose.msra.mxu0 %v1897
      %1915 = vmatmul.f32.gmra.mxu0 %v1664
      %v1916 = vpop.f32.mrf.mxu0
      %v1917 = vadd.f32 %v1894, %v1916
      %1918 = vmatmul.f32.gmra.mxu0 %v1667
      %v1919 = vpop.f32.mrf.mxu0
      %v1920 = vadd.f32 %v1894, %v1919
      %1921 = vdwg.mxu0
      %s1922 = scalar_lea.vmem %s11, 72
      %v1923 = vld [vmem:[%s1922] sm:$0xff]
      %s1924 = scalar_lea.vmem %s12, 9
      %v1925 = vld [vmem:[%s1924] sm:$0x1]
      %v1927 = vperm.slane %v1925, 0
      %v1930 = vsel %vm832, %v1923, 0
      %1932 = vmatpush.xpose.msra.mxu0 0.0
      %1933 = vmatpush.xpose.msra.mxu0 0.0
      %1934 = vmatpush.xpose.msra.mxu0 0.0
      %1935 = vmatpush.xpose.msra.mxu0 0.0
      %1936 = vmatpush.xpose.msra.mxu0 0.0
      %1937 = vmatpush.xpose.msra.mxu0 0.0
      %1938 = vmatpush.xpose.msra.mxu0 0.0
      %1939 = vmatpush.xpose.msra.mxu0 0.0
      %1940 = vmatpush.xpose.msra.mxu0 0.0
      %1941 = vmatpush.xpose.msra.mxu0 0.0
      %1942 = vmatpush.xpose.msra.mxu0 0.0
      %1943 = vmatpush.xpose.msra.mxu0 0.0
      %1944 = vmatpush.xpose.msra.mxu0 0.0
      %1945 = vmatpush.xpose.msra.mxu0 0.0
      %1946 = vmatpush.xpose.msra.mxu0 0.0
      %1947 = vmatpush.xpose.msra.mxu0 %v1930
      %1948 = vmatmul.f32.gmra.mxu0 %v1664
      %v1949 = vpop.f32.mrf.mxu0
      %v1950 = vadd.f32 %v1927, %v1949
      %1951 = vmatmul.f32.gmra.mxu0 %v1667
      %v1952 = vpop.f32.mrf.mxu0
      %v1953 = vadd.f32 %v1927, %v1952
      %1954 = vdwg.mxu0
      %v1956 = vsel %vm919, %v1884, 0
      %v1959 = vsel %vm919, %v1887, 0
      %v1962 = vsel %vm919, %v1917, 0
      %v1965 = vsel %vm919, %v1920, 0
      %1967 = vmatpush.xpose.msra.mxu0 0.0
      %1968 = vmatpush.xpose.msra.mxu0 0.0
      %1969 = vmatpush.xpose.msra.mxu0 0.0
      %1970 = vmatpush.xpose.msra.mxu0 0.0
      %1971 = vmatpush.xpose.msra.mxu0 0.0
      %1972 = vmatpush.xpose.msra.mxu0 0.0
      %1973 = vmatpush.xpose.msra.mxu0 0.0
      %1974 = vmatpush.xpose.msra.mxu0 0.0
      %1975 = vmatpush.xpose.msra.mxu0 0.0
      %1976 = vmatpush.xpose.msra.mxu0 0.0
      %1977 = vmatpush.xpose.msra.mxu0 0.0
      %1978 = vmatpush.xpose.msra.mxu0 0.0
      %1979 = vmatpush.xpose.msra.mxu0 0.0
      %1980 = vmatpush.xpose.msra.mxu0 0.0
      %1981 = vmatpush.xpose.msra.mxu0 %v1965
      %1982 = vmatpush.xpose.msra.mxu0 %v1962
      %1983 = vmatmul.f32.gmra.mxu0 %v1956
      %v1984 = vpop.f32.mrf.mxu0
      %v1985 = vadd.f32 0.0, %v1984
      %1986 = vmatmul.f32.gmra.mxu0 %v1959
      %v1987 = vpop.f32.mrf.mxu0
      %v1988 = vadd.f32 0.0, %v1987
      %1989 = vdwg.mxu0
      %v1990 = vmul.f32 %v1985, 0.35355338
      %v1991 = vmul.f32 %v1988, 0.35355338
      %v1992 = vsel %vm1798, %v1990, -inf
      %1993 = vmax.xlane.f32.xlu0 %v1992
      %v1994 = vpop.xlane.xlu0 %1993
      %v1995 = vsel %vm1802, %v1991, -inf
      %1996 = vmax.xlane.f32.xlu0 %v1995
      %v1997 = vpop.xlane.xlu0 %1996
      %v1998 = vsub.f32 %v1990, %v1994
      %v1999 = vsub.f32 %v1991, %v1997
      %v2000 = vmul.f32 %v1998, 1.442695
      %v2001 = vpow.pop %v2000
      %v2002 = vmul.f32 %v1999, 1.442695
      %v2003 = vpow.pop %v2002
      %v2004 = vsel %vm1798, %v2001, 0.0
      %2005 = vadd.xlane.f32.xlu0 %v2004
      %v2006 = vpop.xlane.xlu0 %2005
      %v2007 = vsel %vm1802, %v2003, 0.0
      %2008 = vadd.xlane.f32.xlu0 %v2007
      %v2009 = vpop.xlane.xlu0 %2008
      %v2010 = vrcp.pop %v2006
      %v2011 = vrcp.pop %v2009
      %v2012 = vmul.f32 %v2001, %v2010
      %v2013 = vmul.f32 %v2003, %v2011
      %v2015 = vsel %vm1798, %v2012, 0
      %v2018 = vsel %vm1798, %v2013, 0
      %v2021 = vsel %vm1828, %v1953, 0
      %2023 = vmatpush.msra.mxu0 0.0
      %2024 = vmatpush.msra.mxu0 0.0
      %2025 = vmatpush.msra.mxu0 0.0
      %2026 = vmatpush.msra.mxu0 0.0
      %2027 = vmatpush.msra.mxu0 0.0
      %2028 = vmatpush.msra.mxu0 0.0
      %2029 = vmatpush.msra.mxu0 0.0
      %2030 = vmatpush.msra.mxu0 0.0
      %2031 = vmatpush.msra.mxu0 0.0
      %2032 = vmatpush.msra.mxu0 0.0
      %2033 = vmatpush.msra.mxu0 0.0
      %2034 = vmatpush.msra.mxu0 0.0
      %2035 = vmatpush.msra.mxu0 0.0
      %2036 = vmatpush.msra.mxu0 0.0
      %2037 = vmatpush.msra.mxu0 %v2021
      %2038 = vmatpush.msra.mxu0 %v1950
      %2039 = vmatmul.f32.gmra.mxu0 %v2015
      %v2040 = vpop.f32.mrf.mxu0
      %v2041 = vadd.f32 0.0, %v2040
      %2042 = vmatmul.f32.gmra.mxu0 %v2018
      %v2043 = vpop.f32.mrf.mxu0
      %v2044 = vadd.f32 0.0, %v2043
      %2045 = vdwg.mxu0
      %v2046 = vld [vmem:[%s13 + $0x8] sm:$0xff]
      %v2048 = vsel %vm919, %v2041, 0
      %v2051 = vsel %vm919, %v2044, 0
      %2053 = vmatpush.msra.mxu0 0.0
      %2054 = vmatpush.msra.mxu0 0.0
      %2055 = vmatpush.msra.mxu0 0.0
      %2056 = vmatpush.msra.mxu0 0.0
      %2057 = vmatpush.msra.mxu0 0.0
      %2058 = vmatpush.msra.mxu0 0.0
      %2059 = vmatpush.msra.mxu0 0.0
      %2060 = vmatpush.msra.mxu0 0.0
      %2061 = vmatpush.msra.mxu0 0.0
      %2062 = vmatpush.msra.mxu0 0.0
      %2063 = vmatpush.msra.mxu0 0.0
      %2064 = vmatpush.msra.mxu0 0.0
      %2065 = vmatpush.msra.mxu0 0.0
      %2066 = vmatpush.msra.mxu0 0.0
      %2067 = vmatpush.msra.mxu0 0.0
      %2068 = vmatpush.msra.mxu0 %v2046
      %2069 = vmatmul.f32.gmra.mxu0 %v2048
      %v2070 = vpop.f32.mrf.mxu0
      %v2071 = vadd.f32 0.0, %v2070
      %2072 = vmatmul.f32.gmra.mxu0 %v2051
      %v2073 = vpop.f32.mrf.mxu0
      %v2074 = vadd.f32 0.0, %v2073
      %2075 = vdwg.mxu0
      %v2077 = vsel %vm919, %v1850, 0
      %v2080 = vsel %vm919, %v1853, 0
      %2082 = vmatpush.msra.mxu0 0.0
      %2083 = vmatpush.msra.mxu0 0.0
      %2084 = vmatpush.msra.mxu0 0.0
      %2085 = vmatpush.msra.mxu0 0.0
      %2086 = vmatpush.msra.mxu0 0.0
      %2087 = vmatpush.msra.mxu0 0.0
      %2088 = vmatpush.msra.mxu0 0.0
      %2089 = vmatpush.msra.mxu0 0.0
      %2090 = vmatpush.msra.mxu0 0.0
      %2091 = vmatpush.msra.mxu0 0.0
      %2092 = vmatpush.msra.mxu0 0.0
      %2093 = vmatpush.msra.mxu0 0.0
      %2094 = vmatpush.msra.mxu0 0.0
      %2095 = vmatpush.msra.mxu0 0.0
      %2096 = vmatpush.msra.mxu0 0.0
      %2097 = vmatpush.msra.mxu0 %v1855
      %2098 = vmatmul.f32.gmra.mxu0 %v2077
      %v2099 = vpop.f32.mrf.mxu0
      %v2100 = vadd.f32 %v2071, %v2099
      %2101 = vmatmul.f32.gmra.mxu0 %v2080
      %v2102 = vpop.f32.mrf.mxu0
      %v2103 = vadd.f32 %v2074, %v2102
      %2104 = vdwg.mxu0
      %s2105 = scalar_lea.vmem %s11, 16
      %v2106 = vld [vmem:[%s2105] sm:$0xff]
      %s2107 = scalar_lea.vmem %s12, 2
      %v2108 = vld [vmem:[%s2107] sm:$0x1]
      %v2110 = vperm.slane %v2108, 0
      %v2113 = vsel %vm832, %v2106, 0
      %2115 = vmatpush.xpose.msra.mxu0 0.0
      %2116 = vmatpush.xpose.msra.mxu0 0.0
      %2117 = vmatpush.xpose.msra.mxu0 0.0
      %2118 = vmatpush.xpose.msra.mxu0 0.0
      %2119 = vmatpush.xpose.msra.mxu0 0.0
      %2120 = vmatpush.xpose.msra.mxu0 0.0
      %2121 = vmatpush.xpose.msra.mxu0 0.0
      %2122 = vmatpush.xpose.msra.mxu0 0.0
      %2123 = vmatpush.xpose.msra.mxu0 0.0
      %2124 = vmatpush.xpose.msra.mxu0 0.0
      %2125 = vmatpush.xpose.msra.mxu0 0.0
      %2126 = vmatpush.xpose.msra.mxu0 0.0
      %2127 = vmatpush.xpose.msra.mxu0 0.0
      %2128 = vmatpush.xpose.msra.mxu0 0.0
      %2129 = vmatpush.xpose.msra.mxu0 0.0
      %2130 = vmatpush.xpose.msra.mxu0 %v2113
      %2131 = vmatmul.f32.gmra.mxu0 %v1664
      %v2132 = vpop.f32.mrf.mxu0
      %v2133 = vadd.f32 %v2110, %v2132
      %2134 = vmatmul.f32.gmra.mxu0 %v1667
      %v2135 = vpop.f32.mrf.mxu0
      %v2136 = vadd.f32 %v2110, %v2135
      %2137 = vdwg.mxu0
      %s2138 = scalar_lea.vmem %s11, 48
      %v2139 = vld [vmem:[%s2138] sm:$0xff]
      %s2140 = scalar_lea.vmem %s12, 6
      %v2141 = vld [vmem:[%s2140] sm:$0x1]
      %v2143 = vperm.slane %v2141, 0
      %v2146 = vsel %vm832, %v2139, 0
      %2148 = vmatpush.xpose.msra.mxu0 0.0
      %2149 = vmatpush.xpose.msra.mxu0 0.0
      %2150 = vmatpush.xpose.msra.mxu0 0.0
      %2151 = vmatpush.xpose.msra.mxu0 0.0
      %2152 = vmatpush.xpose.msra.mxu0 0.0
      %2153 = vmatpush.xpose.msra.mxu0 0.0
      %2154 = vmatpush.xpose.msra.mxu0 0.0
      %2155 = vmatpush.xpose.msra.mxu0 0.0
      %2156 = vmatpush.xpose.msra.mxu0 0.0
      %2157 = vmatpush.xpose.msra.mxu0 0.0
      %2158 = vmatpush.xpose.msra.mxu0 0.0
      %2159 = vmatpush.xpose.msra.mxu0 0.0
      %2160 = vmatpush.xpose.msra.mxu0 0.0
      %2161 = vmatpush.xpose.msra.mxu0 0.0
      %2162 = vmatpush.xpose.msra.mxu0 0.0
      %2163 = vmatpush.xpose.msra.mxu0 %v2146
      %2164 = vmatmul.f32.gmra.mxu0 %v1664
      %v2165 = vpop.f32.mrf.mxu0
      %v2166 = vadd.f32 %v2143, %v2165
      %2167 = vmatmul.f32.gmra.mxu0 %v1667
      %v2168 = vpop.f32.mrf.mxu0
      %v2169 = vadd.f32 %v2143, %v2168
      %2170 = vdwg.mxu0
      %s2171 = scalar_lea.vmem %s11, 80
      %v2172 = vld [vmem:[%s2171] sm:$0xff]
      %s2173 = scalar_lea.vmem %s12, 10
      %v2174 = vld [vmem:[%s2173] sm:$0x1]
      %v2176 = vperm.slane %v2174, 0
      %v2179 = vsel %vm832, %v2172, 0
      %2181 = vmatpush.xpose.msra.mxu0 0.0
      %2182 = vmatpush.xpose.msra.mxu0 0.0
      %2183 = vmatpush.xpose.msra.mxu0 0.0
      %2184 = vmatpush.xpose.msra.mxu0 0.0
      %2185 = vmatpush.xpose.msra.mxu0 0.0
      %2186 = vmatpush.xpose.msra.mxu0 0.0
      %2187 = vmatpush.xpose.msra.mxu0 0.0
      %2188 = vmatpush.xpose.msra.mxu0 0.0
      %2189 = vmatpush.xpose.msra.mxu0 0.0
      %2190 = vmatpush.xpose.msra.mxu0 0.0
      %2191 = vmatpush.xpose.msra.mxu0 0.0
      %2192 = vmatpush.xpose.msra.mxu0 0.0
      %2193 = vmatpush.xpose.msra.mxu0 0.0
      %2194 = vmatpush.xpose.msra.mxu0 0.0
      %2195 = vmatpush.xpose.msra.mxu0 0.0
      %2196 = vmatpush.xpose.msra.mxu0 %v2179
      %2197 = vmatmul.f32.gmra.mxu0 %v1664
      %v2198 = vpop.f32.mrf.mxu0
      %v2199 = vadd.f32 %v2176, %v2198
      %2200 = vmatmul.f32.gmra.mxu0 %v1667
      %v2201 = vpop.f32.mrf.mxu0
      %v2202 = vadd.f32 %v2176, %v2201
      %2203 = vdwg.mxu0
      %v2205 = vsel %vm919, %v2133, 0
      %v2208 = vsel %vm919, %v2136, 0
      %v2211 = vsel %vm919, %v2166, 0
      %v2214 = vsel %vm919, %v2169, 0
      %2216 = vmatpush.xpose.msra.mxu0 0.0
      %2217 = vmatpush.xpose.msra.mxu0 0.0
      %2218 = vmatpush.xpose.msra.mxu0 0.0
      %2219 = vmatpush.xpose.msra.mxu0 0.0
      %2220 = vmatpush.xpose.msra.mxu0 0.0
      %2221 = vmatpush.xpose.msra.mxu0 0.0
      %2222 = vmatpush.xpose.msra.mxu0 0.0
      %2223 = vmatpush.xpose.msra.mxu0 0.0
      %2224 = vmatpush.xpose.msra.mxu0 0.0
      %2225 = vmatpush.xpose.msra.mxu0 0.0
      %2226 = vmatpush.xpose.msra.mxu0 0.0
      %2227 = vmatpush.xpose.msra.mxu0 0.0
      %2228 = vmatpush.xpose.msra.mxu0 0.0
      %2229 = vmatpush.xpose.msra.mxu0 0.0
      %2230 = vmatpush.xpose.msra.mxu0 %v2214
      %2231 = vmatpush.xpose.msra.mxu0 %v2211
      %2232 = vmatmul.f32.gmra.mxu0 %v2205
      %v2233 = vpop.f32.mrf.mxu0
      %v2234 = vadd.f32 0.0, %v2233
      %2235 = vmatmul.f32.gmra.mxu0 %v2208
      %v2236 = vpop.f32.mrf.mxu0
      %v2237 = vadd.f32 0.0, %v2236
      %2238 = vdwg.mxu0
      %v2239 = vmul.f32 %v2234, 0.35355338
      %v2240 = vmul.f32 %v2237, 0.35355338
      %v2241 = vsel %vm1798, %v2239, -inf
      %2242 = vmax.xlane.f32.xlu0 %v2241
      %v2243 = vpop.xlane.xlu0 %2242
      %v2244 = vsel %vm1802, %v2240, -inf
      %2245 = vmax.xlane.f32.xlu0 %v2244
      %v2246 = vpop.xlane.xlu0 %2245
      %v2247 = vsub.f32 %v2239, %v2243
      %v2248 = vsub.f32 %v2240, %v2246
      %v2249 = vmul.f32 %v2247, 1.442695
      %v2250 = vpow.pop %v2249
      %v2251 = vmul.f32 %v2248, 1.442695
      %v2252 = vpow.pop %v2251
      %v2253 = vsel %vm1798, %v2250, 0.0
      %2254 = vadd.xlane.f32.xlu0 %v2253
      %v2255 = vpop.xlane.xlu0 %2254
      %v2256 = vsel %vm1802, %v2252, 0.0
      %2257 = vadd.xlane.f32.xlu0 %v2256
      %v2258 = vpop.xlane.xlu0 %2257
      %v2259 = vrcp.pop %v2255
      %v2260 = vrcp.pop %v2258
      %v2261 = vmul.f32 %v2250, %v2259
      %v2262 = vmul.f32 %v2252, %v2260
      %v2264 = vsel %vm1798, %v2261, 0
      %v2267 = vsel %vm1798, %v2262, 0
      %v2270 = vsel %vm1828, %v2202, 0
      %2272 = vmatpush.msra.mxu0 0.0
      %2273 = vmatpush.msra.mxu0 0.0
      %2274 = vmatpush.msra.mxu0 0.0
      %2275 = vmatpush.msra.mxu0 0.0
      %2276 = vmatpush.msra.mxu0 0.0
      %2277 = vmatpush.msra.mxu0 0.0
      %2278 = vmatpush.msra.mxu0 0.0
      %2279 = vmatpush.msra.mxu0 0.0
      %2280 = vmatpush.msra.mxu0 0.0
      %2281 = vmatpush.msra.mxu0 0.0
      %2282 = vmatpush.msra.mxu0 0.0
      %2283 = vmatpush.msra.mxu0 0.0
      %2284 = vmatpush.msra.mxu0 0.0
      %2285 = vmatpush.msra.mxu0 0.0
      %2286 = vmatpush.msra.mxu0 %v2270
      %2287 = vmatpush.msra.mxu0 %v2199
      %2288 = vmatmul.f32.gmra.mxu0 %v2264
      %v2289 = vpop.f32.mrf.mxu0
      %v2290 = vadd.f32 0.0, %v2289
      %2291 = vmatmul.f32.gmra.mxu0 %v2267
      %v2292 = vpop.f32.mrf.mxu0
      %v2293 = vadd.f32 0.0, %v2292
      %2294 = vdwg.mxu0
      %v2295 = vld [vmem:[%s13 + $0x10] sm:$0xff]
      %v2297 = vsel %vm919, %v2290, 0
      %v2300 = vsel %vm919, %v2293, 0
      %2302 = vmatpush.msra.mxu0 0.0
      %2303 = vmatpush.msra.mxu0 0.0
      %2304 = vmatpush.msra.mxu0 0.0
      %2305 = vmatpush.msra.mxu0 0.0
      %2306 = vmatpush.msra.mxu0 0.0
      %2307 = vmatpush.msra.mxu0 0.0
      %2308 = vmatpush.msra.mxu0 0.0
      %2309 = vmatpush.msra.mxu0 0.0
      %2310 = vmatpush.msra.mxu0 0.0
      %2311 = vmatpush.msra.mxu0 0.0
      %2312 = vmatpush.msra.mxu0 0.0
      %2313 = vmatpush.msra.mxu0 0.0
      %2314 = vmatpush.msra.mxu0 0.0
      %2315 = vmatpush.msra.mxu0 0.0
      %2316 = vmatpush.msra.mxu0 0.0
      %2317 = vmatpush.msra.mxu0 %v2295
      %2318 = vmatmul.f32.gmra.mxu0 %v2297
      %v2319 = vpop.f32.mrf.mxu0
      %v2320 = vadd.f32 0.0, %v2319
      %2321 = vmatmul.f32.gmra.mxu0 %v2300
      %v2322 = vpop.f32.mrf.mxu0
      %v2323 = vadd.f32 0.0, %v2322
      %2324 = vdwg.mxu0
      %v2325 = vadd.f32 %v2100, %v2320
      %v2326 = vadd.f32 %v2103, %v2323
      %s2327 = scalar_lea.vmem %s11, 24
      %v2328 = vld [vmem:[%s2327] sm:$0xff]
      %s2329 = scalar_lea.vmem %s12, 3
      %v2330 = vld [vmem:[%s2329] sm:$0x1]
      %v2332 = vperm.slane %v2330, 0
      %v2335 = vsel %vm832, %v2328, 0
      %2337 = vmatpush.xpose.msra.mxu0 0.0
      %2338 = vmatpush.xpose.msra.mxu0 0.0
      %2339 = vmatpush.xpose.msra.mxu0 0.0
      %2340 = vmatpush.xpose.msra.mxu0 0.0
      %2341 = vmatpush.xpose.msra.mxu0 0.0
      %2342 = vmatpush.xpose.msra.mxu0 0.0
      %2343 = vmatpush.xpose.msra.mxu0 0.0
      %2344 = vmatpush.xpose.msra.mxu0 0.0
      %2345 = vmatpush.xpose.msra.mxu0 0.0
      %2346 = vmatpush.xpose.msra.mxu0 0.0
      %2347 = vmatpush.xpose.msra.mxu0 0.0
      %2348 = vmatpush.xpose.msra.mxu0 0.0
      %2349 = vmatpush.xpose.msra.mxu0 0.0
      %2350 = vmatpush.xpose.msra.mxu0 0.0
      %2351 = vmatpush.xpose.msra.mxu0 0.0
      %2352 = vmatpush.xpose.msra.mxu0 %v2335
      %2353 = vmatmul.f32.gmra.mxu0 %v1664
      %v2354 = vpop.f32.mrf.mxu0
      %v2355 = vadd.f32 %v2332, %v2354
      %2356 = vmatmul.f32.gmra.mxu0 %v1667
      %v2357 = vpop.f32.mrf.mxu0
      %v2358 = vadd.f32 %v2332, %v2357
      %2359 = vdwg.mxu0
      %s2360 = scalar_lea.vmem %s11, 56
      %v2361 = vld [vmem:[%s2360] sm:$0xff]
      %s2362 = scalar_lea.vmem %s12, 7
      %v2363 = vld [vmem:[%s2362] sm:$0x1]
      %v2365 = vperm.slane %v2363, 0
      %v2368 = vsel %vm832, %v2361, 0
      %2370 = vmatpush.xpose.msra.mxu0 0.0
      %2371 = vmatpush.xpose.msra.mxu0 0.0
      %2372 = vmatpush.xpose.msra.mxu0 0.0
      %2373 = vmatpush.xpose.msra.mxu0 0.0
      %2374 = vmatpush.xpose.msra.mxu0 0.0
      %2375 = vmatpush.xpose.msra.mxu0 0.0
      %2376 = vmatpush.xpose.msra.mxu0 0.0
      %2377 = vmatpush.xpose.msra.mxu0 0.0
      %2378 = vmatpush.xpose.msra.mxu0 0.0
      %2379 = vmatpush.xpose.msra.mxu0 0.0
      %2380 = vmatpush.xpose.msra.mxu0 0.0
      %2381 = vmatpush.xpose.msra.mxu0 0.0
      %2382 = vmatpush.xpose.msra.mxu0 0.0
      %2383 = vmatpush.xpose.msra.mxu0 0.0
      %2384 = vmatpush.xpose.msra.mxu0 0.0
      %2385 = vmatpush.xpose.msra.mxu0 %v2368
      %2386 = vmatmul.f32.gmra.mxu0 %v1664
      %v2387 = vpop.f32.mrf.mxu0
      %v2388 = vadd.f32 %v2365, %v2387
      %2389 = vmatmul.f32.gmra.mxu0 %v1667
      %v2390 = vpop.f32.mrf.mxu0
      %v2391 = vadd.f32 %v2365, %v2390
      %2392 = vdwg.mxu0
      %s2393 = scalar_lea.vmem %s11, 88
      %v2394 = vld [vmem:[%s2393] sm:$0xff]
      %s2395 = scalar_lea.vmem %s12, 11
      %v2396 = vld [vmem:[%s2395] sm:$0x1]
      %v2398 = vperm.slane %v2396, 0
      %v2401 = vsel %vm832, %v2394, 0
      %2403 = vmatpush.xpose.msra.mxu0 0.0
      %2404 = vmatpush.xpose.msra.mxu0 0.0
      %2405 = vmatpush.xpose.msra.mxu0 0.0
      %2406 = vmatpush.xpose.msra.mxu0 0.0
      %2407 = vmatpush.xpose.msra.mxu0 0.0
      %2408 = vmatpush.xpose.msra.mxu0 0.0
      %2409 = vmatpush.xpose.msra.mxu0 0.0
      %2410 = vmatpush.xpose.msra.mxu0 0.0
      %2411 = vmatpush.xpose.msra.mxu0 0.0
      %2412 = vmatpush.xpose.msra.mxu0 0.0
      %2413 = vmatpush.xpose.msra.mxu0 0.0
      %2414 = vmatpush.xpose.msra.mxu0 0.0
      %2415 = vmatpush.xpose.msra.mxu0 0.0
      %2416 = vmatpush.xpose.msra.mxu0 0.0
      %2417 = vmatpush.xpose.msra.mxu0 0.0
      %2418 = vmatpush.xpose.msra.mxu0 %v2401
      %2419 = vmatmul.f32.gmra.mxu0 %v1664
      %v2420 = vpop.f32.mrf.mxu0
      %v2421 = vadd.f32 %v2398, %v2420
      %2422 = vmatmul.f32.gmra.mxu0 %v1667
      %v2423 = vpop.f32.mrf.mxu0
      %v2424 = vadd.f32 %v2398, %v2423
      %2425 = vdwg.mxu0
      %v2427 = vsel %vm919, %v2355, 0
      %v2430 = vsel %vm919, %v2358, 0
      %v2433 = vsel %vm919, %v2388, 0
      %v2436 = vsel %vm919, %v2391, 0
      %2438 = vmatpush.xpose.msra.mxu0 0.0
      %2439 = vmatpush.xpose.msra.mxu0 0.0
      %2440 = vmatpush.xpose.msra.mxu0 0.0
      %2441 = vmatpush.xpose.msra.mxu0 0.0
      %2442 = vmatpush.xpose.msra.mxu0 0.0
      %2443 = vmatpush.xpose.msra.mxu0 0.0
      %2444 = vmatpush.xpose.msra.mxu0 0.0
      %2445 = vmatpush.xpose.msra.mxu0 0.0
      %2446 = vmatpush.xpose.msra.mxu0 0.0
      %2447 = vmatpush.xpose.msra.mxu0 0.0
      %2448 = vmatpush.xpose.msra.mxu0 0.0
      %2449 = vmatpush.xpose.msra.mxu0 0.0
      %2450 = vmatpush.xpose.msra.mxu0 0.0
      %2451 = vmatpush.xpose.msra.mxu0 0.0
      %2452 = vmatpush.xpose.msra.mxu0 %v2436
      %2453 = vmatpush.xpose.msra.mxu0 %v2433
      %2454 = vmatmul.f32.gmra.mxu0 %v2427
      %v2455 = vpop.f32.mrf.mxu0
      %v2456 = vadd.f32 0.0, %v2455
      %2457 = vmatmul.f32.gmra.mxu0 %v2430
      %v2458 = vpop.f32.mrf.mxu0
      %v2459 = vadd.f32 0.0, %v2458
      %2460 = vdwg.mxu0
      %v2461 = vmul.f32 %v2456, 0.35355338
      %v2462 = vmul.f32 %v2459, 0.35355338
      %v2463 = vsel %vm1798, %v2461, -inf
      %2464 = vmax.xlane.f32.xlu0 %v2463
      %v2465 = vpop.xlane.xlu0 %2464
      %v2466 = vsel %vm1802, %v2462, -inf
      %2467 = vmax.xlane.f32.xlu0 %v2466
      %v2468 = vpop.xlane.xlu0 %2467
      %v2469 = vsub.f32 %v2461, %v2465
      %v2470 = vsub.f32 %v2462, %v2468
      %v2471 = vmul.f32 %v2469, 1.442695
      %v2472 = vpow.pop %v2471
      %v2473 = vmul.f32 %v2470, 1.442695
      %v2474 = vpow.pop %v2473
      %v2475 = vsel %vm1798, %v2472, 0.0
      %2476 = vadd.xlane.f32.xlu0 %v2475
      %v2477 = vpop.xlane.xlu0 %2476
      %v2478 = vsel %vm1802, %v2474, 0.0
      %2479 = vadd.xlane.f32.xlu0 %v2478
      %v2480 = vpop.xlane.xlu0 %2479
      %v2481 = vrcp.pop %v2477
      %v2482 = vrcp.pop %v2480
      %v2483 = vmul.f32 %v2472, %v2481
      %v2484 = vmul.f32 %v2474, %v2482
      %v2486 = vsel %vm1798, %v2483, 0
      %v2489 = vsel %vm1798, %v2484, 0
      %v2492 = vsel %vm1828, %v2424, 0
      %2494 = vmatpush.msra.mxu0 0.0
      %2495 = vmatpush.msra.mxu0 0.0
      %2496 = vmatpush.msra.mxu0 0.0
      %2497 = vmatpush.msra.mxu0 0.0
      %2498 = vmatpush.msra.mxu0 0.0
      %2499 = vmatpush.msra.mxu0 0.0
      %2500 = vmatpush.msra.mxu0 0.0
      %2501 = vmatpush.msra.mxu0 0.0
      %2502 = vmatpush.msra.mxu0 0.0
      %2503 = vmatpush.msra.mxu0 0.0
      %2504 = vmatpush.msra.mxu0 0.0
      %2505 = vmatpush.msra.mxu0 0.0
      %2506 = vmatpush.msra.mxu0 0.0
      %2507 = vmatpush.msra.mxu0 0.0
      %2508 = vmatpush.msra.mxu0 %v2492
      %2509 = vmatpush.msra.mxu0 %v2421
      %2510 = vmatmul.f32.gmra.mxu0 %v2486
      %v2511 = vpop.f32.mrf.mxu0
      %v2512 = vadd.f32 0.0, %v2511
      %2513 = vmatmul.f32.gmra.mxu0 %v2489
      %v2514 = vpop.f32.mrf.mxu0
      %v2515 = vadd.f32 0.0, %v2514
      %2516 = vdwg.mxu0
      %v2517 = vld [vmem:[%s13 + $0x18] sm:$0xff]
      %v2519 = vsel %vm919, %v2512, 0
      %v2522 = vsel %vm919, %v2515, 0
      %2524 = vmatpush.msra.mxu0 0.0
      %2525 = vmatpush.msra.mxu0 0.0
      %2526 = vmatpush.msra.mxu0 0.0
      %2527 = vmatpush.msra.mxu0 0.0
      %2528 = vmatpush.msra.mxu0 0.0
      %2529 = vmatpush.msra.mxu0 0.0
      %2530 = vmatpush.msra.mxu0 0.0
      %2531 = vmatpush.msra.mxu0 0.0
      %2532 = vmatpush.msra.mxu0 0.0
      %2533 = vmatpush.msra.mxu0 0.0
      %2534 = vmatpush.msra.mxu0 0.0
      %2535 = vmatpush.msra.mxu0 0.0
      %2536 = vmatpush.msra.mxu0 0.0
      %2537 = vmatpush.msra.mxu0 0.0
      %2538 = vmatpush.msra.mxu0 0.0
      %2539 = vmatpush.msra.mxu0 %v2517
      %2540 = vmatmul.f32.gmra.mxu0 %v2519
      %v2541 = vpop.f32.mrf.mxu0
      %v2542 = vadd.f32 0.0, %v2541
      %2543 = vmatmul.f32.gmra.mxu0 %v2522
      %v2544 = vpop.f32.mrf.mxu0
      %v2545 = vadd.f32 0.0, %v2544
      %2546 = vdwg.mxu0
      %v2547 = vadd.f32 %v2325, %v2542
      %v2548 = vadd.f32 %v2326, %v2545
      %v2549 = vld [vmem:[%s13 + $0x20] sm:$0x1]
      %v2550 = vperm.slane %v2549, 0
      %v2551 = vadd.f32 %v2547, %v2550
      %v2552 = vadd.f32 %v2548, %v2550
      %v2553 = vadd.f32 %v1656, %v2551
      %v2554 = vadd.f32 %v1657, %v2552
      %v2555 = vsel %vm832, %v2553, 0.0
      %2556 = vadd.xlane.f32.xlu0 %v2555
      %v2557 = vpop.xlane.xlu0 %2556
      %vm2558 = vcmask 253952
      %v2559 = vsel %vm2558, %v2554, 0.0
      %2560 = vadd.xlane.f32.xlu0 %v2559
      %v2561 = vpop.xlane.xlu0 %2560
      %v2562 = vmul.f32 %v2557, %v1545
      %v2563 = vmul.f32 %v2561, %v1545
      %v2564 = vsub.f32 %v2553, %v2562
      %v2565 = vsub.f32 %v2554, %v2563
      %v2566 = vmul.f32 %v2564, %v2564
      %v2567 = vmul.f32 %v2565, %v2565
      %v2568 = vsel %vm832, %v2566, 0.0
      %2569 = vadd.xlane.f32.xlu0 %v2568
      %v2570 = vpop.xlane.xlu0 %2569
      %v2571 = vsel %vm2558, %v2567, 0.0
      %2572 = vadd.xlane.f32.xlu0 %v2571
      %v2573 = vpop.xlane.xlu0 %2572
      %v2574 = vmul.f32 %v2570, %v1545
      %v2575 = vmul.f32 %v2573, %v1545
      %v2576 = vadd.f32 %v2574, 1e-05
      %v2577 = vadd.f32 %v2575, 1e-05
      %v2578 = vrsqrt.pop %v2576
      %v2579 = vmul.f32 %v2578, %v2576
      %v2580 = vmul.f32 %v2579, %v2578
      %v2581 = vmul.f32 0.5, %v2580
      %v2582 = vsub.f32 1.5, %v2581
      %v2583 = vmul.f32 %v2578, %v2582
      %vm2584 = vweird.f32 %v2576
      %vm2585 = vweird.f32 %v2578
      %vm2586 = vmor %vm2584, %vm2585
      %v2587 = vsel %vm2586, %v2578, %v2583
      %v2588 = vrsqrt.pop %v2577
      %v2589 = vmul.f32 %v2588, %v2577
      %v2590 = vmul.f32 %v2589, %v2588
      %v2591 = vmul.f32 0.5, %v2590
      %v2592 = vsub.f32 1.5, %v2591
      %v2593 = vmul.f32 %v2588, %v2592
      %vm2594 = vweird.f32 %v2577
      %vm2595 = vweird.f32 %v2588
      %vm2596 = vmor %vm2594, %vm2595
      %v2597 = vsel %vm2596, %v2588, %v2593
      %v2598 = vmul.f32 %v2564, %v2587
      %v2599 = vmul.f32 %v2565, %v2597
      %v2600 = vld [vmem:[%s14] sm:$0x1]
      %v2601 = vperm.slane %v2600, 0
      %v2602 = vmul.f32 %v2598, %v2601
      %v2603 = vmul.f32 %v2599, %v2601
      %v2604 = vld [vmem:[%s14 + $0x1] sm:$0x1]
      %v2605 = vperm.slane %v2604, 0
      %v2606 = vadd.f32 %v2602, %v2605
      %v2607 = vadd.f32 %v2603, %v2605
      %v2608 = vld [vmem:[%s15] sm:$0xff]
      %v2609 = vld [vmem:[%s16] sm:$0x1]
      %v2611 = vperm.slane %v2609, 0
      %v2614 = vsel %vm832, %v2606, 0
      %v2617 = vsel %vm832, %v2607, 0
      %v2620 = vsel %vm832, %v2608, 0
      %2622 = vmatpush.xpose.msra.mxu0 0.0
      %2623 = vmatpush.xpose.msra.mxu0 0.0
      %2624 = vmatpush.xpose.msra.mxu0 0.0
      %2625 = vmatpush.xpose.msra.mxu0 0.0
      %2626 = vmatpush.xpose.msra.mxu0 0.0
      %2627 = vmatpush.xpose.msra.mxu0 0.0
      %2628 = vmatpush.xpose.msra.mxu0 0.0
      %2629 = vmatpush.xpose.msra.mxu0 0.0
      %2630 = vmatpush.xpose.msra.mxu0 0.0
      %2631 = vmatpush.xpose.msra.mxu0 0.0
      %2632 = vmatpush.xpose.msra.mxu0 0.0
      %2633 = vmatpush.xpose.msra.mxu0 0.0
      %2634 = vmatpush.xpose.msra.mxu0 0.0
      %2635 = vmatpush.xpose.msra.mxu0 0.0
      %2636 = vmatpush.xpose.msra.mxu0 0.0
      %2637 = vmatpush.xpose.msra.mxu0 %v2620
      %2638 = vmatmul.f32.gmra.mxu0 %v2614
      %v2639 = vpop.f32.mrf.mxu0
      %v2640 = vadd.f32 %v2611, %v2639
      %2641 = vmatmul.f32.gmra.mxu0 %v2617
      %v2642 = vpop.f32.mrf.mxu0
      %v2643 = vadd.f32 %v2611, %v2642
      %2644 = vdwg.mxu0
      %s2645 = scalar_lea.vmem %s15, 32
      %v2646 = vld [vmem:[%s2645] sm:$0xff]
      %s2647 = scalar_lea.vmem %s16, 4
      %v2648 = vld [vmem:[%s2647] sm:$0x1]
      %v2650 = vperm.slane %v2648, 0
      %v2653 = vsel %vm832, %v1655, 0
      %v2656 = vsel %vm832, %v2646, 0
      %2658 = vmatpush.xpose.msra.mxu0 0.0
      %2659 = vmatpush.xpose.msra.mxu0 0.0
      %2660 = vmatpush.xpose.msra.mxu0 0.0
      %2661 = vmatpush.xpose.msra.mxu0 0.0
      %2662 = vmatpush.xpose.msra.mxu0 0.0
      %2663 = vmatpush.xpose.msra.mxu0 0.0
      %2664 = vmatpush.xpose.msra.mxu0 0.0
      %2665 = vmatpush.xpose.msra.mxu0 0.0
      %2666 = vmatpush.xpose.msra.mxu0 0.0
      %2667 = vmatpush.xpose.msra.mxu0 0.0
      %2668 = vmatpush.xpose.msra.mxu0 0.0
      %2669 = vmatpush.xpose.msra.mxu0 0.0
      %2670 = vmatpush.xpose.msra.mxu0 0.0
      %2671 = vmatpush.xpose.msra.mxu0 0.0
      %2672 = vmatpush.xpose.msra.mxu0 0.0
      %2673 = vmatpush.xpose.msra.mxu0 %v2656
      %2674 = vmatmul.f32.gmra.mxu0 %v2653
      %v2675 = vpop.f32.mrf.mxu0
      %v2676 = vadd.f32 %v2650, %v2675
      %2677 = vdwg.mxu0
      %s2678 = scalar_lea.vmem %s15, 64
      %v2679 = vld [vmem:[%s2678] sm:$0xff]
      %s2680 = scalar_lea.vmem %s16, 8
      %v2681 = vld [vmem:[%s2680] sm:$0x1]
      %v2683 = vperm.slane %v2681, 0
      %v2686 = vsel %vm832, %v2679, 0
      %2688 = vmatpush.xpose.msra.mxu0 0.0
      %2689 = vmatpush.xpose.msra.mxu0 0.0
      %2690 = vmatpush.xpose.msra.mxu0 0.0
      %2691 = vmatpush.xpose.msra.mxu0 0.0
      %2692 = vmatpush.xpose.msra.mxu0 0.0
      %2693 = vmatpush.xpose.msra.mxu0 0.0
      %2694 = vmatpush.xpose.msra.mxu0 0.0
      %2695 = vmatpush.xpose.msra.mxu0 0.0
      %2696 = vmatpush.xpose.msra.mxu0 0.0
      %2697 = vmatpush.xpose.msra.mxu0 0.0
      %2698 = vmatpush.xpose.msra.mxu0 0.0
      %2699 = vmatpush.xpose.msra.mxu0 0.0
      %2700 = vmatpush.xpose.msra.mxu0 0.0
      %2701 = vmatpush.xpose.msra.mxu0 0.0
      %2702 = vmatpush.xpose.msra.mxu0 0.0
      %2703 = vmatpush.xpose.msra.mxu0 %v2686
      %2704 = vmatmul.f32.gmra.mxu0 %v2653
      %v2705 = vpop.f32.mrf.mxu0
      %v2706 = vadd.f32 %v2683, %v2705
      %2707 = vdwg.mxu0
      %v2709 = vsel %vm919, %v2640, 0
      %v2712 = vsel %vm919, %v2643, 0
      %v2715 = vsel %vm919, %v2676, 0
      %2717 = vmatpush.xpose.msra.mxu0 0.0
      %2718 = vmatpush.xpose.msra.mxu0 0.0
      %2719 = vmatpush.xpose.msra.mxu0 0.0
      %2720 = vmatpush.xpose.msra.mxu0 0.0
      %2721 = vmatpush.xpose.msra.mxu0 0.0
      %2722 = vmatpush.xpose.msra.mxu0 0.0
      %2723 = vmatpush.xpose.msra.mxu0 0.0
      %2724 = vmatpush.xpose.msra.mxu0 0.0
      %2725 = vmatpush.xpose.msra.mxu0 0.0
      %2726 = vmatpush.xpose.msra.mxu0 0.0
      %2727 = vmatpush.xpose.msra.mxu0 0.0
      %2728 = vmatpush.xpose.msra.mxu0 0.0
      %2729 = vmatpush.xpose.msra.mxu0 0.0
      %2730 = vmatpush.xpose.msra.mxu0 0.0
      %2731 = vmatpush.xpose.msra.mxu0 0.0
      %2732 = vmatpush.xpose.msra.mxu0 %v2715
      %2733 = vmatmul.f32.gmra.mxu0 %v2709
      %v2734 = vpop.f32.mrf.mxu0
      %v2735 = vadd.f32 0.0, %v2734
      %2736 = vmatmul.f32.gmra.mxu0 %v2712
      %v2737 = vpop.f32.mrf.mxu0
      %v2738 = vadd.f32 0.0, %v2737
      %2739 = vdwg.mxu0
      %v2740 = vmul.f32 %v2735, 0.35355338
      %v2741 = vmul.f32 %v2738, 0.35355338
      %v2742 = vsel %vm919, %v2740, -inf
      %2743 = vmax.xlane.f32.xlu0 %v2742
      %v2744 = vpop.xlane.xlu0 %2743
      %vm2745 = vcmask 57344
      %v2746 = vsel %vm2745, %v2741, -inf
      %2747 = vmax.xlane.f32.xlu0 %v2746
      %v2748 = vpop.xlane.xlu0 %2747
      %v2749 = vsub.f32 %v2740, %v2744
      %v2750 = vsub.f32 %v2741, %v2748
      %v2751 = vmul.f32 %v2749, 1.442695
      %v2752 = vpow.pop %v2751
      %v2753 = vmul.f32 %v2750, 1.442695
      %v2754 = vpow.pop %v2753
      %v2755 = vsel %vm919, %v2752, 0.0
      %2756 = vadd.xlane.f32.xlu0 %v2755
      %v2757 = vpop.xlane.xlu0 %2756
      %v2758 = vsel %vm2745, %v2754, 0.0
      %2759 = vadd.xlane.f32.xlu0 %v2758
      %v2760 = vpop.xlane.xlu0 %2759
      %v2761 = vrcp.pop %v2757
      %v2762 = vrcp.pop %v2760
      %v2763 = vmul.f32 %v2752, %v2761
      %v2764 = vmul.f32 %v2754, %v2762
      %v2766 = vsel %vm919, %v2763, 0
      %v2769 = vsel %vm919, %v2764, 0
      %2771 = vmatpush.msra.mxu0 0.0
      %2772 = vmatpush.msra.mxu0 0.0
      %2773 = vmatpush.msra.mxu0 0.0
      %2774 = vmatpush.msra.mxu0 0.0
      %2775 = vmatpush.msra.mxu0 0.0
      %2776 = vmatpush.msra.mxu0 0.0
      %2777 = vmatpush.msra.mxu0 0.0
      %2778 = vmatpush.msra.mxu0 0.0
      %2779 = vmatpush.msra.mxu0 0.0
      %2780 = vmatpush.msra.mxu0 0.0
      %2781 = vmatpush.msra.mxu0 0.0
      %2782 = vmatpush.msra.mxu0 0.0
      %2783 = vmatpush.msra.mxu0 0.0
      %2784 = vmatpush.msra.mxu0 0.0
      %2785 = vmatpush.msra.mxu0 0.0
      %2786 = vmatpush.msra.mxu0 %v2706
      %2787 = vmatmul.f32.gmra.mxu0 %v2766
      %v2788 = vpop.f32.mrf.mxu0
      %v2789 = vadd.f32 0.0, %v2788
      %2790 = vmatmul.f32.gmra.mxu0 %v2769
      %v2791 = vpop.f32.mrf.mxu0
      %v2792 = vadd.f32 0.0, %v2791
      %2793 = vdwg.mxu0
      %v2794 = vld [vmem:[%s17] sm:$0xff]
      %s2795 = scalar_lea.vmem %s15, 8
      %v2796 = vld [vmem:[%s2795] sm:$0xff]
      %s2797 = scalar_lea.vmem %s16, 1
      %v2798 = vld [vmem:[%s2797] sm:$0x1]
      %v2800 = vperm.slane %v2798, 0
      %v2803 = vsel %vm832, %v2796, 0
      %2805 = vmatpush.xpose.msra.mxu0 0.0
      %2806 = vmatpush.xpose.msra.mxu0 0.0
      %2807 = vmatpush.xpose.msra.mxu0 0.0
      %2808 = vmatpush.xpose.msra.mxu0 0.0
      %2809 = vmatpush.xpose.msra.mxu0 0.0
      %2810 = vmatpush.xpose.msra.mxu0 0.0
      %2811 = vmatpush.xpose.msra.mxu0 0.0
      %2812 = vmatpush.xpose.msra.mxu0 0.0
      %2813 = vmatpush.xpose.msra.mxu0 0.0
      %2814 = vmatpush.xpose.msra.mxu0 0.0
      %2815 = vmatpush.xpose.msra.mxu0 0.0
      %2816 = vmatpush.xpose.msra.mxu0 0.0
      %2817 = vmatpush.xpose.msra.mxu0 0.0
      %2818 = vmatpush.xpose.msra.mxu0 0.0
      %2819 = vmatpush.xpose.msra.mxu0 0.0
      %2820 = vmatpush.xpose.msra.mxu0 %v2803
      %2821 = vmatmul.f32.gmra.mxu0 %v2614
      %v2822 = vpop.f32.mrf.mxu0
      %v2823 = vadd.f32 %v2800, %v2822
      %2824 = vmatmul.f32.gmra.mxu0 %v2617
      %v2825 = vpop.f32.mrf.mxu0
      %v2826 = vadd.f32 %v2800, %v2825
      %2827 = vdwg.mxu0
      %s2828 = scalar_lea.vmem %s15, 40
      %v2829 = vld [vmem:[%s2828] sm:$0xff]
      %s2830 = scalar_lea.vmem %s16, 5
      %v2831 = vld [vmem:[%s2830] sm:$0x1]
      %v2833 = vperm.slane %v2831, 0
      %v2836 = vsel %vm832, %v2829, 0
      %2838 = vmatpush.xpose.msra.mxu0 0.0
      %2839 = vmatpush.xpose.msra.mxu0 0.0
      %2840 = vmatpush.xpose.msra.mxu0 0.0
      %2841 = vmatpush.xpose.msra.mxu0 0.0
      %2842 = vmatpush.xpose.msra.mxu0 0.0
      %2843 = vmatpush.xpose.msra.mxu0 0.0
      %2844 = vmatpush.xpose.msra.mxu0 0.0
      %2845 = vmatpush.xpose.msra.mxu0 0.0
      %2846 = vmatpush.xpose.msra.mxu0 0.0
      %2847 = vmatpush.xpose.msra.mxu0 0.0
      %2848 = vmatpush.xpose.msra.mxu0 0.0
      %2849 = vmatpush.xpose.msra.mxu0 0.0
      %2850 = vmatpush.xpose.msra.mxu0 0.0
      %2851 = vmatpush.xpose.msra.mxu0 0.0
      %2852 = vmatpush.xpose.msra.mxu0 0.0
      %2853 = vmatpush.xpose.msra.mxu0 %v2836
      %2854 = vmatmul.f32.gmra.mxu0 %v2653
      %v2855 = vpop.f32.mrf.mxu0
      %v2856 = vadd.f32 %v2833, %v2855
      %2857 = vdwg.mxu0
      %s2858 = scalar_lea.vmem %s15, 72
      %v2859 = vld [vmem:[%s2858] sm:$0xff]
      %s2860 = scalar_lea.vmem %s16, 9
      %v2861 = vld [vmem:[%s2860] sm:$0x1]
      %v2863 = vperm.slane %v2861, 0
      %v2866 = vsel %vm832, %v2859, 0
      %2868 = vmatpush.xpose.msra.mxu0 0.0
      %2869 = vmatpush.xpose.msra.mxu0 0.0
      %2870 = vmatpush.xpose.msra.mxu0 0.0
      %2871 = vmatpush.xpose.msra.mxu0 0.0
      %2872 = vmatpush.xpose.msra.mxu0 0.0
      %2873 = vmatpush.xpose.msra.mxu0 0.0
      %2874 = vmatpush.xpose.msra.mxu0 0.0
      %2875 = vmatpush.xpose.msra.mxu0 0.0
      %2876 = vmatpush.xpose.msra.mxu0 0.0
      %2877 = vmatpush.xpose.msra.mxu0 0.0
      %2878 = vmatpush.xpose.msra.mxu0 0.0
      %2879 = vmatpush.xpose.msra.mxu0 0.0
      %2880 = vmatpush.xpose.msra.mxu0 0.0
      %2881 = vmatpush.xpose.msra.mxu0 0.0
      %2882 = vmatpush.xpose.msra.mxu0 0.0
      %2883 = vmatpush.xpose.msra.mxu0 %v2866
      %2884 = vmatmul.f32.gmra.mxu0 %v2653
      %v2885 = vpop.f32.mrf.mxu0
      %v2886 = vadd.f32 %v2863, %v2885
      %2887 = vdwg.mxu0
      %v2889 = vsel %vm919, %v2823, 0
      %v2892 = vsel %vm919, %v2826, 0
      %v2895 = vsel %vm919, %v2856, 0
      %2897 = vmatpush.xpose.msra.mxu0 0.0
      %2898 = vmatpush.xpose.msra.mxu0 0.0
      %2899 = vmatpush.xpose.msra.mxu0 0.0
      %2900 = vmatpush.xpose.msra.mxu0 0.0
      %2901 = vmatpush.xpose.msra.mxu0 0.0
      %2902 = vmatpush.xpose.msra.mxu0 0.0
      %2903 = vmatpush.xpose.msra.mxu0 0.0
      %2904 = vmatpush.xpose.msra.mxu0 0.0
      %2905 = vmatpush.xpose.msra.mxu0 0.0
      %2906 = vmatpush.xpose.msra.mxu0 0.0
      %2907 = vmatpush.xpose.msra.mxu0 0.0
      %2908 = vmatpush.xpose.msra.mxu0 0.0
      %2909 = vmatpush.xpose.msra.mxu0 0.0
      %2910 = vmatpush.xpose.msra.mxu0 0.0
      %2911 = vmatpush.xpose.msra.mxu0 0.0
      %2912 = vmatpush.xpose.msra.mxu0 %v2895
      %2913 = vmatmul.f32.gmra.mxu0 %v2889
      %v2914 = vpop.f32.mrf.mxu0
      %v2915 = vadd.f32 0.0, %v2914
      %2916 = vmatmul.f32.gmra.mxu0 %v2892
      %v2917 = vpop.f32.mrf.mxu0
      %v2918 = vadd.f32 0.0, %v2917
      %2919 = vdwg.mxu0
      %v2920 = vmul.f32 %v2915, 0.35355338
      %v2921 = vmul.f32 %v2918, 0.35355338
      %v2922 = vsel %vm919, %v2920, -inf
      %2923 = vmax.xlane.f32.xlu0 %v2922
      %v2924 = vpop.xlane.xlu0 %2923
      %v2925 = vsel %vm2745, %v2921, -inf
      %2926 = vmax.xlane.f32.xlu0 %v2925
      %v2927 = vpop.xlane.xlu0 %2926
      %v2928 = vsub.f32 %v2920, %v2924
      %v2929 = vsub.f32 %v2921, %v2927
      %v2930 = vmul.f32 %v2928, 1.442695
      %v2931 = vpow.pop %v2930
      %v2932 = vmul.f32 %v2929, 1.442695
      %v2933 = vpow.pop %v2932
      %v2934 = vsel %vm919, %v2931, 0.0
      %2935 = vadd.xlane.f32.xlu0 %v2934
      %v2936 = vpop.xlane.xlu0 %2935
      %v2937 = vsel %vm2745, %v2933, 0.0
      %2938 = vadd.xlane.f32.xlu0 %v2937
      %v2939 = vpop.xlane.xlu0 %2938
      %v2940 = vrcp.pop %v2936
      %v2941 = vrcp.pop %v2939
      %v2942 = vmul.f32 %v2931, %v2940
      %v2943 = vmul.f32 %v2933, %v2941
      %v2945 = vsel %vm919, %v2942, 0
      %v2948 = vsel %vm919, %v2943, 0
      %2950 = vmatpush.msra.mxu0 0.0
      %2951 = vmatpush.msra.mxu0 0.0
      %2952 = vmatpush.msra.mxu0 0.0
      %2953 = vmatpush.msra.mxu0 0.0
      %2954 = vmatpush.msra.mxu0 0.0
      %2955 = vmatpush.msra.mxu0 0.0
      %2956 = vmatpush.msra.mxu0 0.0
      %2957 = vmatpush.msra.mxu0 0.0
      %2958 = vmatpush.msra.mxu0 0.0
      %2959 = vmatpush.msra.mxu0 0.0
      %2960 = vmatpush.msra.mxu0 0.0
      %2961 = vmatpush.msra.mxu0 0.0
      %2962 = vmatpush.msra.mxu0 0.0
      %2963 = vmatpush.msra.mxu0 0.0
      %2964 = vmatpush.msra.mxu0 0.0
      %2965 = vmatpush.msra.mxu0 %v2886
      %2966 = vmatmul.f32.gmra.mxu0 %v2945
      %v2967 = vpop.f32.mrf.mxu0
      %v2968 = vadd.f32 0.0, %v2967
      %2969 = vmatmul.f32.gmra.mxu0 %v2948
      %v2970 = vpop.f32.mrf.mxu0
      %v2971 = vadd.f32 0.0, %v2970
      %2972 = vdwg.mxu0
      %v2973 = vld [vmem:[%s17 + $0x8] sm:$0xff]
      %v2975 = vsel %vm919, %v2968, 0
      %v2978 = vsel %vm919, %v2971, 0
      %2980 = vmatpush.msra.mxu0 0.0
      %2981 = vmatpush.msra.mxu0 0.0
      %2982 = vmatpush.msra.mxu0 0.0
      %2983 = vmatpush.msra.mxu0 0.0
      %2984 = vmatpush.msra.mxu0 0.0
      %2985 = vmatpush.msra.mxu0 0.0
      %2986 = vmatpush.msra.mxu0 0.0
      %2987 = vmatpush.msra.mxu0 0.0
      %2988 = vmatpush.msra.mxu0 0.0
      %2989 = vmatpush.msra.mxu0 0.0
      %2990 = vmatpush.msra.mxu0 0.0
      %2991 = vmatpush.msra.mxu0 0.0
      %2992 = vmatpush.msra.mxu0 0.0
      %2993 = vmatpush.msra.mxu0 0.0
      %2994 = vmatpush.msra.mxu0 0.0
      %2995 = vmatpush.msra.mxu0 %v2973
      %2996 = vmatmul.f32.gmra.mxu0 %v2975
      %v2997 = vpop.f32.mrf.mxu0
      %v2998 = vadd.f32 0.0, %v2997
      %2999 = vmatmul.f32.gmra.mxu0 %v2978
      %v3000 = vpop.f32.mrf.mxu0
      %v3001 = vadd.f32 0.0, %v3000
      %3002 = vdwg.mxu0
      %v3004 = vsel %vm919, %v2789, 0
      %v3007 = vsel %vm919, %v2792, 0
      %3009 = vmatpush.msra.mxu0 0.0
      %3010 = vmatpush.msra.mxu0 0.0
      %3011 = vmatpush.msra.mxu0 0.0
      %3012 = vmatpush.msra.mxu0 0.0
      %3013 = vmatpush.msra.mxu0 0.0
      %3014 = vmatpush.msra.mxu0 0.0
      %3015 = vmatpush.msra.mxu0 0.0
      %3016 = vmatpush.msra.mxu0 0.0
      %3017 = vmatpush.msra.mxu0 0.0
      %3018 = vmatpush.msra.mxu0 0.0
      %3019 = vmatpush.msra.mxu0 0.0
      %3020 = vmatpush.msra.mxu0 0.0
      %3021 = vmatpush.msra.mxu0 0.0
      %3022 = vmatpush.msra.mxu0 0.0
      %3023 = vmatpush.msra.mxu0 0.0
      %3024 = vmatpush.msra.mxu0 %v2794
      %3025 = vmatmul.f32.gmra.mxu0 %v3004
      %v3026 = vpop.f32.mrf.mxu0
      %v3027 = vadd.f32 %v2998, %v3026
      %3028 = vmatmul.f32.gmra.mxu0 %v3007
      %v3029 = vpop.f32.mrf.mxu0
      %v3030 = vadd.f32 %v3001, %v3029
      %3031 = vdwg.mxu0
      %s3032 = scalar_lea.vmem %s15, 16
      %v3033 = vld [vmem:[%s3032] sm:$0xff]
      %s3034 = scalar_lea.vmem %s16, 2
      %v3035 = vld [vmem:[%s3034] sm:$0x1]
      %v3037 = vperm.slane %v3035, 0
      %v3040 = vsel %vm832, %v3033, 0
      %3042 = vmatpush.xpose.msra.mxu0 0.0
      %3043 = vmatpush.xpose.msra.mxu0 0.0
      %3044 = vmatpush.xpose.msra.mxu0 0.0
      %3045 = vmatpush.xpose.msra.mxu0 0.0
      %3046 = vmatpush.xpose.msra.mxu0 0.0
      %3047 = vmatpush.xpose.msra.mxu0 0.0
      %3048 = vmatpush.xpose.msra.mxu0 0.0
      %3049 = vmatpush.xpose.msra.mxu0 0.0
      %3050 = vmatpush.xpose.msra.mxu0 0.0
      %3051 = vmatpush.xpose.msra.mxu0 0.0
      %3052 = vmatpush.xpose.msra.mxu0 0.0
      %3053 = vmatpush.xpose.msra.mxu0 0.0
      %3054 = vmatpush.xpose.msra.mxu0 0.0
      %3055 = vmatpush.xpose.msra.mxu0 0.0
      %3056 = vmatpush.xpose.msra.mxu0 0.0
      %3057 = vmatpush.xpose.msra.mxu0 %v3040
      %3058 = vmatmul.f32.gmra.mxu0 %v2614
      %v3059 = vpop.f32.mrf.mxu0
      %v3060 = vadd.f32 %v3037, %v3059
      %3061 = vmatmul.f32.gmra.mxu0 %v2617
      %v3062 = vpop.f32.mrf.mxu0
      %v3063 = vadd.f32 %v3037, %v3062
      %3064 = vdwg.mxu0
      %s3065 = scalar_lea.vmem %s15, 48
      %v3066 = vld [vmem:[%s3065] sm:$0xff]
      %s3067 = scalar_lea.vmem %s16, 6
      %v3068 = vld [vmem:[%s3067] sm:$0x1]
      %v3070 = vperm.slane %v3068, 0
      %v3073 = vsel %vm832, %v3066, 0
      %3075 = vmatpush.xpose.msra.mxu0 0.0
      %3076 = vmatpush.xpose.msra.mxu0 0.0
      %3077 = vmatpush.xpose.msra.mxu0 0.0
      %3078 = vmatpush.xpose.msra.mxu0 0.0
      %3079 = vmatpush.xpose.msra.mxu0 0.0
      %3080 = vmatpush.xpose.msra.mxu0 0.0
      %3081 = vmatpush.xpose.msra.mxu0 0.0
      %3082 = vmatpush.xpose.msra.mxu0 0.0
      %3083 = vmatpush.xpose.msra.mxu0 0.0
      %3084 = vmatpush.xpose.msra.mxu0 0.0
      %3085 = vmatpush.xpose.msra.mxu0 0.0
      %3086 = vmatpush.xpose.msra.mxu0 0.0
      %3087 = vmatpush.xpose.msra.mxu0 0.0
      %3088 = vmatpush.xpose.msra.mxu0 0.0
      %3089 = vmatpush.xpose.msra.mxu0 0.0
      %3090 = vmatpush.xpose.msra.mxu0 %v3073
      %3091 = vmatmul.f32.gmra.mxu0 %v2653
      %v3092 = vpop.f32.mrf.mxu0
      %v3093 = vadd.f32 %v3070, %v3092
      %3094 = vdwg.mxu0
      %s3095 = scalar_lea.vmem %s15, 80
      %v3096 = vld [vmem:[%s3095] sm:$0xff]
      %s3097 = scalar_lea.vmem %s16, 10
      %v3098 = vld [vmem:[%s3097] sm:$0x1]
      %v3100 = vperm.slane %v3098, 0
      %v3103 = vsel %vm832, %v3096, 0
      %3105 = vmatpush.xpose.msra.mxu0 0.0
      %3106 = vmatpush.xpose.msra.mxu0 0.0
      %3107 = vmatpush.xpose.msra.mxu0 0.0
      %3108 = vmatpush.xpose.msra.mxu0 0.0
      %3109 = vmatpush.xpose.msra.mxu0 0.0
      %3110 = vmatpush.xpose.msra.mxu0 0.0
      %3111 = vmatpush.xpose.msra.mxu0 0.0
      %3112 = vmatpush.xpose.msra.mxu0 0.0
      %3113 = vmatpush.xpose.msra.mxu0 0.0
      %3114 = vmatpush.xpose.msra.mxu0 0.0
      %3115 = vmatpush.xpose.msra.mxu0 0.0
      %3116 = vmatpush.xpose.msra.mxu0 0.0
      %3117 = vmatpush.xpose.msra.mxu0 0.0
      %3118 = vmatpush.xpose.msra.mxu0 0.0
      %3119 = vmatpush.xpose.msra.mxu0 0.0
      %3120 = vmatpush.xpose.msra.mxu0 %v3103
      %3121 = vmatmul.f32.gmra.mxu0 %v2653
      %v3122 = vpop.f32.mrf.mxu0
      %v3123 = vadd.f32 %v3100, %v3122
      %3124 = vdwg.mxu0
      %v3126 = vsel %vm919, %v3060, 0
      %v3129 = vsel %vm919, %v3063, 0
      %v3132 = vsel %vm919, %v3093, 0
      %3134 = vmatpush.xpose.msra.mxu0 0.0
      %3135 = vmatpush.xpose.msra.mxu0 0.0
      %3136 = vmatpush.xpose.msra.mxu0 0.0
      %3137 = vmatpush.xpose.msra.mxu0 0.0
      %3138 = vmatpush.xpose.msra.mxu0 0.0
      %3139 = vmatpush.xpose.msra.mxu0 0.0
      %3140 = vmatpush.xpose.msra.mxu0 0.0
      %3141 = vmatpush.xpose.msra.mxu0 0.0
      %3142 = vmatpush.xpose.msra.mxu0 0.0
      %3143 = vmatpush.xpose.msra.mxu0 0.0
      %3144 = vmatpush.xpose.msra.mxu0 0.0
      %3145 = vmatpush.xpose.msra.mxu0 0.0
      %3146 = vmatpush.xpose.msra.mxu0 0.0
      %3147 = vmatpush.xpose.msra.mxu0 0.0
      %3148 = vmatpush.xpose.msra.mxu0 0.0
      %3149 = vmatpush.xpose.msra.mxu0 %v3132
      %3150 = vmatmul.f32.gmra.mxu0 %v3126
      %v3151 = vpop.f32.mrf.mxu0
      %v3152 = vadd.f32 0.0, %v3151
      %3153 = vmatmul.f32.gmra.mxu0 %v3129
      %v3154 = vpop.f32.mrf.mxu0
      %v3155 = vadd.f32 0.0, %v3154
      %3156 = vdwg.mxu0
      %v3157 = vmul.f32 %v3152, 0.35355338
      %v3158 = vmul.f32 %v3155, 0.35355338
      %v3159 = vsel %vm919, %v3157, -inf
      %3160 = vmax.xlane.f32.xlu0 %v3159
      %v3161 = vpop.xlane.xlu0 %3160
      %v3162 = vsel %vm2745, %v3158, -inf
      %3163 = vmax.xlane.f32.xlu0 %v3162
      %v3164 = vpop.xlane.xlu0 %3163
      %v3165 = vsub.f32 %v3157, %v3161
      %v3166 = vsub.f32 %v3158, %v3164
      %v3167 = vmul.f32 %v3165, 1.442695
      %v3168 = vpow.pop %v3167
      %v3169 = vmul.f32 %v3166, 1.442695
      %v3170 = vpow.pop %v3169
      %v3171 = vsel %vm919, %v3168, 0.0
      %3172 = vadd.xlane.f32.xlu0 %v3171
      %v3173 = vpop.xlane.xlu0 %3172
      %v3174 = vsel %vm2745, %v3170, 0.0
      %3175 = vadd.xlane.f32.xlu0 %v3174
      %v3176 = vpop.xlane.xlu0 %3175
      %v3177 = vrcp.pop %v3173
      %v3178 = vrcp.pop %v3176
      %v3179 = vmul.f32 %v3168, %v3177
      %v3180 = vmul.f32 %v3170, %v3178
      %v3182 = vsel %vm919, %v3179, 0
      %v3185 = vsel %vm919, %v3180, 0
      %3187 = vmatpush.msra.mxu0 0.0
      %3188 = vmatpush.msra.mxu0 0.0
      %3189 = vmatpush.msra.mxu0 0.0
      %3190 = vmatpush.msra.mxu0 0.0
      %3191 = vmatpush.msra.mxu0 0.0
      %3192 = vmatpush.msra.mxu0 0.0
      %3193 = vmatpush.msra.mxu0 0.0
      %3194 = vmatpush.msra.mxu0 0.0
      %3195 = vmatpush.msra.mxu0 0.0
      %3196 = vmatpush.msra.mxu0 0.0
      %3197 = vmatpush.msra.mxu0 0.0
      %3198 = vmatpush.msra.mxu0 0.0
      %3199 = vmatpush.msra.mxu0 0.0
      %3200 = vmatpush.msra.mxu0 0.0
      %3201 = vmatpush.msra.mxu0 0.0
      %3202 = vmatpush.msra.mxu0 %v3123
      %3203 = vmatmul.f32.gmra.mxu0 %v3182
      %v3204 = vpop.f32.mrf.mxu0
      %v3205 = vadd.f32 0.0, %v3204
      %3206 = vmatmul.f32.gmra.mxu0 %v3185
      %v3207 = vpop.f32.mrf.mxu0
      %v3208 = vadd.f32 0.0, %v3207
      %3209 = vdwg.mxu0
      %v3210 = vld [vmem:[%s17 + $0x10] sm:$0xff]
      %v3212 = vsel %vm919, %v3205, 0
      %v3215 = vsel %vm919, %v3208, 0
      %3217 = vmatpush.msra.mxu0 0.0
      %3218 = vmatpush.msra.mxu0 0.0
      %3219 = vmatpush.msra.mxu0 0.0
      %3220 = vmatpush.msra.mxu0 0.0
      %3221 = vmatpush.msra.mxu0 0.0
      %3222 = vmatpush.msra.mxu0 0.0
      %3223 = vmatpush.msra.mxu0 0.0
      %3224 = vmatpush.msra.mxu0 0.0
      %3225 = vmatpush.msra.mxu0 0.0
      %3226 = vmatpush.msra.mxu0 0.0
      %3227 = vmatpush.msra.mxu0 0.0
      %3228 = vmatpush.msra.mxu0 0.0
      %3229 = vmatpush.msra.mxu0 0.0
      %3230 = vmatpush.msra.mxu0 0.0
      %3231 = vmatpush.msra.mxu0 0.0
      %3232 = vmatpush.msra.mxu0 %v3210
      %3233 = vmatmul.f32.gmra.mxu0 %v3212
      %v3234 = vpop.f32.mrf.mxu0
      %v3235 = vadd.f32 0.0, %v3234
      %3236 = vmatmul.f32.gmra.mxu0 %v3215
      %v3237 = vpop.f32.mrf.mxu0
      %v3238 = vadd.f32 0.0, %v3237
      %3239 = vdwg.mxu0
      %v3240 = vadd.f32 %v3027, %v3235
      %v3241 = vadd.f32 %v3030, %v3238
      %s3242 = scalar_lea.vmem %s15, 24
      %v3243 = vld [vmem:[%s3242] sm:$0xff]
      %s3244 = scalar_lea.vmem %s16, 3
      %v3245 = vld [vmem:[%s3244] sm:$0x1]
      %v3247 = vperm.slane %v3245, 0
      %v3250 = vsel %vm832, %v3243, 0
      %3252 = vmatpush.xpose.msra.mxu0 0.0
      %3253 = vmatpush.xpose.msra.mxu0 0.0
      %3254 = vmatpush.xpose.msra.mxu0 0.0
      %3255 = vmatpush.xpose.msra.mxu0 0.0
      %3256 = vmatpush.xpose.msra.mxu0 0.0
      %3257 = vmatpush.xpose.msra.mxu0 0.0
      %3258 = vmatpush.xpose.msra.mxu0 0.0
      %3259 = vmatpush.xpose.msra.mxu0 0.0
      %3260 = vmatpush.xpose.msra.mxu0 0.0
      %3261 = vmatpush.xpose.msra.mxu0 0.0
      %3262 = vmatpush.xpose.msra.mxu0 0.0
      %3263 = vmatpush.xpose.msra.mxu0 0.0
      %3264 = vmatpush.xpose.msra.mxu0 0.0
      %3265 = vmatpush.xpose.msra.mxu0 0.0
      %3266 = vmatpush.xpose.msra.mxu0 0.0
      %3267 = vmatpush.xpose.msra.mxu0 %v3250
      %3268 = vmatmul.f32.gmra.mxu0 %v2614
      %v3269 = vpop.f32.mrf.mxu0
      %v3270 = vadd.f32 %v3247, %v3269
      %3271 = vmatmul.f32.gmra.mxu0 %v2617
      %v3272 = vpop.f32.mrf.mxu0
      %v3273 = vadd.f32 %v3247, %v3272
      %3274 = vdwg.mxu0
      %s3275 = scalar_lea.vmem %s15, 56
      %v3276 = vld [vmem:[%s3275] sm:$0xff]
      %s3277 = scalar_lea.vmem %s16, 7
      %v3278 = vld [vmem:[%s3277] sm:$0x1]
      %v3280 = vperm.slane %v3278, 0
      %v3283 = vsel %vm832, %v3276, 0
      %3285 = vmatpush.xpose.msra.mxu0 0.0
      %3286 = vmatpush.xpose.msra.mxu0 0.0
      %3287 = vmatpush.xpose.msra.mxu0 0.0
      %3288 = vmatpush.xpose.msra.mxu0 0.0
      %3289 = vmatpush.xpose.msra.mxu0 0.0
      %3290 = vmatpush.xpose.msra.mxu0 0.0
      %3291 = vmatpush.xpose.msra.mxu0 0.0
      %3292 = vmatpush.xpose.msra.mxu0 0.0
      %3293 = vmatpush.xpose.msra.mxu0 0.0
      %3294 = vmatpush.xpose.msra.mxu0 0.0
      %3295 = vmatpush.xpose.msra.mxu0 0.0
      %3296 = vmatpush.xpose.msra.mxu0 0.0
      %3297 = vmatpush.xpose.msra.mxu0 0.0
      %3298 = vmatpush.xpose.msra.mxu0 0.0
      %3299 = vmatpush.xpose.msra.mxu0 0.0
      %3300 = vmatpush.xpose.msra.mxu0 %v3283
      %3301 = vmatmul.f32.gmra.mxu0 %v2653
      %v3302 = vpop.f32.mrf.mxu0
      %v3303 = vadd.f32 %v3280, %v3302
      %3304 = vdwg.mxu0
      %s3305 = scalar_lea.vmem %s15, 88
      %v3306 = vld [vmem:[%s3305] sm:$0xff]
      %s3307 = scalar_lea.vmem %s16, 11
      %v3308 = vld [vmem:[%s3307] sm:$0x1]
      %v3310 = vperm.slane %v3308, 0
      %v3313 = vsel %vm832, %v3306, 0
      %3315 = vmatpush.xpose.msra.mxu0 0.0
      %3316 = vmatpush.xpose.msra.mxu0 0.0
      %3317 = vmatpush.xpose.msra.mxu0 0.0
      %3318 = vmatpush.xpose.msra.mxu0 0.0
      %3319 = vmatpush.xpose.msra.mxu0 0.0
      %3320 = vmatpush.xpose.msra.mxu0 0.0
      %3321 = vmatpush.xpose.msra.mxu0 0.0
      %3322 = vmatpush.xpose.msra.mxu0 0.0
      %3323 = vmatpush.xpose.msra.mxu0 0.0
      %3324 = vmatpush.xpose.msra.mxu0 0.0
      %3325 = vmatpush.xpose.msra.mxu0 0.0
      %3326 = vmatpush.xpose.msra.mxu0 0.0
      %3327 = vmatpush.xpose.msra.mxu0 0.0
      %3328 = vmatpush.xpose.msra.mxu0 0.0
      %3329 = vmatpush.xpose.msra.mxu0 0.0
      %3330 = vmatpush.xpose.msra.mxu0 %v3313
      %3331 = vmatmul.f32.gmra.mxu0 %v2653
      %v3332 = vpop.f32.mrf.mxu0
      %v3333 = vadd.f32 %v3310, %v3332
      %3334 = vdwg.mxu0
      %v3336 = vsel %vm919, %v3270, 0
      %v3339 = vsel %vm919, %v3273, 0
      %v3342 = vsel %vm919, %v3303, 0
      %3344 = vmatpush.xpose.msra.mxu0 0.0
      %3345 = vmatpush.xpose.msra.mxu0 0.0
      %3346 = vmatpush.xpose.msra.mxu0 0.0
      %3347 = vmatpush.xpose.msra.mxu0 0.0
      %3348 = vmatpush.xpose.msra.mxu0 0.0
      %3349 = vmatpush.xpose.msra.mxu0 0.0
      %3350 = vmatpush.xpose.msra.mxu0 0.0
      %3351 = vmatpush.xpose.msra.mxu0 0.0
      %3352 = vmatpush.xpose.msra.mxu0 0.0
      %3353 = vmatpush.xpose.msra.mxu0 0.0
      %3354 = vmatpush.xpose.msra.mxu0 0.0
      %3355 = vmatpush.xpose.msra.mxu0 0.0
      %3356 = vmatpush.xpose.msra.mxu0 0.0
      %3357 = vmatpush.xpose.msra.mxu0 0.0
      %3358 = vmatpush.xpose.msra.mxu0 0.0
      %3359 = vmatpush.xpose.msra.mxu0 %v3342
      %3360 = vmatmul.f32.gmra.mxu0 %v3336
      %v3361 = vpop.f32.mrf.mxu0
      %v3362 = vadd.f32 0.0, %v3361
      %3363 = vmatmul.f32.gmra.mxu0 %v3339
      %v3364 = vpop.f32.mrf.mxu0
      %v3365 = vadd.f32 0.0, %v3364
      %3366 = vdwg.mxu0
      %v3367 = vmul.f32 %v3362, 0.35355338
      %v3368 = vmul.f32 %v3365, 0.35355338
      %v3369 = vsel %vm919, %v3367, -inf
      %3370 = vmax.xlane.f32.xlu0 %v3369
      %v3371 = vpop.xlane.xlu0 %3370
      %v3372 = vsel %vm2745, %v3368, -inf
      %3373 = vmax.xlane.f32.xlu0 %v3372
      %v3374 = vpop.xlane.xlu0 %3373
      %v3375 = vsub.f32 %v3367, %v3371
      %v3376 = vsub.f32 %v3368, %v3374
      %v3377 = vmul.f32 %v3375, 1.442695
      %v3378 = vpow.pop %v3377
      %v3379 = vmul.f32 %v3376, 1.442695
      %v3380 = vpow.pop %v3379
      %v3381 = vsel %vm919, %v3378, 0.0
      %3382 = vadd.xlane.f32.xlu0 %v3381
      %v3383 = vpop.xlane.xlu0 %3382
      %v3384 = vsel %vm2745, %v3380, 0.0
      %3385 = vadd.xlane.f32.xlu0 %v3384
      %v3386 = vpop.xlane.xlu0 %3385
      %v3387 = vrcp.pop %v3383
      %v3388 = vrcp.pop %v3386
      %v3389 = vmul.f32 %v3378, %v3387
      %v3390 = vmul.f32 %v3380, %v3388
      %v3392 = vsel %vm919, %v3389, 0
      %v3395 = vsel %vm919, %v3390, 0
      %3397 = vmatpush.msra.mxu0 0.0
      %3398 = vmatpush.msra.mxu0 0.0
      %3399 = vmatpush.msra.mxu0 0.0
      %3400 = vmatpush.msra.mxu0 0.0
      %3401 = vmatpush.msra.mxu0 0.0
      %3402 = vmatpush.msra.mxu0 0.0
      %3403 = vmatpush.msra.mxu0 0.0
      %3404 = vmatpush.msra.mxu0 0.0
      %3405 = vmatpush.msra.mxu0 0.0
      %3406 = vmatpush.msra.mxu0 0.0
      %3407 = vmatpush.msra.mxu0 0.0
      %3408 = vmatpush.msra.mxu0 0.0
      %3409 = vmatpush.msra.mxu0 0.0
      %3410 = vmatpush.msra.mxu0 0.0
      %3411 = vmatpush.msra.mxu0 0.0
      %3412 = vmatpush.msra.mxu0 %v3333
      %3413 = vmatmul.f32.gmra.mxu0 %v3392
      %v3414 = vpop.f32.mrf.mxu0
      %v3415 = vadd.f32 0.0, %v3414
      %3416 = vmatmul.f32.gmra.mxu0 %v3395
      %v3417 = vpop.f32.mrf.mxu0
      %v3418 = vadd.f32 0.0, %v3417
      %3419 = vdwg.mxu0
      %v3420 = vld [vmem:[%s17 + $0x18] sm:$0xff]
      %v3422 = vsel %vm919, %v3415, 0
      %v3425 = vsel %vm919, %v3418, 0
      %3427 = vmatpush.msra.mxu0 0.0
      %3428 = vmatpush.msra.mxu0 0.0
      %3429 = vmatpush.msra.mxu0 0.0
      %3430 = vmatpush.msra.mxu0 0.0
      %3431 = vmatpush.msra.mxu0 0.0
      %3432 = vmatpush.msra.mxu0 0.0
      %3433 = vmatpush.msra.mxu0 0.0
      %3434 = vmatpush.msra.mxu0 0.0
      %3435 = vmatpush.msra.mxu0 0.0
      %3436 = vmatpush.msra.mxu0 0.0
      %3437 = vmatpush.msra.mxu0 0.0
      %3438 = vmatpush.msra.mxu0 0.0
      %3439 = vmatpush.msra.mxu0 0.0
      %3440 = vmatpush.msra.mxu0 0.0
      %3441 = vmatpush.msra.mxu0 0.0
      %3442 = vmatpush.msra.mxu0 %v3420
      %3443 = vmatmul.f32.gmra.mxu0 %v3422
      %v3444 = vpop.f32.mrf.mxu0
      %v3445 = vadd.f32 0.0, %v3444
      %3446 = vmatmul.f32.gmra.mxu0 %v3425
      %v3447 = vpop.f32.mrf.mxu0
      %v3448 = vadd.f32 0.0, %v3447
      %3449 = vdwg.mxu0
      %v3450 = vadd.f32 %v3240, %v3445
      %v3451 = vadd.f32 %v3241, %v3448
      %v3452 = vld [vmem:[%s17 + $0x20] sm:$0x1]
      %v3453 = vperm.slane %v3452, 0
      %v3454 = vadd.f32 %v3450, %v3453
      %v3455 = vadd.f32 %v3451, %v3453
      %v3456 = vadd.f32 %v2606, %v3454
      %v3457 = vadd.f32 %v2607, %v3455
      %v3458 = vsel %vm832, %v3456, 0.0
      %3459 = vadd.xlane.f32.xlu0 %v3458
      %v3460 = vpop.xlane.xlu0 %3459
      %v3461 = vsel %vm2558, %v3457, 0.0
      %3462 = vadd.xlane.f32.xlu0 %v3461
      %v3463 = vpop.xlane.xlu0 %3462
      %v3464 = vmul.f32 %v3460, %v1545
      %v3465 = vmul.f32 %v3463, %v1545
      %v3466 = vsub.f32 %v3456, %v3464
      %v3467 = vsub.f32 %v3457, %v3465
      %v3468 = vmul.f32 %v3466, %v3466
      %v3469 = vmul.f32 %v3467, %v3467
      %v3470 = vsel %vm832, %v3468, 0.0
      %3471 = vadd.xlane.f32.xlu0 %v3470
      %v3472 = vpop.xlane.xlu0 %3471
      %v3473 = vsel %vm2558, %v3469, 0.0
      %3474 = vadd.xlane.f32.xlu0 %v3473
      %v3475 = vpop.xlane.xlu0 %3474
      %v3476 = vmul.f32 %v3472, %v1545
      %v3477 = vmul.f32 %v3475, %v1545
      %v3478 = vadd.f32 %v3476, 1e-05
      %v3479 = vadd.f32 %v3477, 1e-05
      %v3480 = vrsqrt.pop %v3478
      %v3481 = vmul.f32 %v3480, %v3478
      %v3482 = vmul.f32 %v3481, %v3480
      %v3483 = vmul.f32 0.5, %v3482
      %v3484 = vsub.f32 1.5, %v3483
      %v3485 = vmul.f32 %v3480, %v3484
      %vm3486 = vweird.f32 %v3478
      %vm3487 = vweird.f32 %v3480
      %vm3488 = vmor %vm3486, %vm3487
      %v3489 = vsel %vm3488, %v3480, %v3485
      %v3490 = vrsqrt.pop %v3479
      %v3491 = vmul.f32 %v3490, %v3479
      %v3492 = vmul.f32 %v3491, %v3490
      %v3493 = vmul.f32 0.5, %v3492
      %v3494 = vsub.f32 1.5, %v3493
      %v3495 = vmul.f32 %v3490, %v3494
      %vm3496 = vweird.f32 %v3479
      %vm3497 = vweird.f32 %v3490
      %vm3498 = vmor %vm3496, %vm3497
      %v3499 = vsel %vm3498, %v3490, %v3495
      %v3500 = vmul.f32 %v3466, %v3489
      %v3501 = vmul.f32 %v3467, %v3499
      %v3502 = vld [vmem:[%s18] sm:$0x1]
      %v3503 = vperm.slane %v3502, 0
      %v3504 = vmul.f32 %v3500, %v3503
      %v3505 = vmul.f32 %v3501, %v3503
      %v3506 = vld [vmem:[%s18 + $0x1] sm:$0x1]
      %v3507 = vperm.slane %v3506, 0
      %v3508 = vadd.f32 %v3504, %v3507
      %v3509 = vadd.f32 %v3505, %v3507
      %v3510 = vld [vmem:[%s19] sm:$0xff]
      %v3511 = vld [vmem:[%s19 + $0x8] sm:$0xff]
      %v3512 = vld [vmem:[%s19 + $0x10] sm:$0xff]
      %v3513 = vld [vmem:[%s19 + $0x18] sm:$0xff]
      %v3514 = vld [vmem:[%s19 + $0x20] sm:$0x1]
      %v3515 = vperm.slane %v3514, 0
      %v3517 = vsel %vm832, %v3508, 0
      %v3520 = vsel %vm832, %v3509, 0
      %3522 = vmatpush.msra.mxu0 0.0
      %3523 = vmatpush.msra.mxu0 0.0
      %3524 = vmatpush.msra.mxu0 0.0
      %3525 = vmatpush.msra.mxu0 0.0
      %3526 = vmatpush.msra.mxu0 0.0
      %3527 = vmatpush.msra.mxu0 0.0
      %3528 = vmatpush.msra.mxu0 0.0
      %3529 = vmatpush.msra.mxu0 0.0
      %3530 = vmatpush.msra.mxu0 0.0
      %3531 = vmatpush.msra.mxu0 0.0
      %3532 = vmatpush.msra.mxu0 0.0
      %3533 = vmatpush.msra.mxu0 0.0
      %3534 = vmatpush.msra.mxu0 %v3513
      %3535 = vmatpush.msra.mxu0 %v3512
      %3536 = vmatpush.msra.mxu0 %v3511
      %3537 = vmatpush.msra.mxu0 %v3510
      %3538 = vmatmul.f32.gmra.mxu0 %v3517
      %v3539 = vpop.f32.mrf.mxu0
      %v3540 = vadd.f32 %v3515, %v3539
      %3541 = vmatmul.f32.gmra.mxu0 %v3520
      %v3542 = vpop.f32.mrf.mxu0
      %v3543 = vadd.f32 %v3515, %v3542
      %3544 = vdwg.mxu0
      %v3545 = vmax.f32 %v3540, 0.0
      %v3546 = vmax.f32 %v3543, 0.0
      %v3547 = vld [vmem:[%s20] sm:$0xff]
      %v3548 = vld [vmem:[%s20 + $0x8] sm:$0x1]
      %v3549 = vperm.slane %v3548, 0
      %v3551 = vsel %vm919, %v3545, 0
      %v3554 = vsel %vm919, %v3546, 0
      %3556 = vmatpush.msra.mxu0 0.0
      %3557 = vmatpush.msra.mxu0 0.0
      %3558 = vmatpush.msra.mxu0 0.0
      %3559 = vmatpush.msra.mxu0 0.0
      %3560 = vmatpush.msra.mxu0 0.0
      %3561 = vmatpush.msra.mxu0 0.0
      %3562 = vmatpush.msra.mxu0 0.0
      %3563 = vmatpush.msra.mxu0 0.0
      %3564 = vmatpush.msra.mxu0 0.0
      %3565 = vmatpush.msra.mxu0 0.0
      %3566 = vmatpush.msra.mxu0 0.0
      %3567 = vmatpush.msra.mxu0 0.0
      %3568 = vmatpush.msra.mxu0 0.0
      %3569 = vmatpush.msra.mxu0 0.0
      %3570 = vmatpush.msra.mxu0 0.0
      %3571 = vmatpush.msra.mxu0 %v3547
      %3572 = vmatmul.f32.gmra.mxu0 %v3551
      %v3573 = vpop.f32.mrf.mxu0
      %v3574 = vadd.f32 %v3549, %v3573
      %3575 = vmatmul.f32.gmra.mxu0 %v3554
      %v3576 = vpop.f32.mrf.mxu0
      %v3577 = vadd.f32 %v3549, %v3576
      %3578 = vdwg.mxu0
      %v3579 = vadd.f32 %v3508, %v3574
      %v3580 = vadd.f32 %v3509, %v3577
      %v3581 = vsel %vm832, %v3579, 0.0
      %3582 = vadd.xlane.f32.xlu0 %v3581
      %v3583 = vpop.xlane.xlu0 %3582
      %v3584 = vsel %vm2558, %v3580, 0.0
      %3585 = vadd.xlane.f32.xlu0 %v3584
      %v3586 = vpop.xlane.xlu0 %3585
      %v3587 = vmul.f32 %v3583, %v1545
      %v3588 = vmul.f32 %v3586, %v1545
      %v3589 = vsub.f32 %v3579, %v3587
      %v3590 = vsub.f32 %v3580, %v3588
      %v3591 = vmul.f32 %v3589, %v3589
      %v3592 = vmul.f32 %v3590, %v3590
      %v3593 = vsel %vm832, %v3591, 0.0
      %3594 = vadd.xlane.f32.xlu0 %v3593
      %v3595 = vpop.xlane.xlu0 %3594
      %v3596 = vsel %vm2558, %v3592, 0.0
      %3597 = vadd.xlane.f32.xlu0 %v3596
      %v3598 = vpop.xlane.xlu0 %3597
      %v3599 = vmul.f32 %v3595, %v1545
      %v3600 = vmul.f32 %v3598, %v1545
      %v3601 = vadd.f32 %v3599, 1e-05
      %v3602 = vadd.f32 %v3600, 1e-05
      %v3603 = vrsqrt.pop %v3601
      %v3604 = vmul.f32 %v3603, %v3601
      %v3605 = vmul.f32 %v3604, %v3603
      %v3606 = vmul.f32 0.5, %v3605
      %v3607 = vsub.f32 1.5, %v3606
      %v3608 = vmul.f32 %v3603, %v3607
      %vm3609 = vweird.f32 %v3601
      %vm3610 = vweird.f32 %v3603
      %vm3611 = vmor %vm3609, %vm3610
      %v3612 = vsel %vm3611, %v3603, %v3608
      %v3613 = vrsqrt.pop %v3602
      %v3614 = vmul.f32 %v3613, %v3602
      %v3615 = vmul.f32 %v3614, %v3613
      %v3616 = vmul.f32 0.5, %v3615
      %v3617 = vsub.f32 1.5, %v3616
      %v3618 = vmul.f32 %v3613, %v3617
      %vm3619 = vweird.f32 %v3602
      %vm3620 = vweird.f32 %v3613
      %vm3621 = vmor %vm3619, %vm3620
      %v3622 = vsel %vm3621, %v3613, %v3618
      %v3623 = vmul.f32 %v3589, %v3612
      %v3624 = vmul.f32 %v3590, %v3622
      %v3625 = vld [vmem:[%s21] sm:$0x1]
      %v3626 = vperm.slane %v3625, 0
      %v3627 = vmul.f32 %v3623, %v3626
      %v3628 = vmul.f32 %v3624, %v3626
      %v3629 = vld [vmem:[%s21 + $0x1] sm:$0x1]
      %v3630 = vperm.slane %v3629, 0
      %v3631 = vadd.f32 %v3627, %v3630
      %v3632 = vadd.f32 %v3628, %v3630
      %v3633 = vld [vmem:[%s22] sm:$0xff]
      %v3634 = vld [vmem:[%s22 + $0x8] sm:$0xff]
      %v3635 = vld [vmem:[%s22 + $0x10] sm:$0xff]
      %v3636 = vld [vmem:[%s22 + $0x18] sm:$0xff]
      %v3637 = vld [vmem:[%s22 + $0x20] sm:$0x1]
      %v3638 = vperm.slane %v3637, 0
      %v3640 = vsel %vm832, %v3631, 0
      %v3643 = vsel %vm832, %v3632, 0
      %3645 = vmatpush.msra.mxu0 0.0
      %3646 = vmatpush.msra.mxu0 0.0
      %3647 = vmatpush.msra.mxu0 0.0
      %3648 = vmatpush.msra.mxu0 0.0
      %3649 = vmatpush.msra.mxu0 0.0
      %3650 = vmatpush.msra.mxu0 0.0
      %3651 = vmatpush.msra.mxu0 0.0
      %3652 = vmatpush.msra.mxu0 0.0
      %3653 = vmatpush.msra.mxu0 0.0
      %3654 = vmatpush.msra.mxu0 0.0
      %3655 = vmatpush.msra.mxu0 0.0
      %3656 = vmatpush.msra.mxu0 0.0
      %3657 = vmatpush.msra.mxu0 %v3636
      %3658 = vmatpush.msra.mxu0 %v3635
      %3659 = vmatpush.msra.mxu0 %v3634
      %3660 = vmatpush.msra.mxu0 %v3633
      %3661 = vmatmul.f32.gmra.mxu0 %v3640
      %v3662 = vpop.f32.mrf.mxu0
      %v3663 = vadd.f32 %v3638, %v3662
      %3664 = vmatmul.f32.gmra.mxu0 %v3643
      %v3665 = vpop.f32.mrf.mxu0
      %v3666 = vadd.f32 %v3638, %v3665
      %3667 = vdwg.mxu0
      %3668 = vmax.xlane.f32.xlu0 %v3663
      %v3669 = vpop.xlane.xlu0 %3668
      %v3670 = vsel %vm1828, %v3666, -inf
      %3671 = vmax.xlane.f32.xlu0 %v3670
      %v3672 = vpop.xlane.xlu0 %3671
      %v3673 = vsub.f32 %v3663, %v3669
      %v3674 = vsub.f32 %v3666, %v3672
      %v3675 = vmul.f32 %v3673, 1.442695
      %v3676 = vpow.pop %v3675
      %v3677 = vmul.f32 %v3674, 1.442695
      %v3678 = vpow.pop %v3677
      %3679 = vadd.xlane.f32.xlu0 %v3676
      %v3680 = vpop.xlane.xlu0 %3679
      %v3681 = vsel %vm1828, %v3678, 0.0
      %3682 = vadd.xlane.f32.xlu0 %v3681
      %v3683 = vpop.xlane.xlu0 %3682
      %v3684 = vlog2.pop %v3680
      %v3685 = vmul.f32 %v3684, 0.6931472
      %v3686 = vlog2.pop %v3683
      %v3687 = vmul.f32 %v3686, 0.6931472
      %v3688 = vadd.f32 %v3669, %v3685
      %v3689 = vadd.f32 %v3672, %v3687
      %v3690 = vsub.f32 %v3663, %v3688
      %v3691 = vsub.f32 %v3666, %v3689
      %3692 = vst [vmem:[%s710] sm:$0xff] %v3690
      %3693 = vst [vmem:[%s710 + $0x8] sm:$0x1] %v3691
      %p3694 = scmp.lt.s32.totalorder %s34, 1
      %s3695 = scalar_select %p3694, %s34, 1
      %s3696 = smul.addr %s3695, 2
      %s3697 = smul.addr %s3696, 8
      %s3698 = scalar_lea.vmem %s23, %s3697
      // Predicated region
      $region113: #{_forward_core.1} parent=111 // pred_check
        %p3699 = pneg %p540
      $region114: #{_forward_core.1} parent=111 // pred_check_branch
        %3701 = sbr.rel (%p3699) target = $region116
      $region115: #{_forward_core.1} parent=111 // pred_region
        _
      $region116: #{_forward_core.1} parent=111 // pred_fallthru
        _
    $region112: #{_forward_core.1} parent=5 // pred_fallthru
      _
    %p3702 = scmp.le.s32.totalorder 2, %s29
    // Predicated region
    $region117: #{_forward_core.1} parent=5 // pred_check
      %p3703 = pneg %p3702
    $region118: #{_forward_core.1} parent=5 // pred_check_branch
      %3705 = sbr.rel (%p3703) target = $region120
    $region119: #{_forward_core.1} parent=5 // pred_region
      %s3706 = ssub.s32 %s29, 2
      // Predicated region
      $region121: #{_forward_core.1} parent=119 // pred_check
        %p3707 = pneg %p546
      $region122: #{_forward_core.1} parent=119 // pred_check_branch
        %3709 = sbr.rel (%p3707) target = $region124
      $region123: #{_forward_core.1} parent=119 // pred_region
        %p3710 = scmp.lt.s32.totalorder %s35, 1
        %s3711 = scalar_select %p3710, %s35, 1
        %s3712 = smul.addr %s3711, 2
        %s3713 = smul.addr %s3712, 8
        %s3714 = scalar_lea.vmem %s23, %s3713
      $region124: #{_forward_core.1} parent=119 // pred_fallthru
        _
    $region120: #{_forward_core.1} parent=5 // pred_fallthru
      _
  $region6: #{_forward_core.1} parent=0 // loop_footer
    %s33 = sadd.s32 1, %s29
  $region7: #{_forward_core.1} parent=0 // loop_footer_branch
    %28 = sbr.rel target = $region3
  $region8: #{_forward_core.1} parent=0 // loop_exit
    _

</llo_original>
